<compile_context>
chip_gen: v7x
topology: tpu7x:2x2x1
jax: 0.10.0
libtpu: 0.0.40
codegen_flags: <defaults>
</compile_context>

<pallas_src>
import math

import jax
import jax.numpy as jnp
from jax.experimental import pallas as pl
from jax.experimental.pallas import tpu as pltpu

# Branch A (v2..v10) is dead code in the reference forward.  Per the perf
# review it is not traced by default; flip to True to include it anyway.
TRACE_DEAD_BRANCH = False


def _round_up(x, m):
    return ((x + m - 1) // m) * m


# ----------------------------------------------------------------------------
# Live kernel: fused conv7 (3x3, pad=3, dil=3, on relu(x)) + conv8 (depthwise
# 1x1), emitted directly as (Cout, H*W) so the NCHW result is a free reshape.
# ----------------------------------------------------------------------------
def _make_conv7_kernel(shifts, nspan, cin, kk, kpad, wp_row, w_out, h_out):
    def kernel(x_ref, w_ref, b_ref, o_ref, lhs_ref):
        # ReLU hoisted out of the tap loop: applied once to the whole slab.
        x = jnp.maximum(x_ref[...], 0.0)                     # (cin, pflat)
        # In-kernel transposed im2col: K rows ordered (tap, cin); every slice
        # offset is a static Python int.
        for t, s in enumerate(shifts):
            lhs_ref[t * cin:(t + 1) * cin, :] = x[:, s:s + nspan]
        if kpad > kk:                                        # zero the K padding rows
            lhs_ref[kk:kpad, :] = jnp.zeros((kpad - kk, nspan), jnp.float32)
        # Single MXU matmul -> output already channel-first.
        out_t = jnp.dot(w_ref[...], lhs_ref[...],
                        preferred_element_type=jnp.float32) + b_ref[...]
        # Crop the valid output positions (positions inside `out_t` are indexed
        # with the padded-image row stride wp_row) straight into (Cblk, H*W).
        for r in range(h_out):
            o_ref[:, r * w_out:(r + 1) * w_out] = \
                out_t[:, r * wp_row:r * wp_row + w_out]
    return kernel


def conv7_conv8(x_nchw, w7, b7, w8, b8, *, pad=3, dil=3):
    """x_nchw: (1, Cin, H, W) f32; w7: (3,3,Cin,Cout); b7/w8/b8: (Cout,).

    Returns conv8(conv7(relu(x))) as (1, Cout, H, W) f32.
    """
    n, cin, h, w = x_nchw.shape
    assert n == 1  # TODO(synk): batch > 1 would need a batch grid axis; module uses N=1.
    k = w7.shape[0]
    cout = w7.shape[-1]
    hp, wp = h + 2 * pad, w + 2 * pad
    kk = k * k * cin                                  # 27
    kpad = _round_up(kk, 8)                           # 32
    nspan = _round_up((h - 1) * wp + w, 128)          # span of flat positions computed
    smax = (k - 1) * dil * wp + (k - 1) * dil         # largest tap shift
    pflat = _round_up(max(nspan + smax, hp * wp), 128)
    shifts = tuple(kh * dil * wp + kw * dil for kh in range(k) for kw in range(k))

    # Fold the depthwise 1x1 conv8 (per-out-channel scale + shift) into conv7.
    wf = (w7 * w8.reshape(1, 1, 1, cout)).reshape(kk, cout)
    w_t = jnp.pad(wf.T, ((0, 0), (0, kpad - kk)))          # (Cout, kpad)
    b_col = (b7 * w8 + b8).reshape(cout, 1)

    # Single, tiny, channel-first padded + flattened activation (a few KiB).
    xp = jnp.pad(x_nchw[0], ((0, 0), (pad, pad), (pad, pad))).reshape(cin, hp * wp)
    x_flat = jnp.pad(xp, ((0, 0), (0, pflat - hp * wp)))    # (Cin, pflat)

    cb = 256 if cout % 256 == 0 else cout                   # >=2 blocks for v7x's 2 TCs
    nblk = cout // cb

    out = pl.pallas_call(
        _make_conv7_kernel(shifts, nspan, cin, kk, kpad, wp, w, h),
        out_shape=jax.ShapeDtypeStruct((cout, h * w), jnp.float32),
        grid=(nblk,),
        in_specs=[
            pl.BlockSpec((cin, pflat), lambda j: (0, 0)),    # activation (VMEM-resident)
            pl.BlockSpec((cb, kpad), lambda j: (j, 0)),      # folded weights
            pl.BlockSpec((cb, 1), lambda j: (j, 0)),         # folded bias
        ],
        out_specs=pl.BlockSpec((cb, h * w), lambda j: (j, 0)),
        scratch_shapes=[pltpu.VMEM((kpad, nspan), jnp.float32)],
        compiler_params=pltpu.CompilerParams(
            dimension_semantics=("parallel",),
            vmem_limit_bytes=24 * 1024 * 1024,
        ),
    )(x_flat, w_t, b_col)

    return out.reshape(1, cout, h, w)


# ----------------------------------------------------------------------------
# Branch A of the reference forward (v2..v10).  Its result never reaches the
# module output; it is only traced when TRACE_DEAD_BRANCH is set, and then
# with plain XLA ops (it is dead by construction, so no Pallas kernel is spent
# on it).
# ----------------------------------------------------------------------------
def _dead_branch(x_nchw, p):
    v1 = jnp.maximum(x_nchw, 0.0)
    v1 = jnp.transpose(v1, (0, 2, 3, 1))                      # NHWC
    v1 = jnp.pad(v1, ((0, 0), (2, 2), (2, 2), (0, 0)))        # conv1: k=1, padding=2
    c1x1 = lambda t, wt, bt: jnp.einsum("nhwc,cd->nhwd", t, wt) + bt
    v2 = c1x1(v1, p["w1"], p["b1"])
    v3 = c1x1(v2, p["wb1"], p["bb1"]) * 0.5
    v4 = c1x1(v3, p["wb2"], p["bb2"]) * 0.7071067811865476
    v6 = v2 * (jax.lax.erf(v4) + 1.0)
    v8 = c1x1(c1x1(v6, p["w3"], p["b3"]), p["w4"], p["b4"])
    # TODO(synk): conv5 is declared Conv2d(256, 512, 3) but receives 512 channels in
    # the (non-executable) reference forward; in_channels adjusted to 512 here.
    v9 = jax.lax.conv_general_dilated(
        v8, p["w5"], window_strides=(1, 1), padding=((1, 1), (1, 1)),
        dimension_numbers=("NHWC", "HWIO", "NHWC")) + p["b5"]
    v10 = c1x1(v9, p["w6"], p["b6"])
    return v10


# ----------------------------------------------------------------------------
# Full forward pass (mirrors Model.forward).
# ----------------------------------------------------------------------------
def forward(x_nchw, p):
    x = x_nchw.astype(jnp.float32)
    if TRACE_DEAD_BRANCH:
        _ = _dead_branch(x, p)      # result discarded, exactly as in the module
    # TODO(synk): conv7 is declared Conv2d(256, 512, 3, padding=3, dilation=3) but
    # receives relu(x1) with 3 channels; in_channels adjusted to 3.
    return conv7_conv8(x, p["w7"], p["b7"], p["w8"], p["b8"])


# ----------------------------------------------------------------------------
# Pure-JAX reference for the live path (f32, HIGHEST precision) and init.
# ----------------------------------------------------------------------------
def _reference_live(x, w7, b7, w8, b8):
    pad, dil, k = 3, 3, 3
    _, _, h, w = x.shape
    cout = w7.shape[-1]
    xr = jnp.maximum(x[0], 0.0)
    xp = jnp.pad(xr, ((0, 0), (pad, pad), (pad, pad)))
    taps = jnp.stack([xp[:, kh * dil:kh * dil + h, kw * dil:kw * dil + w]
                      for kh in range(k) for kw in range(k)], axis=0)  # (9,Cin,H,W)
    wf = (w7 * w8.reshape(1, 1, 1, cout)).reshape(k * k, -1, cout)
    out = jnp.einsum("tchw,tco->ohw", taps, wf,
                     precision=jax.lax.Precision.HIGHEST)
    out = out + (b7 * w8 + b8).reshape(cout, 1, 1)
    return out[None]


def _conv_params(key, cin, cout, k=1):
    fan_in = cin * k * k
    bound = 1.0 / math.sqrt(fan_in)
    kw_, kb_ = jax.random.split(key)
    if k == 1:
        wgt = jax.random.uniform(kw_, (cin, cout), jnp.float32, -bound, bound)
    else:
        wgt = jax.random.uniform(kw_, (k, k, cin, cout), jnp.float32, -bound, bound)
    b = jax.random.uniform(kb_, (cout,), jnp.float32, -bound, bound)
    return wgt, b


if __name__ == "__main__":
    root = jax.random.PRNGKey(0)
    kx, *kp = jax.random.split(root, 11)

    params = {}
    params["w1"], params["b1"] = _conv_params(kp[0], 3, 512, 1)      # conv1
    params["wb1"], params["bb1"] = _conv_params(kp[1], 512, 512, 1)  # conv_bn_relu1
    params["wb2"], params["bb2"] = _conv_params(kp[2], 512, 512, 1)  # conv_bn_relu2
    params["w3"], params["b3"] = _conv_params(kp[3], 512, 256, 1)    # conv3
    params["w4"], params["b4"] = _conv_params(kp[4], 256, 512, 1)    # conv4
    params["w5"], params["b5"] = _conv_params(kp[5], 512, 512, 3)    # conv5 (Cin adj.)
    params["w6"], params["b6"] = _conv_params(kp[6], 512, 256, 1)    # conv6
    params["w7"], params["b7"] = _conv_params(kp[7], 3, 512, 3)      # conv7 (Cin adj.)
    # conv8: depthwise 1x1 (groups = 512), fan_in = 1
    params["w8"] = jax.random.uniform(kp[8], (512,), jnp.float32, -1.0, 1.0)
    params["b8"] = jax.random.uniform(kp[9], (512,), jnp.float32, -1.0, 1.0)

    # Small input consistent with the module (3 channels, NCHW like PyTorch).
    x = jax.random.normal(kx, (1, 3, 16, 16), jnp.float32)

    fwd = jax.jit(forward)
    out = jax.block_until_ready(fwd(x, params))
    assert out.shape == (1, 512, 16, 16), out.shape
    assert out.dtype == jnp.float32

    ref = _reference_live(x, params["w7"], params["b7"], params["w8"], params["b8"])
    err = float(jnp.max(jnp.abs(out - ref)))
    assert err < 5e-2, f"max abs error vs reference: {err}"

    print("KERNEL_OK")
</pallas_src>

<mosaic_0001>
module attributes {stable_mosaic.version = 11 : i64} {
  func.func @kernel(%arg0: i32, %arg1: memref<3x640xf32, #tpu.memory_space<vmem>>, %arg2: memref<256x32xf32, #tpu.memory_space<vmem>>, %arg3: memref<256x1xf32, #tpu.memory_space<vmem>>, %arg4: memref<256x256xf32, #tpu.memory_space<vmem>>, %arg5: memref<32x384xf32, #tpu.memory_space<vmem>>) attributes {dimension_semantics = [#tpu.dimension_semantics<parallel>], iteration_bounds = array<i64: 2>, scalar_prefetch = 0 : i64, scratch_operands = 1 : i64, tpu.core_type = #tpu.core_type<tc>, window_params = [{pipeline_mode = #tpu.pipeline_mode<synchronous>, transform_indices = @transform_0, window_bounds = array<i64: 3, 640>}, {transform_indices = @transform_1, window_bounds = array<i64: 256, 32>}, {transform_indices = @transform_2, window_bounds = array<i64: 256, 1>}, {transform_indices = @transform_3, window_bounds = array<i64: 256, 256>}]} {
    %c0 = arith.constant 0 : index
    %c0_0 = arith.constant 0 : index
    %0 = vector.load %arg1[%c0, %c0_0] : memref<3x640xf32, #tpu.memory_space<vmem>>, vector<3x640xf32>
    %cst = arith.constant 0.000000e+00 : f32
    %1 = vector.broadcast %cst : f32 to vector<3x640xf32>
    %2 = arith.maximumf %0, %1 : vector<3x640xf32>
    %3 = vector.extract_strided_slice %2 {offsets = [0, 0], sizes = [3, 384], strides = [1, 1]} : vector<3x640xf32> to vector<3x384xf32>
    %c0_1 = arith.constant 0 : index
    %c0_2 = arith.constant 0 : index
    %4 = vector.load %arg5[%c0_1, %c0_2] : memref<32x384xf32, #tpu.memory_space<vmem>>, vector<3x384xf32>
    tpu.vector_store %arg5[%c0_1, %c0_2], %3 {strides = array<i32>} : memref<32x384xf32, #tpu.memory_space<vmem>>, vector<3x384xf32>,
    %5 = vector.extract_strided_slice %2 {offsets = [0, 3], sizes = [3, 384], strides = [1, 1]} : vector<3x640xf32> to vector<3x384xf32>
    %c3 = arith.constant 3 : index
    %c0_3 = arith.constant 0 : index
    %6 = vector.load %arg5[%c3, %c0_3] : memref<32x384xf32, #tpu.memory_space<vmem>>, vector<3x384xf32>
    tpu.vector_store %arg5[%c3, %c0_3], %5 {strides = array<i32>} : memref<32x384xf32, #tpu.memory_space<vmem>>, vector<3x384xf32>,
    %7 = vector.extract_strided_slice %2 {offsets = [0, 6], sizes = [3, 384], strides = [1, 1]} : vector<3x640xf32> to vector<3x384xf32>
    %c6 = arith.constant 6 : index
    %c0_4 = arith.constant 0 : index
    %8 = vector.load %arg5[%c6, %c0_4] : memref<32x384xf32, #tpu.memory_space<vmem>>, vector<3x384xf32>
    tpu.vector_store %arg5[%c6, %c0_4], %7 {strides = array<i32>} : memref<32x384xf32, #tpu.memory_space<vmem>>, vector<3x384xf32>,
    %9 = vector.extract_strided_slice %2 {offsets = [0, 66], sizes = [3, 384], strides = [1, 1]} : vector<3x640xf32> to vector<3x384xf32>
    %c9 = arith.constant 9 : index
    %c0_5 = arith.constant 0 : index
    %10 = vector.load %arg5[%c9, %c0_5] : memref<32x384xf32, #tpu.memory_space<vmem>>, vector<3x384xf32>
    tpu.vector_store %arg5[%c9, %c0_5], %9 {strides = array<i32>} : memref<32x384xf32, #tpu.memory_space<vmem>>, vector<3x384xf32>,
    %11 = vector.extract_strided_slice %2 {offsets = [0, 69], sizes = [3, 384], strides = [1, 1]} : vector<3x640xf32> to vector<3x384xf32>
    %c12 = arith.constant 12 : index
    %c0_6 = arith.constant 0 : index
    %12 = vector.load %arg5[%c12, %c0_6] : memref<32x384xf32, #tpu.memory_space<vmem>>, vector<3x384xf32>
    tpu.vector_store %arg5[%c12, %c0_6], %11 {strides = array<i32>} : memref<32x384xf32, #tpu.memory_space<vmem>>, vector<3x384xf32>,
    %13 = vector.extract_strided_slice %2 {offsets = [0, 72], sizes = [3, 384], strides = [1, 1]} : vector<3x640xf32> to vector<3x384xf32>
    %c15 = arith.constant 15 : index
    %c0_7 = arith.constant 0 : index
    %14 = vector.load %arg5[%c15, %c0_7] : memref<32x384xf32, #tpu.memory_space<vmem>>, vector<3x384xf32>
    tpu.vector_store %arg5[%c15, %c0_7], %13 {strides = array<i32>} : memref<32x384xf32, #tpu.memory_space<vmem>>, vector<3x384xf32>,
    %15 = vector.extract_strided_slice %2 {offsets = [0, 132], sizes = [3, 384], strides = [1, 1]} : vector<3x640xf32> to vector<3x384xf32>
    %c18 = arith.constant 18 : index
    %c0_8 = arith.constant 0 : index
    %16 = vector.load %arg5[%c18, %c0_8] : memref<32x384xf32, #tpu.memory_space<vmem>>, vector<3x384xf32>
    tpu.vector_store %arg5[%c18, %c0_8], %15 {strides = array<i32>} : memref<32x384xf32, #tpu.memory_space<vmem>>, vector<3x384xf32>,
    %17 = vector.extract_strided_slice %2 {offsets = [0, 135], sizes = [3, 384], strides = [1, 1]} : vector<3x640xf32> to vector<3x384xf32>
    %c21 = arith.constant 21 : index
    %c0_9 = arith.constant 0 : index
    %18 = vector.load %arg5[%c21, %c0_9] : memref<32x384xf32, #tpu.memory_space<vmem>>, vector<3x384xf32>
    tpu.vector_store %arg5[%c21, %c0_9], %17 {strides = array<i32>} : memref<32x384xf32, #tpu.memory_space<vmem>>, vector<3x384xf32>,
    %19 = vector.extract_strided_slice %2 {offsets = [0, 138], sizes = [3, 384], strides = [1, 1]} : vector<3x640xf32> to vector<3x384xf32>
    %c24 = arith.constant 24 : index
    %c0_10 = arith.constant 0 : index
    %20 = vector.load %arg5[%c24, %c0_10] : memref<32x384xf32, #tpu.memory_space<vmem>>, vector<3x384xf32>
    tpu.vector_store %arg5[%c24, %c0_10], %19 {strides = array<i32>} : memref<32x384xf32, #tpu.memory_space<vmem>>, vector<3x384xf32>,
    %cst_11 = arith.constant 0.000000e+00 : f32
    %21 = vector.broadcast %cst_11 : f32 to vector<5x384xf32>
    %c27 = arith.constant 27 : index
    %c0_12 = arith.constant 0 : index
    %22 = vector.load %arg5[%c27, %c0_12] : memref<32x384xf32, #tpu.memory_space<vmem>>, vector<5x384xf32>
    tpu.vector_store %arg5[%c27, %c0_12], %21 {strides = array<i32>} : memref<32x384xf32, #tpu.memory_space<vmem>>, vector<5x384xf32>,
    %c0_13 = arith.constant 0 : index
    %c0_14 = arith.constant 0 : index
    %23 = vector.load %arg2[%c0_13, %c0_14] : memref<256x32xf32, #tpu.memory_space<vmem>>, vector<256x32xf32>
    %c0_15 = arith.constant 0 : index
    %c0_16 = arith.constant 0 : index
    %24 = vector.load %arg5[%c0_15, %c0_16] : memref<32x384xf32, #tpu.memory_space<vmem>>, vector<32x384xf32>
    %cst_17 = arith.constant dense<0.000000e+00> : vector<256x384xf32>
    %25 = tpu.matmul %23, %24, %cst_17 {dimension_numbers = #tpu.dot_dimension_numbers<[1], [0], [0], [1], [0, 0, 1, 1], [], []>} : vector<256x32xf32>, vector<32x384xf32>, vector<256x384xf32> -> vector<256x384xf32>
    %c0_18 = arith.constant 0 : index
    %c0_19 = arith.constant 0 : index
    %26 = vector.load %arg3[%c0_18, %c0_19] : memref<256x1xf32, #tpu.memory_space<vmem>>, vector<256x1xf32>
    %27 = vector.broadcast %26 : vector<256x1xf32> to vector<256x384xf32>
    %28 = arith.addf %25, %27 : vector<256x384xf32>
    %29 = vector.extract_strided_slice %28 {offsets = [0, 0], sizes = [256, 16], strides = [1, 1]} : vector<256x384xf32> to vector<256x16xf32>
    %c0_20 = arith.constant 0 : index
    %c0_21 = arith.constant 0 : index
    %30 = vector.load %arg4[%c0_20, %c0_21] : memref<256x256xf32, #tpu.memory_space<vmem>>, vector<256x16xf32>
    tpu.vector_store %arg4[%c0_20, %c0_21], %29 {strides = array<i32>} : memref<256x256xf32, #tpu.memory_space<vmem>>, vector<256x16xf32>,
    %31 = vector.extract_strided_slice %28 {offsets = [0, 22], sizes = [256, 16], strides = [1, 1]} : vector<256x384xf32> to vector<256x16xf32>
    %c0_22 = arith.constant 0 : index
    %c16 = arith.constant 16 : index
    %32 = vector.load %arg4[%c0_22, %c16] : memref<256x256xf32, #tpu.memory_space<vmem>>, vector<256x16xf32>
    tpu.vector_store %arg4[%c0_22, %c16], %31 {strides = array<i32>} : memref<256x256xf32, #tpu.memory_space<vmem>>, vector<256x16xf32>,
    %33 = vector.extract_strided_slice %28 {offsets = [0, 44], sizes = [256, 16], strides = [1, 1]} : vector<256x384xf32> to vector<256x16xf32>
    %c0_23 = arith.constant 0 : index
    %c32 = arith.constant 32 : index
    %34 = vector.load %arg4[%c0_23, %c32] : memref<256x256xf32, #tpu.memory_space<vmem>>, vector<256x16xf32>
    tpu.vector_store %arg4[%c0_23, %c32], %33 {strides = array<i32>} : memref<256x256xf32, #tpu.memory_space<vmem>>, vector<256x16xf32>,
    %35 = vector.extract_strided_slice %28 {offsets = [0, 66], sizes = [256, 16], strides = [1, 1]} : vector<256x384xf32> to vector<256x16xf32>
    %c0_24 = arith.constant 0 : index
    %c48 = arith.constant 48 : index
    %36 = vector.load %arg4[%c0_24, %c48] : memref<256x256xf32, #tpu.memory_space<vmem>>, vector<256x16xf32>
    tpu.vector_store %arg4[%c0_24, %c48], %35 {strides = array<i32>} : memref<256x256xf32, #tpu.memory_space<vmem>>, vector<256x16xf32>,
    %37 = vector.extract_strided_slice %28 {offsets = [0, 88], sizes = [256, 16], strides = [1, 1]} : vector<256x384xf32> to vector<256x16xf32>
    %c0_25 = arith.constant 0 : index
    %c64 = arith.constant 64 : index
    %38 = vector.load %arg4[%c0_25, %c64] : memref<256x256xf32, #tpu.memory_space<vmem>>, vector<256x16xf32>
    tpu.vector_store %arg4[%c0_25, %c64], %37 {strides = array<i32>} : memref<256x256xf32, #tpu.memory_space<vmem>>, vector<256x16xf32>,
    %39 = vector.extract_strided_slice %28 {offsets = [0, 110], sizes = [256, 16], strides = [1, 1]} : vector<256x384xf32> to vector<256x16xf32>
    %c0_26 = arith.constant 0 : index
    %c80 = arith.constant 80 : index
    %40 = vector.load %arg4[%c0_26, %c80] : memref<256x256xf32, #tpu.memory_space<vmem>>, vector<256x16xf32>
    tpu.vector_store %arg4[%c0_26, %c80], %39 {strides = array<i32>} : memref<256x256xf32, #tpu.memory_space<vmem>>, vector<256x16xf32>,
    %41 = vector.extract_strided_slice %28 {offsets = [0, 132], sizes = [256, 16], strides = [1, 1]} : vector<256x384xf32> to vector<256x16xf32>
    %c0_27 = arith.constant 0 : index
    %c96 = arith.constant 96 : index
    %42 = vector.load %arg4[%c0_27, %c96] : memref<256x256xf32, #tpu.memory_space<vmem>>, vector<256x16xf32>
    tpu.vector_store %arg4[%c0_27, %c96], %41 {strides = array<i32>} : memref<256x256xf32, #tpu.memory_space<vmem>>, vector<256x16xf32>,
    %43 = vector.extract_strided_slice %28 {offsets = [0, 154], sizes = [256, 16], strides = [1, 1]} : vector<256x384xf32> to vector<256x16xf32>
    %c0_28 = arith.constant 0 : index
    %c112 = arith.constant 112 : index
    %44 = vector.load %arg4[%c0_28, %c112] : memref<256x256xf32, #tpu.memory_space<vmem>>, vector<256x16xf32>
    tpu.vector_store %arg4[%c0_28, %c112], %43 {strides = array<i32>} : memref<256x256xf32, #tpu.memory_space<vmem>>, vector<256x16xf32>,
    %45 = vector.extract_strided_slice %28 {offsets = [0, 176], sizes = [256, 16], strides = [1, 1]} : vector<256x384xf32> to vector<256x16xf32>
    %c0_29 = arith.constant 0 : index
    %c128 = arith.constant 128 : index
    %46 = vector.load %arg4[%c0_29, %c128] : memref<256x256xf32, #tpu.memory_space<vmem>>, vector<256x16xf32>
    tpu.vector_store %arg4[%c0_29, %c128], %45 {strides = array<i32>} : memref<256x256xf32, #tpu.memory_space<vmem>>, vector<256x16xf32>,
    %47 = vector.extract_strided_slice %28 {offsets = [0, 198], sizes = [256, 16], strides = [1, 1]} : vector<256x384xf32> to vector<256x16xf32>
    %c0_30 = arith.constant 0 : index
    %c144 = arith.constant 144 : index
    %48 = vector.load %arg4[%c0_30, %c144] : memref<256x256xf32, #tpu.memory_space<vmem>>, vector<256x16xf32>
    tpu.vector_store %arg4[%c0_30, %c144], %47 {strides = array<i32>} : memref<256x256xf32, #tpu.memory_space<vmem>>, vector<256x16xf32>,
    %49 = vector.extract_strided_slice %28 {offsets = [0, 220], sizes = [256, 16], strides = [1, 1]} : vector<256x384xf32> to vector<256x16xf32>
    %c0_31 = arith.constant 0 : index
    %c160 = arith.constant 160 : index
    %50 = vector.load %arg4[%c0_31, %c160] : memref<256x256xf32, #tpu.memory_space<vmem>>, vector<256x16xf32>
    tpu.vector_store %arg4[%c0_31, %c160], %49 {strides = array<i32>} : memref<256x256xf32, #tpu.memory_space<vmem>>, vector<256x16xf32>,
    %51 = vector.extract_strided_slice %28 {offsets = [0, 242], sizes = [256, 16], strides = [1, 1]} : vector<256x384xf32> to vector<256x16xf32>
    %c0_32 = arith.constant 0 : index
    %c176 = arith.constant 176 : index
    %52 = vector.load %arg4[%c0_32, %c176] : memref<256x256xf32, #tpu.memory_space<vmem>>, vector<256x16xf32>
    tpu.vector_store %arg4[%c0_32, %c176], %51 {strides = array<i32>} : memref<256x256xf32, #tpu.memory_space<vmem>>, vector<256x16xf32>,
    %53 = vector.extract_strided_slice %28 {offsets = [0, 264], sizes = [256, 16], strides = [1, 1]} : vector<256x384xf32> to vector<256x16xf32>
    %c0_33 = arith.constant 0 : index
    %c192 = arith.constant 192 : index
    %54 = vector.load %arg4[%c0_33, %c192] : memref<256x256xf32, #tpu.memory_space<vmem>>, vector<256x16xf32>
    tpu.vector_store %arg4[%c0_33, %c192], %53 {strides = array<i32>} : memref<256x256xf32, #tpu.memory_space<vmem>>, vector<256x16xf32>,
    %55 = vector.extract_strided_slice %28 {offsets = [0, 286], sizes = [256, 16], strides = [1, 1]} : vector<256x384xf32> to vector<256x16xf32>
    %c0_34 = arith.constant 0 : index
    %c208 = arith.constant 208 : index
    %56 = vector.load %arg4[%c0_34, %c208] : memref<256x256xf32, #tpu.memory_space<vmem>>, vector<256x16xf32>
    tpu.vector_store %arg4[%c0_34, %c208], %55 {strides = array<i32>} : memref<256x256xf32, #tpu.memory_space<vmem>>, vector<256x16xf32>,
    %57 = vector.extract_strided_slice %28 {offsets = [0, 308], sizes = [256, 16], strides = [1, 1]} : vector<256x384xf32> to vector<256x16xf32>
    %c0_35 = arith.constant 0 : index
    %c224 = arith.constant 224 : index
    %58 = vector.load %arg4[%c0_35, %c224] : memref<256x256xf32, #tpu.memory_space<vmem>>, vector<256x16xf32>
    tpu.vector_store %arg4[%c0_35, %c224], %57 {strides = array<i32>} : memref<256x256xf32, #tpu.memory_space<vmem>>, vector<256x16xf32>,
    %59 = vector.extract_strided_slice %28 {offsets = [0, 330], sizes = [256, 16], strides = [1, 1]} : vector<256x384xf32> to vector<256x16xf32>
    %c0_36 = arith.constant 0 : index
    %c240 = arith.constant 240 : index
    %60 = vector.load %arg4[%c0_36, %c240] : memref<256x256xf32, #tpu.memory_space<vmem>>, vector<256x16xf32>
    tpu.vector_store %arg4[%c0_36, %c240], %59 {strides = array<i32>} : memref<256x256xf32, #tpu.memory_space<vmem>>, vector<256x16xf32>,
    return
  }
  func.func @transform_0(%arg0: i32) -> (i32, i32) {
    %c0_i32 = arith.constant 0 : i32
    %c0_i32_0 = arith.constant 0 : i32
    %c0_i32_1 = arith.constant 0 : i32
    return %c0_i32, %c0_i32_0 : i32, i32
  }
  func.func @transform_1(%arg0: i32) -> (i32, i32) {
    %c0_i32 = arith.constant 0 : i32
    %c0_i32_0 = arith.constant 0 : i32
    return %arg0, %c0_i32 : i32, i32
  }
  func.func @transform_2(%arg0: i32) -> (i32, i32) {
    %c0_i32 = arith.constant 0 : i32
    %c0_i32_0 = arith.constant 0 : i32
    return %arg0, %c0_i32 : i32, i32
  }
  func.func @transform_3(%arg0: i32) -> (i32, i32) {
    %c0_i32 = arith.constant 0 : i32
    %c0_i32_0 = arith.constant 0 : i32
    return %arg0, %c0_i32 : i32, i32
  }
}

</mosaic_0001>

<llo_original>
// kernel: forward.1
$region0: #{forward.1}
  #allocation0 [shape = 'u32[]', space=smem, size = 0x4, offset = 0x4, fixed_abs, tag = 'smem constant byte address 0x4 - core index']
  #allocation1 [shape = 'u32[144,128]{1,0:T(1,128)}', space=vmem, size = 0x12000, scoped, tag = 'internal scratch']
  #allocation2 [shape = 'f32[32,384]{1,0:T(8,128)}', space=vmem, size = 0xc000, scoped, tag = 'scratch operand']
  %s0 = inlined_call_operand.vmem [shape: f32[3,640], index: 0, kind: input, shape index: {}]
  %s1 = inlined_call_operand.vmem [shape: f32[512,32], index: 1, kind: input, shape index: {}]
  %s2 = inlined_call_operand.vmem [shape: f32[512,1], index: 2, kind: input, shape index: {}]
  %s3 = inlined_call_operand.vmem [shape: f32[512,256], index: 3, kind: output, shape index: {}]
  %s4 = sld [smem:[#allocation0]]
  $region45: #{forward.1} parent=0
    _
  %s6 = ssub.s32 1, %s4
  %s7 = scalar_select 0, %s6, %s4
  loop: start=0, step=1, limit=4
  $region2: #{forward.1} parent=0 // loop_pre_header
    _
  $region3: #{forward.1} parent=0 // loop_header
    %s9 = sphi 0, %s13
    %p10 = scmp.ge.s32.totalorder %s9, 4
    %s17 = sphi 0, %s17
    %s19 = sphi 0, %s17
    %s20 = sphi 0, %s19
    %s34 = sphi 0, %s20
    %s40 = sphi 0, %s42
    %s43 = sphi 0, %s40
    %s44 = sphi 0, %s43
    %s60 = sphi 0, %s44
    %s66 = sphi 0, %s68
    %s69 = sphi 0, %s66
    %s70 = sphi 0, %s69
    %s86 = sphi 0, %s70
    %s92 = sphi 0, %s94
    %s95 = sphi 0, %s92
    %s96 = sphi 0, %s95
    %s112 = sphi 0, %s96
  $region4: #{forward.1} parent=0 // loop_header_branch
    %12 = sbr.rel (%p10) target = $region8
  $region5: #{forward.1} parent=0 // loop_body
    %s14 = ssub.s32 %s9, 1
    %s15 = ssub.s32 %s9, 2
    %s16 = sadd.s32 %s9, 1
    %s18 = sadd.s32 %s17, 1
    %p21 = scmp.eq.s32.totalorder %s9, 1
    %p22 = scmp.ne.s32.totalorder %s17, %s19
    %p23 = scmp.eq.s32.totalorder %s9, 0
    %p24 = por %p22, %p23
    %p25 = scmp.ne.s32.totalorder %s17, %s19
    %p26 = scmp.eq.s32.totalorder %s14, 1
    %p27 = por %p25, %p26
    %p28 = scmp.ne.s32.totalorder %s19, %s20
    %p29 = scmp.eq.s32.totalorder %s14, 0
    %p30 = por %p28, %p29
    %p31 = scmp.ne.s32.totalorder %s19, %s20
    %p32 = scmp.eq.s32.totalorder %s15, 1
    %p33 = por %p31, %p32
    %p35 = scmp.ne.s32.totalorder %s20, %s34
    %p36 = scmp.eq.s32.totalorder %s15, 0
    %p37 = por %p35, %p36
    %s38 = ssub.s32 %s9, %s16
    %p39 = scmp.eq.s32.totalorder %s38, 0
    %s41 = sadd.s32 %s40, 1
    %s42 = scalar_select %p39, %s40, %s41
    %p45 = pneg %p39
    %p46 = scmp.eq.s32.totalorder %s9, 1
    %p47 = por %p45, %p46
    %p48 = scmp.ne.s32.totalorder %s40, %s43
    %p49 = scmp.eq.s32.totalorder %s9, 0
    %p50 = por %p48, %p49
    %p51 = scmp.ne.s32.totalorder %s40, %s43
    %p52 = scmp.eq.s32.totalorder %s14, 1
    %p53 = por %p51, %p52
    %p54 = scmp.ne.s32.totalorder %s43, %s44
    %p55 = scmp.eq.s32.totalorder %s14, 0
    %p56 = por %p54, %p55
    %p57 = scmp.ne.s32.totalorder %s43, %s44
    %p58 = scmp.eq.s32.totalorder %s15, 1
    %p59 = por %p57, %p58
    %p61 = scmp.ne.s32.totalorder %s44, %s60
    %p62 = scmp.eq.s32.totalorder %s15, 0
    %p63 = por %p61, %p62
    %s64 = ssub.s32 %s9, %s16
    %p65 = scmp.eq.s32.totalorder %s64, 0
    %s67 = sadd.s32 %s66, 1
    %s68 = scalar_select %p65, %s66, %s67
    %p71 = pneg %p65
    %p72 = scmp.eq.s32.totalorder %s9, 1
    %p73 = por %p71, %p72
    %p74 = scmp.ne.s32.totalorder %s66, %s69
    %p75 = scmp.eq.s32.totalorder %s9, 0
    %p76 = por %p74, %p75
    %p77 = scmp.ne.s32.totalorder %s66, %s69
    %p78 = scmp.eq.s32.totalorder %s14, 1
    %p79 = por %p77, %p78
    %p80 = scmp.ne.s32.totalorder %s69, %s70
    %p81 = scmp.eq.s32.totalorder %s14, 0
    %p82 = por %p80, %p81
    %p83 = scmp.ne.s32.totalorder %s69, %s70
    %p84 = scmp.eq.s32.totalorder %s15, 1
    %p85 = por %p83, %p84
    %p87 = scmp.ne.s32.totalorder %s70, %s86
    %p88 = scmp.eq.s32.totalorder %s15, 0
    %p89 = por %p87, %p88
    %s90 = ssub.s32 %s9, %s16
    %p91 = scmp.eq.s32.totalorder %s90, 0
    %s93 = sadd.s32 %s92, 1
    %s94 = scalar_select %p91, %s92, %s93
    %p97 = pneg %p91
    %p98 = scmp.eq.s32.totalorder %s9, 1
    %p99 = por %p97, %p98
    %p100 = scmp.ne.s32.totalorder %s92, %s95
    %p101 = scmp.eq.s32.totalorder %s9, 0
    %p102 = por %p100, %p101
    %p103 = scmp.ne.s32.totalorder %s92, %s95
    %p104 = scmp.eq.s32.totalorder %s14, 1
    %p105 = por %p103, %p104
    %p106 = scmp.ne.s32.totalorder %s95, %s96
    %p107 = scmp.eq.s32.totalorder %s14, 0
    %p108 = por %p106, %p107
    %p109 = scmp.ne.s32.totalorder %s95, %s96
    %p110 = scmp.eq.s32.totalorder %s15, 1
    %p111 = por %p109, %p110
    %p113 = scmp.ne.s32.totalorder %s96, %s112
    %p114 = scmp.eq.s32.totalorder %s15, 0
    %p115 = por %p113, %p114
    %p116 = scmp.le.s32.totalorder 1, %s9
    %p117 = scmp.lt.s32.totalorder %s9, 3
    %p118 = pnand %p116, %p117
    %p119 = pneg %p118
    // Predicated region
    $region9: #{forward.1} parent=5 // pred_check
      _
    $region10: #{forward.1} parent=5 // pred_check_branch
      %121 = sbr.rel (%p118) target = $region12
    $region11: #{forward.1} parent=5 // pred_region
      %s122 = ssub.s32 %s9, 1
      // Predicated region
      $region13: #{forward.1} parent=11 // pred_check
        %p123 = pneg %p30
      $region14: #{forward.1} parent=11 // pred_check_branch
        %125 = sbr.rel (%p123) target = $region16
      $region15: #{forward.1} parent=11 // pred_region
        _
      $region16: #{forward.1} parent=11 // pred_fallthru
        _
    $region12: #{forward.1} parent=5 // pred_fallthru
      _
    %p126 = scmp.lt.s32.totalorder %s9, 2
    // Predicated region
    $region17: #{forward.1} parent=5 // pred_check
      %p127 = pneg %p126
    $region18: #{forward.1} parent=5 // pred_check_branch
      %129 = sbr.rel (%p127) target = $region20
    $region19: #{forward.1} parent=5 // pred_region
      // Predicated region
      $region21: #{forward.1} parent=19 // pred_check
        %p130 = pneg %p50
      $region22: #{forward.1} parent=19 // pred_check_branch
        %132 = sbr.rel (%p130) target = $region24
      $region23: #{forward.1} parent=19 // pred_region
        %s133 = smul.u32 32, %s9
        %p134 = scmp.lt.s32.totalorder %s133, 63
        %s135 = scalar_select %p134, %s133, 63
        %s136 = smul.addr %s135, 8
        %s137 = scalar_lea.vmem %s1, %s136
        %s138 = smul.u32 32, %s9
      $region24: #{forward.1} parent=19 // pred_fallthru
        _
      // Predicated region
      $region25: #{forward.1} parent=19 // pred_check
        %p139 = pneg %p76
      $region26: #{forward.1} parent=19 // pred_check_branch
        %141 = sbr.rel (%p139) target = $region28
      $region27: #{forward.1} parent=19 // pred_region
        %s142 = smul.u32 32, %s9
        %p143 = scmp.lt.s32.totalorder %s142, 63
        %s144 = scalar_select %p143, %s142, 63
        %s145 = smul.addr %s144, 8
        %s146 = scalar_lea.vmem %s2, %s145
        %s147 = smul.u32 32, %s9
      $region28: #{forward.1} parent=19 // pred_fallthru
        _
    $region20: #{forward.1} parent=5 // pred_fallthru
      _
    %p148 = scmp.le.s32.totalorder 1, %s9
    %p149 = scmp.lt.s32.totalorder %s9, 3
    %p150 = pnand %p148, %p149
    %p151 = pneg %p150
    // Predicated region
    $region29: #{forward.1} parent=5 // pred_check
      _
    $region30: #{forward.1} parent=5 // pred_check_branch
      %153 = sbr.rel (%p150) target = $region32
    $region31: #{forward.1} parent=5 // pred_region
      %s154 = ssub.s32 %s9, 1
      %p155 = pneg %p30
      %p156 = pneg %p27
      %s157 = smul.u32 32, %s14
      %p158 = scmp.lt.s32.totalorder %s157, 63
      %s159 = scalar_select %p158, %s157, 63
      %s160 = smul.addr %s159, 8
      %s161 = scalar_lea.vmem %s1, %s160
      %p162 = pneg %p56
      %p163 = pneg %p53
      %s164 = smul.u32 32, %s14
      %p165 = scmp.lt.s32.totalorder %s164, 63
      %s166 = scalar_select %p165, %s164, 63
      %s167 = smul.addr %s166, 8
      %s168 = scalar_lea.vmem %s2, %s167
      %p169 = pneg %p82
      %p170 = pneg %p79
      %p171 = pneg %p108
      %p172 = pneg %p105
      %s173 = smul.u32 32, %s14
      %p174 = scmp.lt.s32.totalorder %s173, 63
      %s175 = scalar_select %p174, %s173, 63
      %s176 = smul.addr %s175, 2
      %s177 = smul.addr %s176, 8
      %s178 = scalar_lea.vmem %s3, %s177
      %s179 = smul.u32 32, %s14
      %p180 = scmp.lt.s32.totalorder %s179, 63
      %s181 = scalar_select %p180, %s179, 63
      %s182 = smul.addr %s181, 8
      %s183 = scalar_lea.vmem %s1, %s182
      %s184 = smul.u32 32, %s14
      %s185 = smul.u32 32, %s14
      %p186 = scmp.lt.s32.totalorder %s185, 63
      %s187 = scalar_select %p186, %s185, 63
      %s188 = smul.addr %s187, 8
      %s189 = scalar_lea.vmem %s2, %s188
      %s190 = smul.u32 32, %s14
      %s191 = smul.u32 32, %s14
      %p192 = scmp.lt.s32.totalorder %s191, 63
      %s193 = scalar_select %p192, %s191, 63
      %s194 = smul.addr %s193, 2
      %s195 = smul.addr %s194, 8
      %s196 = scalar_lea.vmem %s3, %s195
      %s197 = smul.u32 32, %s14
      %v198 = vld [vmem:[%s0] sm:$0x77]
      %v199 = vld [vmem:[%s0 + $0x8] sm:$0x77]
      %v200 = vld [vmem:[%s0 + $0x10] sm:$0x7]
      %v201 = vmax.f32 %v198, 0.0
      %v202 = vmax.f32 %v199, 0.0
      %v203 = vmax.f32 %v200, 0.0
      %v206 = vcombine.high %v201, %v201
      %208 = vst [vmem:[#allocation2] sm:$0x7] %v201
      %209 = vst [vmem:[#allocation2 + $0x8] sm:$0x7] %v206
      %210 = vst [vmem:[#allocation2 + $0x10] sm:$0x7] %v202
      %v211 = vcombine.high %v202, %v202
      %v212 = vrot.slane %v201, 5
      %v213 = vrot.slane %v206, 5
      %v214 = vrot.slane %v202, 5
      %v215 = vrot.slane %v211, 5
      %216 = vrot.lane.b32.xlu0 %v212, 125
      %v217 = vpop.permute.xlu0 %216
      %218 = vrot.lane.b32.xlu0 %v213, 125
      %v219 = vpop.permute.xlu0 %218
      %220 = vrot.lane.b32.xlu0 %v214, 125
      %v221 = vpop.permute.xlu0 %220
      %222 = vrot.lane.b32.xlu0 %v215, 125
      %v223 = vpop.permute.xlu0 %222
      %vm224 = vcmask 1022976
      %v225 = vsel %vm224, %v217, %v219
      %v226 = vsel %vm224, %v219, %v221
      %v227 = vsel %vm224, %v221, %v223
      %231 = vst [vmem:[#allocation2] sm:$0x38] %v225
      %232 = vst [vmem:[#allocation2 + $0x8] sm:$0x38] %v226
      %233 = vst [vmem:[#allocation2 + $0x10] sm:$0x38] %v227
      %v234 = vrot.slane %v201, 2
      %v235 = vrot.slane %v206, 2
      %v236 = vrot.slane %v202, 2
      %v237 = vrot.slane %v211, 2
      %238 = vrot.lane.b32.xlu0 %v234, 122
      %v239 = vpop.permute.xlu0 %238
      %240 = vrot.lane.b32.xlu0 %v235, 122
      %v241 = vpop.permute.xlu0 %240
      %242 = vrot.lane.b32.xlu0 %v236, 122
      %v243 = vpop.permute.xlu0 %242
      %244 = vrot.lane.b32.xlu0 %v237, 122
      %v245 = vpop.permute.xlu0 %244
      %vm246 = vcmask 998400
      %v247 = vsel %vm246, %v239, %v241
      %v248 = vsel %vm246, %v241, %v243
      %v249 = vsel %vm246, %v243, %v245
      %253 = vst [vmem:[#allocation2] sm:$0xc0] %v247
      %254 = vst [vmem:[#allocation2 + $0x8] sm:$0xc0] %v248
      %255 = vst [vmem:[#allocation2 + $0x10] sm:$0xc0] %v249
      %256 = vst [vmem:[#allocation2 + $0x18] sm:$0x1] %v247
      %257 = vst [vmem:[#allocation2 + $0x20] sm:$0x1] %v248
      %258 = vst [vmem:[#allocation2 + $0x28] sm:$0x1] %v249
      %v259 = vrot.slane %v201, 7
      %v260 = vrot.slane %v206, 7
      %v261 = vrot.slane %v202, 7
      %v262 = vrot.slane %v211, 7
      %263 = vrot.lane.b32.xlu0 %v259, 62
      %v264 = vpop.permute.xlu0 %263
      %265 = vrot.lane.b32.xlu0 %v260, 62
      %v266 = vpop.permute.xlu0 %265
      %267 = vrot.lane.b32.xlu0 %v261, 62
      %v268 = vpop.permute.xlu0 %267
      %269 = vrot.lane.b32.xlu0 %v262, 62
      %v270 = vpop.permute.xlu0 %269
      %vm271 = vcmask 506880
      %v272 = vsel %vm271, %v264, %v266
      %v273 = vsel %vm271, %v266, %v268
      %v274 = vsel %vm271, %v268, %v270
      %278 = vst [vmem:[#allocation2 + $0x18] sm:$0xe] %v272
      %279 = vst [vmem:[#allocation2 + $0x20] sm:$0xe] %v273
      %280 = vst [vmem:[#allocation2 + $0x28] sm:$0xe] %v274
      %v281 = vcombine.low %v201, %v201
      %v282 = vcombine.low %v202, %v202
      %283 = vrot.lane.b32.xlu0 %v281, 59
      %v284 = vpop.permute.xlu0 %283
      %285 = vrot.lane.b32.xlu0 %v201, 59
      %v286 = vpop.permute.xlu0 %285
      %287 = vrot.lane.b32.xlu0 %v282, 59
      %v288 = vpop.permute.xlu0 %287
      %289 = vrot.lane.b32.xlu0 %v202, 59
      %v290 = vpop.permute.xlu0 %289
      %vm291 = vcmask 482304
      %v292 = vsel %vm291, %v284, %v286
      %v293 = vsel %vm291, %v286, %v288
      %v294 = vsel %vm291, %v288, %v290
      %298 = vst [vmem:[#allocation2 + $0x18] sm:$0x70] %v292
      %299 = vst [vmem:[#allocation2 + $0x20] sm:$0x70] %v293
      %300 = vst [vmem:[#allocation2 + $0x28] sm:$0x70] %v294
      %v301 = vrot.slane %v201, 1
      %v302 = vrot.slane %v206, 1
      %v303 = vrot.slane %v202, 1
      %v304 = vrot.slane %v211, 1
      %305 = vrot.lane.b32.xlu0 %v301, 56
      %v306 = vpop.permute.xlu0 %305
      %307 = vrot.lane.b32.xlu0 %v302, 56
      %v308 = vpop.permute.xlu0 %307
      %309 = vrot.lane.b32.xlu0 %v303, 56
      %v310 = vpop.permute.xlu0 %309
      %311 = vrot.lane.b32.xlu0 %v304, 56
      %v312 = vpop.permute.xlu0 %311
      %vm313 = vcmask 457728
      %v314 = vsel %vm313, %v306, %v308
      %v315 = vsel %vm313, %v308, %v310
      %v316 = vsel %vm313, %v310, %v312
      %320 = vst [vmem:[#allocation2 + $0x18] sm:$0x80] %v314
      %321 = vst [vmem:[#allocation2 + $0x20] sm:$0x80] %v315
      %322 = vst [vmem:[#allocation2 + $0x28] sm:$0x80] %v316
      %323 = vst [vmem:[#allocation2 + $0x30] sm:$0x3] %v314
      %324 = vst [vmem:[#allocation2 + $0x38] sm:$0x3] %v315
      %325 = vst [vmem:[#allocation2 + $0x40] sm:$0x3] %v316
      %v327 = vrot.slane %v206, 6
      %v328 = vrot.slane %v202, 6
      %v329 = vrot.slane %v211, 6
      %v330 = vrot.slane %v203, 6
      %331 = vrot.lane.b32.xlu0 %v327, 124
      %v332 = vpop.permute.xlu0 %331
      %333 = vrot.lane.b32.xlu0 %v328, 124
      %v334 = vpop.permute.xlu0 %333
      %335 = vrot.lane.b32.xlu0 %v329, 124
      %v336 = vpop.permute.xlu0 %335
      %337 = vrot.lane.b32.xlu0 %v330, 124
      %v338 = vpop.permute.xlu0 %337
      %vm339 = vcmask 1014784
      %v340 = vsel %vm339, %v332, %v334
      %v341 = vsel %vm339, %v334, %v336
      %v342 = vsel %vm339, %v336, %v338
      %346 = vst [vmem:[#allocation2 + $0x30] sm:$0x1c] %v340
      %347 = vst [vmem:[#allocation2 + $0x38] sm:$0x1c] %v341
      %348 = vst [vmem:[#allocation2 + $0x40] sm:$0x1c] %v342
      %v349 = vrot.slane %v206, 3
      %v350 = vrot.slane %v202, 3
      %v351 = vrot.slane %v211, 3
      %v352 = vrot.slane %v203, 3
      %353 = vrot.lane.b32.xlu0 %v349, 121
      %v354 = vpop.permute.xlu0 %353
      %355 = vrot.lane.b32.xlu0 %v350, 121
      %v356 = vpop.permute.xlu0 %355
      %357 = vrot.lane.b32.xlu0 %v351, 121
      %v358 = vpop.permute.xlu0 %357
      %359 = vrot.lane.b32.xlu0 %v352, 121
      %v360 = vpop.permute.xlu0 %359
      %vm361 = vcmask 990208
      %v362 = vsel %vm361, %v354, %v356
      %v363 = vsel %vm361, %v356, %v358
      %v364 = vsel %vm361, %v358, %v360
      %368 = vst [vmem:[#allocation2 + $0x30] sm:$0xe0] %v362
      %369 = vst [vmem:[#allocation2 + $0x38] sm:$0xe0] %v363
      %370 = vst [vmem:[#allocation2 + $0x40] sm:$0xe0] %v364
      %371 = vrot.lane.b32.xlu0 %v206, 118
      %v372 = vpop.permute.xlu0 %371
      %373 = vrot.lane.b32.xlu0 %v202, 118
      %v374 = vpop.permute.xlu0 %373
      %375 = vrot.lane.b32.xlu0 %v211, 118
      %v376 = vpop.permute.xlu0 %375
      %377 = vrot.lane.b32.xlu0 %v203, 118
      %v378 = vpop.permute.xlu0 %377
      %vm379 = vcmask 965632
      %v380 = vsel %vm379, %v372, %v374
      %v381 = vsel %vm379, %v374, %v376
      %v382 = vsel %vm379, %v376, %v378
      %386 = vst [vmem:[#allocation2 + $0x48] sm:$0x7] %v380
      %387 = vst [vmem:[#allocation2 + $0x50] sm:$0x7] %v381
      %388 = vst [vmem:[#allocation2 + $0x58] sm:$0x7] %v382
      %389 = vst [vmem:[#allocation2 + $0x48] sm:$0xf8] 0.0
      %390 = vst [vmem:[#allocation2 + $0x50] sm:$0xf8] 0.0
      %391 = vst [vmem:[#allocation2 + $0x58] sm:$0xf8] 0.0
      %v392 = vld [vmem:[%s183] sm:$0xff]
      %v393 = vld [vmem:[%s183 + $0x8] sm:$0xff]
      %v394 = vld [vmem:[%s183 + $0x10] sm:$0xff]
      %v395 = vld [vmem:[%s183 + $0x18] sm:$0xff]
      %v396 = vld [vmem:[%s183 + $0x20] sm:$0xff]
      %v397 = vld [vmem:[%s183 + $0x28] sm:$0xff]
      %v398 = vld [vmem:[%s183 + $0x30] sm:$0xff]
      %v399 = vld [vmem:[%s183 + $0x38] sm:$0xff]
      %v400 = vld [vmem:[%s183 + $0x40] sm:$0xff]
      %v401 = vld [vmem:[%s183 + $0x48] sm:$0xff]
      %v402 = vld [vmem:[%s183 + $0x50] sm:$0xff]
      %v403 = vld [vmem:[%s183 + $0x58] sm:$0xff]
      %v404 = vld [vmem:[%s183 + $0x60] sm:$0xff]
      %v405 = vld [vmem:[%s183 + $0x68] sm:$0xff]
      %v406 = vld [vmem:[%s183 + $0x70] sm:$0xff]
      %v407 = vld [vmem:[%s183 + $0x78] sm:$0xff]
      %v408 = vld [vmem:[%s183 + $0x80] sm:$0xff]
      %v409 = vld [vmem:[%s183 + $0x88] sm:$0xff]
      %v410 = vld [vmem:[%s183 + $0x90] sm:$0xff]
      %v411 = vld [vmem:[%s183 + $0x98] sm:$0xff]
      %v412 = vld [vmem:[%s183 + $0xa0] sm:$0xff]
      %v413 = vld [vmem:[%s183 + $0xa8] sm:$0xff]
      %v414 = vld [vmem:[%s183 + $0xb0] sm:$0xff]
      %v415 = vld [vmem:[%s183 + $0xb8] sm:$0xff]
      %v416 = vld [vmem:[%s183 + $0xc0] sm:$0xff]
      %v417 = vld [vmem:[%s183 + $0xc8] sm:$0xff]
      %v418 = vld [vmem:[%s183 + $0xd0] sm:$0xff]
      %v419 = vld [vmem:[%s183 + $0xd8] sm:$0xff]
      %v420 = vld [vmem:[%s183 + $0xe0] sm:$0xff]
      %v421 = vld [vmem:[%s183 + $0xe8] sm:$0xff]
      %v422 = vld [vmem:[%s183 + $0xf0] sm:$0xff]
      %v423 = vld [vmem:[%s183 + $0xf8] sm:$0xff]
      %v424 = vld [vmem:[#allocation2] sm:$0xff]
      %v425 = vld [vmem:[#allocation2 + $0x8] sm:$0xff]
      %v426 = vld [vmem:[#allocation2 + $0x10] sm:$0xff]
      %v427 = vld [vmem:[#allocation2 + $0x18] sm:$0xff]
      %v428 = vld [vmem:[#allocation2 + $0x20] sm:$0xff]
      %v429 = vld [vmem:[#allocation2 + $0x28] sm:$0xff]
      %v430 = vld [vmem:[#allocation2 + $0x30] sm:$0xff]
      %v431 = vld [vmem:[#allocation2 + $0x38] sm:$0xff]
      %v432 = vld [vmem:[#allocation2 + $0x40] sm:$0xff]
      %v433 = vld [vmem:[#allocation2 + $0x48] sm:$0xff]
      %v434 = vld [vmem:[#allocation2 + $0x50] sm:$0xff]
      %v435 = vld [vmem:[#allocation2 + $0x58] sm:$0xff]
      %v436 = vld [vmem:[%s189] sm:$0xff]
      %v437 = vld [vmem:[%s189 + $0x8] sm:$0xff]
      %v438 = vld [vmem:[%s189 + $0x10] sm:$0xff]
      %v439 = vld [vmem:[%s189 + $0x18] sm:$0xff]
      %v440 = vld [vmem:[%s189 + $0x20] sm:$0xff]
      %v441 = vld [vmem:[%s189 + $0x28] sm:$0xff]
      %v442 = vld [vmem:[%s189 + $0x30] sm:$0xff]
      %v443 = vld [vmem:[%s189 + $0x38] sm:$0xff]
      %v444 = vld [vmem:[%s189 + $0x40] sm:$0xff]
      %v445 = vld [vmem:[%s189 + $0x48] sm:$0xff]
      %v446 = vld [vmem:[%s189 + $0x50] sm:$0xff]
      %v447 = vld [vmem:[%s189 + $0x58] sm:$0xff]
      %v448 = vld [vmem:[%s189 + $0x60] sm:$0xff]
      %v449 = vld [vmem:[%s189 + $0x68] sm:$0xff]
      %v450 = vld [vmem:[%s189 + $0x70] sm:$0xff]
      %v451 = vld [vmem:[%s189 + $0x78] sm:$0xff]
      %v452 = vld [vmem:[%s189 + $0x80] sm:$0xff]
      %v453 = vld [vmem:[%s189 + $0x88] sm:$0xff]
      %v454 = vld [vmem:[%s189 + $0x90] sm:$0xff]
      %v455 = vld [vmem:[%s189 + $0x98] sm:$0xff]
      %v456 = vld [vmem:[%s189 + $0xa0] sm:$0xff]
      %v457 = vld [vmem:[%s189 + $0xa8] sm:$0xff]
      %v458 = vld [vmem:[%s189 + $0xb0] sm:$0xff]
      %v459 = vld [vmem:[%s189 + $0xb8] sm:$0xff]
      %v460 = vld [vmem:[%s189 + $0xc0] sm:$0xff]
      %v461 = vld [vmem:[%s189 + $0xc8] sm:$0xff]
      %v462 = vld [vmem:[%s189 + $0xd0] sm:$0xff]
      %v463 = vld [vmem:[%s189 + $0xd8] sm:$0xff]
      %v464 = vld [vmem:[%s189 + $0xe0] sm:$0xff]
      %v465 = vld [vmem:[%s189 + $0xe8] sm:$0xff]
      %v466 = vld [vmem:[%s189 + $0xf0] sm:$0xff]
      %v467 = vld [vmem:[%s189 + $0xf8] sm:$0xff]
      %469 = vset.pattern.permute.xlu0 0
      %470 = vperm.xlu0 %469, %v436
      %v471 = vpop.permute.xlu0 %470
      %474 = vset.pattern.permute.xlu0 0
      %475 = vperm.xlu0 %474, %v437
      %v476 = vpop.permute.xlu0 %475
      %479 = vset.pattern.permute.xlu0 0
      %480 = vperm.xlu0 %479, %v438
      %v481 = vpop.permute.xlu0 %480
      %484 = vset.pattern.permute.xlu0 0
      %485 = vperm.xlu0 %484, %v439
      %v486 = vpop.permute.xlu0 %485
      %489 = vset.pattern.permute.xlu0 0
      %490 = vperm.xlu0 %489, %v440
      %v491 = vpop.permute.xlu0 %490
      %494 = vset.pattern.permute.xlu0 0
      %495 = vperm.xlu0 %494, %v441
      %v496 = vpop.permute.xlu0 %495
      %499 = vset.pattern.permute.xlu0 0
      %500 = vperm.xlu0 %499, %v442
      %v501 = vpop.permute.xlu0 %500
      %504 = vset.pattern.permute.xlu0 0
      %505 = vperm.xlu0 %504, %v443
      %v506 = vpop.permute.xlu0 %505
      %509 = vset.pattern.permute.xlu0 0
      %510 = vperm.xlu0 %509, %v444
      %v511 = vpop.permute.xlu0 %510
      %514 = vset.pattern.permute.xlu0 0
      %515 = vperm.xlu0 %514, %v445
      %v516 = vpop.permute.xlu0 %515
      %519 = vset.pattern.permute.xlu0 0
      %520 = vperm.xlu0 %519, %v446
      %v521 = vpop.permute.xlu0 %520
      %524 = vset.pattern.permute.xlu0 0
      %525 = vperm.xlu0 %524, %v447
      %v526 = vpop.permute.xlu0 %525
      %529 = vset.pattern.permute.xlu0 0
      %530 = vperm.xlu0 %529, %v448
      %v531 = vpop.permute.xlu0 %530
      %534 = vset.pattern.permute.xlu0 0
      %535 = vperm.xlu0 %534, %v449
      %v536 = vpop.permute.xlu0 %535
      %539 = vset.pattern.permute.xlu0 0
      %540 = vperm.xlu0 %539, %v450
      %v541 = vpop.permute.xlu0 %540
      %544 = vset.pattern.permute.xlu0 0
      %545 = vperm.xlu0 %544, %v451
      %v546 = vpop.permute.xlu0 %545
      %549 = vset.pattern.permute.xlu0 0
      %550 = vperm.xlu0 %549, %v452
      %v551 = vpop.permute.xlu0 %550
      %554 = vset.pattern.permute.xlu0 0
      %555 = vperm.xlu0 %554, %v453
      %v556 = vpop.permute.xlu0 %555
      %559 = vset.pattern.permute.xlu0 0
      %560 = vperm.xlu0 %559, %v454
      %v561 = vpop.permute.xlu0 %560
      %564 = vset.pattern.permute.xlu0 0
      %565 = vperm.xlu0 %564, %v455
      %v566 = vpop.permute.xlu0 %565
      %569 = vset.pattern.permute.xlu0 0
      %570 = vperm.xlu0 %569, %v456
      %v571 = vpop.permute.xlu0 %570
      %574 = vset.pattern.permute.xlu0 0
      %575 = vperm.xlu0 %574, %v457
      %v576 = vpop.permute.xlu0 %575
      %579 = vset.pattern.permute.xlu0 0
      %580 = vperm.xlu0 %579, %v458
      %v581 = vpop.permute.xlu0 %580
      %584 = vset.pattern.permute.xlu0 0
      %585 = vperm.xlu0 %584, %v459
      %v586 = vpop.permute.xlu0 %585
      %589 = vset.pattern.permute.xlu0 0
      %590 = vperm.xlu0 %589, %v460
      %v591 = vpop.permute.xlu0 %590
      %594 = vset.pattern.permute.xlu0 0
      %595 = vperm.xlu0 %594, %v461
      %v596 = vpop.permute.xlu0 %595
      %599 = vset.pattern.permute.xlu0 0
      %600 = vperm.xlu0 %599, %v462
      %v601 = vpop.permute.xlu0 %600
      %604 = vset.pattern.permute.xlu0 0
      %605 = vperm.xlu0 %604, %v463
      %v606 = vpop.permute.xlu0 %605
      %609 = vset.pattern.permute.xlu0 0
      %610 = vperm.xlu0 %609, %v464
      %v611 = vpop.permute.xlu0 %610
      %614 = vset.pattern.permute.xlu0 0
      %615 = vperm.xlu0 %614, %v465
      %v616 = vpop.permute.xlu0 %615
      %619 = vset.pattern.permute.xlu0 0
      %620 = vperm.xlu0 %619, %v466
      %v621 = vpop.permute.xlu0 %620
      %624 = vset.pattern.permute.xlu0 0
      %625 = vperm.xlu0 %624, %v467
      %v626 = vpop.permute.xlu0 %625
      %vm628 = vcmask 261120
      %v630 = vsel %vm628, %v392, 0
      %v633 = vsel %vm628, %v393, 0
      %v636 = vsel %vm628, %v394, 0
      %v639 = vsel %vm628, %v395, 0
      %v642 = vsel %vm628, %v396, 0
      %v645 = vsel %vm628, %v397, 0
      %v648 = vsel %vm628, %v398, 0
      %v651 = vsel %vm628, %v399, 0
      %v654 = vsel %vm628, %v400, 0
      %v657 = vsel %vm628, %v401, 0
      %v660 = vsel %vm628, %v402, 0
      %v663 = vsel %vm628, %v403, 0
      %v666 = vsel %vm628, %v404, 0
      %v669 = vsel %vm628, %v405, 0
      %v672 = vsel %vm628, %v406, 0
      %v675 = vsel %vm628, %v407, 0
      %v678 = vsel %vm628, %v408, 0
      %v681 = vsel %vm628, %v409, 0
      %v684 = vsel %vm628, %v410, 0
      %v687 = vsel %vm628, %v411, 0
      %v690 = vsel %vm628, %v412, 0
      %v693 = vsel %vm628, %v413, 0
      %v696 = vsel %vm628, %v414, 0
      %v699 = vsel %vm628, %v415, 0
      %v702 = vsel %vm628, %v416, 0
      %v705 = vsel %vm628, %v417, 0
      %v708 = vsel %vm628, %v418, 0
      %v711 = vsel %vm628, %v419, 0
      %v714 = vsel %vm628, %v420, 0
      %v717 = vsel %vm628, %v421, 0
      %v720 = vsel %vm628, %v422, 0
      %v723 = vsel %vm628, %v423, 0
      %725 = vmatprep.subr.mxu0 %v425
      %726 = vmatpush1.msra.mxu0 %v424
      %727 = vmatprep.subr.mxu0 %v428
      %728 = vmatpush1.msra.mxu0 %v427
      %729 = vmatprep.subr.mxu0 %v431
      %730 = vmatpush1.msra.mxu0 %v430
      %731 = vmatprep.subr.mxu0 %v434
      %732 = vmatpush1.msra.mxu0 %v433
      %733 = vmatprep.subr.mxu0 0.0
      %734 = vmatpush1.msra.mxu0 0.0
      %735 = vmatprep.subr.mxu0 0.0
      %736 = vmatpush1.msra.mxu0 0.0
      %737 = vmatprep.subr.mxu0 0.0
      %738 = vmatpush1.msra.mxu0 0.0
      %739 = vmatprep.subr.mxu0 0.0
      %740 = vmatpush1.msra.mxu0 0.0
      %741 = vmatprep.subr.mxu0 0.0
      %742 = vmatpush1.msra.mxu0 0.0
      %743 = vmatprep.subr.mxu0 0.0
      %744 = vmatpush1.msra.mxu0 0.0
      %745 = vmatprep.subr.mxu0 0.0
      %746 = vmatpush1.msra.mxu0 0.0
      %747 = vmatprep.subr.mxu0 0.0
      %748 = vmatpush1.msra.mxu0 0.0
      %749 = vmatprep.subr.mxu0 0.0
      %750 = vmatpush1.msra.mxu0 0.0
      %751 = vmatprep.subr.mxu0 0.0
      %752 = vmatpush1.msra.mxu0 0.0
      %753 = vmatprep.subr.mxu0 0.0
      %754 = vmatpush1.msra.mxu0 0.0
      %755 = vmatprep.subr.mxu0 0.0
      %756 = vmatpush1.msra.mxu0 0.0
      %757 = vmatprep.subr.mxu0 0.0
      %758 = vmatpush1.msra.mxu0 0.0
      %759 = vmatprep.subr.mxu0 0.0
      %760 = vmatpush1.msra.mxu0 0.0
      %761 = vmatprep.subr.mxu0 0.0
      %762 = vmatpush1.msra.mxu0 0.0
      %763 = vmatprep.subr.mxu0 0.0
      %764 = vmatpush1.msra.mxu0 0.0
      %765 = vmatprep.subr.mxu0 0.0
      %766 = vmatpush1.msra.mxu0 0.0
      %767 = vmatprep.subr.mxu0 0.0
      %768 = vmatpush1.msra.mxu0 0.0
      %769 = vmatprep.subr.mxu0 0.0
      %770 = vmatpush1.msra.mxu0 0.0
      %771 = vmatprep.subr.mxu0 0.0
      %772 = vmatpush1.msra.mxu0 0.0
      %773 = vmatprep.subr.mxu0 0.0
      %774 = vmatpush1.msra.mxu0 0.0
      %775 = vmatprep.subr.mxu0 0.0
      %776 = vmatpush1.msra.mxu0 0.0
      %777 = vmatprep.subr.mxu0 0.0
      %778 = vmatpush1.msra.mxu0 0.0
      %779 = vmatprep.subr.mxu0 0.0
      %780 = vmatpush1.msra.mxu0 0.0
      %781 = vmatprep.subr.mxu0 0.0
      %782 = vmatpush1.msra.mxu0 0.0
      %783 = vmatprep.subr.mxu0 0.0
      %784 = vmatpush1.msra.mxu0 0.0
      %785 = vmatprep.subr.mxu0 0.0
      %786 = vmatpush1.msra.mxu0 0.0
      %787 = vmatprep.subr.mxu0 0.0
      %788 = vmatpush1.msra.mxu0 0.0
      %789 = vmatprep.mubr.f32.mxu0 0.0
      %790 = vmatmul.mubr.f32.gmra.mrb[0].mxu0 %v630
      %v791 = vpop.f32.mrb[0].mxu0
      %v792 = vadd.f32 %v471, %v791
      %v793 = vpop.f32.mrb[0].mxu0
      %v794 = vadd.f32 %v471, %v793
      %795 = vmatprep.mubr.f32.mxu0 0.0
      %796 = vmatmul.mubr.f32.gmra.mrb[0].mxu0 %v633
      %v797 = vpop.f32.mrb[0].mxu0
      %v798 = vadd.f32 %v476, %v797
      %v799 = vpop.f32.mrb[0].mxu0
      %v800 = vadd.f32 %v476, %v799
      %801 = vmatprep.mubr.f32.mxu0 0.0
      %802 = vmatmul.mubr.f32.gmra.mrb[0].mxu0 %v636
      %v803 = vpop.f32.mrb[0].mxu0
      %v804 = vadd.f32 %v481, %v803
      %v805 = vpop.f32.mrb[0].mxu0
      %v806 = vadd.f32 %v481, %v805
      %807 = vmatprep.mubr.f32.mxu0 0.0
      %808 = vmatmul.mubr.f32.gmra.mrb[0].mxu0 %v639
      %v809 = vpop.f32.mrb[0].mxu0
      %v810 = vadd.f32 %v486, %v809
      %v811 = vpop.f32.mrb[0].mxu0
      %v812 = vadd.f32 %v486, %v811
      %813 = vmatprep.mubr.f32.mxu0 0.0
      %814 = vmatmul.mubr.f32.gmra.mrb[0].mxu0 %v642
      %v815 = vpop.f32.mrb[0].mxu0
      %v816 = vadd.f32 %v491, %v815
      %v817 = vpop.f32.mrb[0].mxu0
      %v818 = vadd.f32 %v491, %v817
      %819 = vmatprep.mubr.f32.mxu0 0.0
      %820 = vmatmul.mubr.f32.gmra.mrb[0].mxu0 %v645
      %v821 = vpop.f32.mrb[0].mxu0
      %v822 = vadd.f32 %v496, %v821
      %v823 = vpop.f32.mrb[0].mxu0
      %v824 = vadd.f32 %v496, %v823
      %825 = vmatprep.mubr.f32.mxu0 0.0
      %826 = vmatmul.mubr.f32.gmra.mrb[0].mxu0 %v648
      %v827 = vpop.f32.mrb[0].mxu0
      %v828 = vadd.f32 %v501, %v827
      %v829 = vpop.f32.mrb[0].mxu0
      %v830 = vadd.f32 %v501, %v829
      %831 = vmatprep.mubr.f32.mxu0 0.0
      %832 = vmatmul.mubr.f32.gmra.mrb[0].mxu0 %v651
      %v833 = vpop.f32.mrb[0].mxu0
      %v834 = vadd.f32 %v506, %v833
      %v835 = vpop.f32.mrb[0].mxu0
      %v836 = vadd.f32 %v506, %v835
      %837 = vmatprep.mubr.f32.mxu0 0.0
      %838 = vmatmul.mubr.f32.gmra.mrb[0].mxu0 %v654
      %v839 = vpop.f32.mrb[0].mxu0
      %v840 = vadd.f32 %v511, %v839
      %v841 = vpop.f32.mrb[0].mxu0
      %v842 = vadd.f32 %v511, %v841
      %843 = vmatprep.mubr.f32.mxu0 0.0
      %844 = vmatmul.mubr.f32.gmra.mrb[0].mxu0 %v657
      %v845 = vpop.f32.mrb[0].mxu0
      %v846 = vadd.f32 %v516, %v845
      %v847 = vpop.f32.mrb[0].mxu0
      %v848 = vadd.f32 %v516, %v847
      %849 = vmatprep.mubr.f32.mxu0 0.0
      %850 = vmatmul.mubr.f32.gmra.mrb[0].mxu0 %v660
      %v851 = vpop.f32.mrb[0].mxu0
      %v852 = vadd.f32 %v521, %v851
      %v853 = vpop.f32.mrb[0].mxu0
      %v854 = vadd.f32 %v521, %v853
      %855 = vmatprep.mubr.f32.mxu0 0.0
      %856 = vmatmul.mubr.f32.gmra.mrb[0].mxu0 %v663
      %v857 = vpop.f32.mrb[0].mxu0
      %v858 = vadd.f32 %v526, %v857
      %v859 = vpop.f32.mrb[0].mxu0
      %v860 = vadd.f32 %v526, %v859
      %861 = vmatprep.mubr.f32.mxu0 0.0
      %862 = vmatmul.mubr.f32.gmra.mrb[0].mxu0 %v666
      %v863 = vpop.f32.mrb[0].mxu0
      %v864 = vadd.f32 %v531, %v863
      %v865 = vpop.f32.mrb[0].mxu0
      %v866 = vadd.f32 %v531, %v865
      %867 = vmatprep.mubr.f32.mxu0 0.0
      %868 = vmatmul.mubr.f32.gmra.mrb[0].mxu0 %v669
      %v869 = vpop.f32.mrb[0].mxu0
      %v870 = vadd.f32 %v536, %v869
      %v871 = vpop.f32.mrb[0].mxu0
      %v872 = vadd.f32 %v536, %v871
      %873 = vmatprep.mubr.f32.mxu0 0.0
      %874 = vmatmul.mubr.f32.gmra.mrb[0].mxu0 %v672
      %v875 = vpop.f32.mrb[0].mxu0
      %v876 = vadd.f32 %v541, %v875
      %v877 = vpop.f32.mrb[0].mxu0
      %v878 = vadd.f32 %v541, %v877
      %879 = vmatprep.mubr.f32.mxu0 0.0
      %880 = vmatmul.mubr.f32.gmra.mrb[0].mxu0 %v675
      %v881 = vpop.f32.mrb[0].mxu0
      %v882 = vadd.f32 %v546, %v881
      %v883 = vpop.f32.mrb[0].mxu0
      %v884 = vadd.f32 %v546, %v883
      %885 = vmatprep.mubr.f32.mxu0 0.0
      %886 = vmatmul.mubr.f32.gmra.mrb[0].mxu0 %v678
      %v887 = vpop.f32.mrb[0].mxu0
      %v888 = vadd.f32 %v551, %v887
      %v889 = vpop.f32.mrb[0].mxu0
      %v890 = vadd.f32 %v551, %v889
      %891 = vmatprep.mubr.f32.mxu0 0.0
      %892 = vmatmul.mubr.f32.gmra.mrb[0].mxu0 %v681
      %v893 = vpop.f32.mrb[0].mxu0
      %v894 = vadd.f32 %v556, %v893
      %v895 = vpop.f32.mrb[0].mxu0
      %v896 = vadd.f32 %v556, %v895
      %897 = vmatprep.mubr.f32.mxu0 0.0
      %898 = vmatmul.mubr.f32.gmra.mrb[0].mxu0 %v684
      %v899 = vpop.f32.mrb[0].mxu0
      %v900 = vadd.f32 %v561, %v899
      %v901 = vpop.f32.mrb[0].mxu0
      %v902 = vadd.f32 %v561, %v901
      %903 = vmatprep.mubr.f32.mxu0 0.0
      %904 = vmatmul.mubr.f32.gmra.mrb[0].mxu0 %v687
      %v905 = vpop.f32.mrb[0].mxu0
      %v906 = vadd.f32 %v566, %v905
      %v907 = vpop.f32.mrb[0].mxu0
      %v908 = vadd.f32 %v566, %v907
      %909 = vmatprep.mubr.f32.mxu0 0.0
      %910 = vmatmul.mubr.f32.gmra.mrb[0].mxu0 %v690
      %v911 = vpop.f32.mrb[0].mxu0
      %v912 = vadd.f32 %v571, %v911
      %v913 = vpop.f32.mrb[0].mxu0
      %v914 = vadd.f32 %v571, %v913
      %915 = vmatprep.mubr.f32.mxu0 0.0
      %916 = vmatmul.mubr.f32.gmra.mrb[0].mxu0 %v693
      %v917 = vpop.f32.mrb[0].mxu0
      %v918 = vadd.f32 %v576, %v917
      %v919 = vpop.f32.mrb[0].mxu0
      %v920 = vadd.f32 %v576, %v919
      %921 = vmatprep.mubr.f32.mxu0 0.0
      %922 = vmatmul.mubr.f32.gmra.mrb[0].mxu0 %v696
      %v923 = vpop.f32.mrb[0].mxu0
      %v924 = vadd.f32 %v581, %v923
      %v925 = vpop.f32.mrb[0].mxu0
      %v926 = vadd.f32 %v581, %v925
      %927 = vmatprep.mubr.f32.mxu0 0.0
      %928 = vmatmul.mubr.f32.gmra.mrb[0].mxu0 %v699
      %v929 = vpop.f32.mrb[0].mxu0
      %v930 = vadd.f32 %v586, %v929
      %v931 = vpop.f32.mrb[0].mxu0
      %v932 = vadd.f32 %v586, %v931
      %933 = vmatprep.mubr.f32.mxu0 0.0
      %934 = vmatmul.mubr.f32.gmra.mrb[0].mxu0 %v702
      %v935 = vpop.f32.mrb[0].mxu0
      %v936 = vadd.f32 %v591, %v935
      %v937 = vpop.f32.mrb[0].mxu0
      %v938 = vadd.f32 %v591, %v937
      %939 = vmatprep.mubr.f32.mxu0 0.0
      %940 = vmatmul.mubr.f32.gmra.mrb[0].mxu0 %v705
      %v941 = vpop.f32.mrb[0].mxu0
      %v942 = vadd.f32 %v596, %v941
      %v943 = vpop.f32.mrb[0].mxu0
      %v944 = vadd.f32 %v596, %v943
      %945 = vmatprep.mubr.f32.mxu0 0.0
      %946 = vmatmul.mubr.f32.gmra.mrb[0].mxu0 %v708
      %v947 = vpop.f32.mrb[0].mxu0
      %v948 = vadd.f32 %v601, %v947
      %v949 = vpop.f32.mrb[0].mxu0
      %v950 = vadd.f32 %v601, %v949
      %951 = vmatprep.mubr.f32.mxu0 0.0
      %952 = vmatmul.mubr.f32.gmra.mrb[0].mxu0 %v711
      %v953 = vpop.f32.mrb[0].mxu0
      %v954 = vadd.f32 %v606, %v953
      %v955 = vpop.f32.mrb[0].mxu0
      %v956 = vadd.f32 %v606, %v955
      %957 = vmatprep.mubr.f32.mxu0 0.0
      %958 = vmatmul.mubr.f32.gmra.mrb[0].mxu0 %v714
      %v959 = vpop.f32.mrb[0].mxu0
      %v960 = vadd.f32 %v611, %v959
      %v961 = vpop.f32.mrb[0].mxu0
      %v962 = vadd.f32 %v611, %v961
      %963 = vmatprep.mubr.f32.mxu0 0.0
      %964 = vmatmul.mubr.f32.gmra.mrb[0].mxu0 %v717
      %v965 = vpop.f32.mrb[0].mxu0
      %v966 = vadd.f32 %v616, %v965
      %v967 = vpop.f32.mrb[0].mxu0
      %v968 = vadd.f32 %v616, %v967
      %969 = vmatprep.mubr.f32.mxu0 0.0
      %970 = vmatmul.mubr.f32.gmra.mrb[0].mxu0 %v720
      %v971 = vpop.f32.mrb[0].mxu0
      %v972 = vadd.f32 %v621, %v971
      %v973 = vpop.f32.mrb[0].mxu0
      %v974 = vadd.f32 %v621, %v973
      %975 = vmatprep.mubr.f32.mxu0 0.0
      %976 = vmatmul.mubr.f32.gmra.mrb[0].mxu0 %v723
      %v977 = vpop.f32.mrb[0].mxu0
      %v978 = vadd.f32 %v626, %v977
      %v979 = vpop.f32.mrb[0].mxu0
      %v980 = vadd.f32 %v626, %v979
      %981 = vdwg.mxu0
      %982 = vmatprep.subr.mxu0 0.0
      %983 = vmatpush1.msra.mxu0 %v426
      %984 = vmatprep.subr.mxu0 0.0
      %985 = vmatpush1.msra.mxu0 %v429
      %986 = vmatprep.subr.mxu0 0.0
      %987 = vmatpush1.msra.mxu0 %v432
      %988 = vmatprep.subr.mxu0 0.0
      %989 = vmatpush1.msra.mxu0 %v435
      %990 = vmatprep.subr.mxu0 0.0
      %991 = vmatpush1.msra.mxu0 0.0
      %992 = vmatprep.subr.mxu0 0.0
      %993 = vmatpush1.msra.mxu0 0.0
      %994 = vmatprep.subr.mxu0 0.0
      %995 = vmatpush1.msra.mxu0 0.0
      %996 = vmatprep.subr.mxu0 0.0
      %997 = vmatpush1.msra.mxu0 0.0
      %998 = vmatprep.subr.mxu0 0.0
      %999 = vmatpush1.msra.mxu0 0.0
      %1000 = vmatprep.subr.mxu0 0.0
      %1001 = vmatpush1.msra.mxu0 0.0
      %1002 = vmatprep.subr.mxu0 0.0
      %1003 = vmatpush1.msra.mxu0 0.0
      %1004 = vmatprep.subr.mxu0 0.0
      %1005 = vmatpush1.msra.mxu0 0.0
      %1006 = vmatprep.subr.mxu0 0.0
      %1007 = vmatpush1.msra.mxu0 0.0
      %1008 = vmatprep.subr.mxu0 0.0
      %1009 = vmatpush1.msra.mxu0 0.0
      %1010 = vmatprep.subr.mxu0 0.0
      %1011 = vmatpush1.msra.mxu0 0.0
      %1012 = vmatprep.subr.mxu0 0.0
      %1013 = vmatpush1.msra.mxu0 0.0
      %1014 = vmatprep.subr.mxu0 0.0
      %1015 = vmatpush1.msra.mxu0 0.0
      %1016 = vmatprep.subr.mxu0 0.0
      %1017 = vmatpush1.msra.mxu0 0.0
      %1018 = vmatprep.subr.mxu0 0.0
      %1019 = vmatpush1.msra.mxu0 0.0
      %1020 = vmatprep.subr.mxu0 0.0
      %1021 = vmatpush1.msra.mxu0 0.0
      %1022 = vmatprep.subr.mxu0 0.0
      %1023 = vmatpush1.msra.mxu0 0.0
      %1024 = vmatprep.subr.mxu0 0.0
      %1025 = vmatpush1.msra.mxu0 0.0
      %1026 = vmatprep.subr.mxu0 0.0
      %1027 = vmatpush1.msra.mxu0 0.0
      %1028 = vmatprep.subr.mxu0 0.0
      %1029 = vmatpush1.msra.mxu0 0.0
      %1030 = vmatprep.subr.mxu0 0.0
      %1031 = vmatpush1.msra.mxu0 0.0
      %1032 = vmatprep.subr.mxu0 0.0
      %1033 = vmatpush1.msra.mxu0 0.0
      %1034 = vmatprep.subr.mxu0 0.0
      %1035 = vmatpush1.msra.mxu0 0.0
      %1036 = vmatprep.subr.mxu0 0.0
      %1037 = vmatpush1.msra.mxu0 0.0
      %1038 = vmatprep.subr.mxu0 0.0
      %1039 = vmatpush1.msra.mxu0 0.0
      %1040 = vmatprep.subr.mxu0 0.0
      %1041 = vmatpush1.msra.mxu0 0.0
      %1042 = vmatprep.subr.mxu0 0.0
      %1043 = vmatpush1.msra.mxu0 0.0
      %1044 = vmatprep.subr.mxu0 0.0
      %1045 = vmatpush1.msra.mxu0 0.0
      %1046 = vmatprep.mubr.f32.mxu0 0.0
      %1047 = vmatmul.mubr.f32.gmra.mrb[0].mxu0 %v630
      %v1048 = vpop.f32.mrb[0].mxu0
      %v1049 = vadd.f32 %v471, %v1048
      %v1050 = vpop.f32.mrb[0].mxu0
      %1051 = vmatprep.mubr.f32.mxu0 0.0
      %1052 = vmatmul.mubr.f32.gmra.mrb[0].mxu0 %v633
      %v1053 = vpop.f32.mrb[0].mxu0
      %v1054 = vadd.f32 %v476, %v1053
      %v1055 = vpop.f32.mrb[0].mxu0
      %1056 = vmatprep.mubr.f32.mxu0 0.0
      %1057 = vmatmul.mubr.f32.gmra.mrb[0].mxu0 %v636
      %v1058 = vpop.f32.mrb[0].mxu0
      %v1059 = vadd.f32 %v481, %v1058
      %v1060 = vpop.f32.mrb[0].mxu0
      %1061 = vmatprep.mubr.f32.mxu0 0.0
      %1062 = vmatmul.mubr.f32.gmra.mrb[0].mxu0 %v639
      %v1063 = vpop.f32.mrb[0].mxu0
      %v1064 = vadd.f32 %v486, %v1063
      %v1065 = vpop.f32.mrb[0].mxu0
      %1066 = vmatprep.mubr.f32.mxu0 0.0
      %1067 = vmatmul.mubr.f32.gmra.mrb[0].mxu0 %v642
      %v1068 = vpop.f32.mrb[0].mxu0
      %v1069 = vadd.f32 %v491, %v1068
      %v1070 = vpop.f32.mrb[0].mxu0
      %1071 = vmatprep.mubr.f32.mxu0 0.0
      %1072 = vmatmul.mubr.f32.gmra.mrb[0].mxu0 %v645
      %v1073 = vpop.f32.mrb[0].mxu0
      %v1074 = vadd.f32 %v496, %v1073
      %v1075 = vpop.f32.mrb[0].mxu0
      %1076 = vmatprep.mubr.f32.mxu0 0.0
      %1077 = vmatmul.mubr.f32.gmra.mrb[0].mxu0 %v648
      %v1078 = vpop.f32.mrb[0].mxu0
      %v1079 = vadd.f32 %v501, %v1078
      %v1080 = vpop.f32.mrb[0].mxu0
      %1081 = vmatprep.mubr.f32.mxu0 0.0
      %1082 = vmatmul.mubr.f32.gmra.mrb[0].mxu0 %v651
      %v1083 = vpop.f32.mrb[0].mxu0
      %v1084 = vadd.f32 %v506, %v1083
      %v1085 = vpop.f32.mrb[0].mxu0
      %1086 = vmatprep.mubr.f32.mxu0 0.0
      %1087 = vmatmul.mubr.f32.gmra.mrb[0].mxu0 %v654
      %v1088 = vpop.f32.mrb[0].mxu0
      %v1089 = vadd.f32 %v511, %v1088
      %v1090 = vpop.f32.mrb[0].mxu0
      %1091 = vmatprep.mubr.f32.mxu0 0.0
      %1092 = vmatmul.mubr.f32.gmra.mrb[0].mxu0 %v657
      %v1093 = vpop.f32.mrb[0].mxu0
      %v1094 = vadd.f32 %v516, %v1093
      %v1095 = vpop.f32.mrb[0].mxu0
      %1096 = vmatprep.mubr.f32.mxu0 0.0
      %1097 = vmatmul.mubr.f32.gmra.mrb[0].mxu0 %v660
      %v1098 = vpop.f32.mrb[0].mxu0
      %v1099 = vadd.f32 %v521, %v1098
      %v1100 = vpop.f32.mrb[0].mxu0
      %1101 = vmatprep.mubr.f32.mxu0 0.0
      %1102 = vmatmul.mubr.f32.gmra.mrb[0].mxu0 %v663
      %v1103 = vpop.f32.mrb[0].mxu0
      %v1104 = vadd.f32 %v526, %v1103
      %v1105 = vpop.f32.mrb[0].mxu0
      %1106 = vmatprep.mubr.f32.mxu0 0.0
      %1107 = vmatmul.mubr.f32.gmra.mrb[0].mxu0 %v666
      %v1108 = vpop.f32.mrb[0].mxu0
      %v1109 = vadd.f32 %v531, %v1108
      %v1110 = vpop.f32.mrb[0].mxu0
      %1111 = vmatprep.mubr.f32.mxu0 0.0
      %1112 = vmatmul.mubr.f32.gmra.mrb[0].mxu0 %v669
      %v1113 = vpop.f32.mrb[0].mxu0
      %v1114 = vadd.f32 %v536, %v1113
      %v1115 = vpop.f32.mrb[0].mxu0
      %1116 = vmatprep.mubr.f32.mxu0 0.0
      %1117 = vmatmul.mubr.f32.gmra.mrb[0].mxu0 %v672
      %v1118 = vpop.f32.mrb[0].mxu0
      %v1119 = vadd.f32 %v541, %v1118
      %v1120 = vpop.f32.mrb[0].mxu0
      %1121 = vmatprep.mubr.f32.mxu0 0.0
      %1122 = vmatmul.mubr.f32.gmra.mrb[0].mxu0 %v675
      %v1123 = vpop.f32.mrb[0].mxu0
      %v1124 = vadd.f32 %v546, %v1123
      %v1125 = vpop.f32.mrb[0].mxu0
      %1126 = vmatprep.mubr.f32.mxu0 0.0
      %1127 = vmatmul.mubr.f32.gmra.mrb[0].mxu0 %v678
      %v1128 = vpop.f32.mrb[0].mxu0
      %v1129 = vadd.f32 %v551, %v1128
      %v1130 = vpop.f32.mrb[0].mxu0
      %1131 = vmatprep.mubr.f32.mxu0 0.0
      %1132 = vmatmul.mubr.f32.gmra.mrb[0].mxu0 %v681
      %v1133 = vpop.f32.mrb[0].mxu0
      %v1134 = vadd.f32 %v556, %v1133
      %v1135 = vpop.f32.mrb[0].mxu0
      %1136 = vmatprep.mubr.f32.mxu0 0.0
      %1137 = vmatmul.mubr.f32.gmra.mrb[0].mxu0 %v684
      %v1138 = vpop.f32.mrb[0].mxu0
      %v1139 = vadd.f32 %v561, %v1138
      %v1140 = vpop.f32.mrb[0].mxu0
      %1141 = vmatprep.mubr.f32.mxu0 0.0
      %1142 = vmatmul.mubr.f32.gmra.mrb[0].mxu0 %v687
      %v1143 = vpop.f32.mrb[0].mxu0
      %v1144 = vadd.f32 %v566, %v1143
      %v1145 = vpop.f32.mrb[0].mxu0
      %1146 = vmatprep.mubr.f32.mxu0 0.0
      %1147 = vmatmul.mubr.f32.gmra.mrb[0].mxu0 %v690
      %v1148 = vpop.f32.mrb[0].mxu0
      %v1149 = vadd.f32 %v571, %v1148
      %v1150 = vpop.f32.mrb[0].mxu0
      %1151 = vmatprep.mubr.f32.mxu0 0.0
      %1152 = vmatmul.mubr.f32.gmra.mrb[0].mxu0 %v693
      %v1153 = vpop.f32.mrb[0].mxu0
      %v1154 = vadd.f32 %v576, %v1153
      %v1155 = vpop.f32.mrb[0].mxu0
      %1156 = vmatprep.mubr.f32.mxu0 0.0
      %1157 = vmatmul.mubr.f32.gmra.mrb[0].mxu0 %v696
      %v1158 = vpop.f32.mrb[0].mxu0
      %v1159 = vadd.f32 %v581, %v1158
      %v1160 = vpop.f32.mrb[0].mxu0
      %1161 = vmatprep.mubr.f32.mxu0 0.0
      %1162 = vmatmul.mubr.f32.gmra.mrb[0].mxu0 %v699
      %v1163 = vpop.f32.mrb[0].mxu0
      %v1164 = vadd.f32 %v586, %v1163
      %v1165 = vpop.f32.mrb[0].mxu0
      %1166 = vmatprep.mubr.f32.mxu0 0.0
      %1167 = vmatmul.mubr.f32.gmra.mrb[0].mxu0 %v702
      %v1168 = vpop.f32.mrb[0].mxu0
      %v1169 = vadd.f32 %v591, %v1168
      %v1170 = vpop.f32.mrb[0].mxu0
      %1171 = vmatprep.mubr.f32.mxu0 0.0
      %1172 = vmatmul.mubr.f32.gmra.mrb[0].mxu0 %v705
      %v1173 = vpop.f32.mrb[0].mxu0
      %v1174 = vadd.f32 %v596, %v1173
      %v1175 = vpop.f32.mrb[0].mxu0
      %1176 = vmatprep.mubr.f32.mxu0 0.0
      %1177 = vmatmul.mubr.f32.gmra.mrb[0].mxu0 %v708
      %v1178 = vpop.f32.mrb[0].mxu0
      %v1179 = vadd.f32 %v601, %v1178
      %v1180 = vpop.f32.mrb[0].mxu0
      %1181 = vmatprep.mubr.f32.mxu0 0.0
      %1182 = vmatmul.mubr.f32.gmra.mrb[0].mxu0 %v711
      %v1183 = vpop.f32.mrb[0].mxu0
      %v1184 = vadd.f32 %v606, %v1183
      %v1185 = vpop.f32.mrb[0].mxu0
      %1186 = vmatprep.mubr.f32.mxu0 0.0
      %1187 = vmatmul.mubr.f32.gmra.mrb[0].mxu0 %v714
      %v1188 = vpop.f32.mrb[0].mxu0
      %v1189 = vadd.f32 %v611, %v1188
      %v1190 = vpop.f32.mrb[0].mxu0
      %1191 = vmatprep.mubr.f32.mxu0 0.0
      %1192 = vmatmul.mubr.f32.gmra.mrb[0].mxu0 %v717
      %v1193 = vpop.f32.mrb[0].mxu0
      %v1194 = vadd.f32 %v616, %v1193
      %v1195 = vpop.f32.mrb[0].mxu0
      %1196 = vmatprep.mubr.f32.mxu0 0.0
      %1197 = vmatmul.mubr.f32.gmra.mrb[0].mxu0 %v720
      %v1198 = vpop.f32.mrb[0].mxu0
      %v1199 = vadd.f32 %v621, %v1198
      %v1200 = vpop.f32.mrb[0].mxu0
      %1201 = vmatprep.mubr.f32.mxu0 0.0
      %1202 = vmatmul.mubr.f32.gmra.mrb[0].mxu0 %v723
      %v1203 = vpop.f32.mrb[0].mxu0
      %v1204 = vadd.f32 %v626, %v1203
      %v1205 = vpop.f32.mrb[0].mxu0
      %1206 = vdwg.mxu0
      %vm1207 = vcmask 130048
      %1208 = vst.msk [vmem:[%s196] sm:$0xff] %vm1207, %v792
      %1209 = vst.msk [vmem:[%s196 + $0x10] sm:$0xff] %vm1207, %v798
      %1210 = vst.msk [vmem:[%s196 + $0x20] sm:$0xff] %vm1207, %v804
      %1211 = vst.msk [vmem:[%s196 + $0x30] sm:$0xff] %vm1207, %v810
      %1212 = vst.msk [vmem:[%s196 + $0x40] sm:$0xff] %vm1207, %v816
      %1213 = vst.msk [vmem:[%s196 + $0x50] sm:$0xff] %vm1207, %v822
      %1214 = vst.msk [vmem:[%s196 + $0x60] sm:$0xff] %vm1207, %v828
      %1215 = vst.msk [vmem:[%s196 + $0x70] sm:$0xff] %vm1207, %v834
      %1216 = vst.msk [vmem:[%s196 + $0x80] sm:$0xff] %vm1207, %v840
      %1217 = vst.msk [vmem:[%s196 + $0x90] sm:$0xff] %vm1207, %v846
      %1218 = vst.msk [vmem:[%s196 + $0xa0] sm:$0xff] %vm1207, %v852
      %1219 = vst.msk [vmem:[%s196 + $0xb0] sm:$0xff] %vm1207, %v858
      %1220 = vst.msk [vmem:[%s196 + $0xc0] sm:$0xff] %vm1207, %v864
      %1221 = vst.msk [vmem:[%s196 + $0xd0] sm:$0xff] %vm1207, %v870
      %1222 = vst.msk [vmem:[%s196 + $0xe0] sm:$0xff] %vm1207, %v876
      %1223 = vst.msk [vmem:[%s196 + $0xf0] sm:$0xff] %vm1207, %v882
      %1224 = vst.msk [vmem:[%s196 + $0x100] sm:$0xff] %vm1207, %v888
      %1225 = vst.msk [vmem:[%s196 + $0x110] sm:$0xff] %vm1207, %v894
      %1226 = vst.msk [vmem:[%s196 + $0x120] sm:$0xff] %vm1207, %v900
      %1227 = vst.msk [vmem:[%s196 + $0x130] sm:$0xff] %vm1207, %v906
      %1228 = vst.msk [vmem:[%s196 + $0x140] sm:$0xff] %vm1207, %v912
      %1229 = vst.msk [vmem:[%s196 + $0x150] sm:$0xff] %vm1207, %v918
      %1230 = vst.msk [vmem:[%s196 + $0x160] sm:$0xff] %vm1207, %v924
      %1231 = vst.msk [vmem:[%s196 + $0x170] sm:$0xff] %vm1207, %v930
      %1232 = vst.msk [vmem:[%s196 + $0x180] sm:$0xff] %vm1207, %v936
      %1233 = vst.msk [vmem:[%s196 + $0x190] sm:$0xff] %vm1207, %v942
      %1234 = vst.msk [vmem:[%s196 + $0x1a0] sm:$0xff] %vm1207, %v948
      %1235 = vst.msk [vmem:[%s196 + $0x1b0] sm:$0xff] %vm1207, %v954
      %1236 = vst.msk [vmem:[%s196 + $0x1c0] sm:$0xff] %vm1207, %v960
      %1237 = vst.msk [vmem:[%s196 + $0x1d0] sm:$0xff] %vm1207, %v966
      %1238 = vst.msk [vmem:[%s196 + $0x1e0] sm:$0xff] %vm1207, %v972
      %1239 = vst.msk [vmem:[%s196 + $0x1f0] sm:$0xff] %vm1207, %v978
      %1272 = vrot.lane.b32.xlu0 %v792, 122
      %v1273 = vpop.permute.xlu0 %1272
      %1274 = vrot.lane.b32.xlu0 %v798, 122
      %v1275 = vpop.permute.xlu0 %1274
      %1276 = vrot.lane.b32.xlu0 %v804, 122
      %v1277 = vpop.permute.xlu0 %1276
      %1278 = vrot.lane.b32.xlu0 %v810, 122
      %v1279 = vpop.permute.xlu0 %1278
      %1280 = vrot.lane.b32.xlu0 %v816, 122
      %v1281 = vpop.permute.xlu0 %1280
      %1282 = vrot.lane.b32.xlu0 %v822, 122
      %v1283 = vpop.permute.xlu0 %1282
      %1284 = vrot.lane.b32.xlu0 %v828, 122
      %v1285 = vpop.permute.xlu0 %1284
      %1286 = vrot.lane.b32.xlu0 %v834, 122
      %v1287 = vpop.permute.xlu0 %1286
      %1288 = vrot.lane.b32.xlu0 %v840, 122
      %v1289 = vpop.permute.xlu0 %1288
      %1290 = vrot.lane.b32.xlu0 %v846, 122
      %v1291 = vpop.permute.xlu0 %1290
      %1292 = vrot.lane.b32.xlu0 %v852, 122
      %v1293 = vpop.permute.xlu0 %1292
      %1294 = vrot.lane.b32.xlu0 %v858, 122
      %v1295 = vpop.permute.xlu0 %1294
      %1296 = vrot.lane.b32.xlu0 %v864, 122
      %v1297 = vpop.permute.xlu0 %1296
      %1298 = vrot.lane.b32.xlu0 %v870, 122
      %v1299 = vpop.permute.xlu0 %1298
      %1300 = vrot.lane.b32.xlu0 %v876, 122
      %v1301 = vpop.permute.xlu0 %1300
      %1302 = vrot.lane.b32.xlu0 %v882, 122
      %v1303 = vpop.permute.xlu0 %1302
      %1304 = vrot.lane.b32.xlu0 %v888, 122
      %v1305 = vpop.permute.xlu0 %1304
      %1306 = vrot.lane.b32.xlu0 %v894, 122
      %v1307 = vpop.permute.xlu0 %1306
      %1308 = vrot.lane.b32.xlu0 %v900, 122
      %v1309 = vpop.permute.xlu0 %1308
      %1310 = vrot.lane.b32.xlu0 %v906, 122
      %v1311 = vpop.permute.xlu0 %1310
      %1312 = vrot.lane.b32.xlu0 %v912, 122
      %v1313 = vpop.permute.xlu0 %1312
      %1314 = vrot.lane.b32.xlu0 %v918, 122
      %v1315 = vpop.permute.xlu0 %1314
      %1316 = vrot.lane.b32.xlu0 %v924, 122
      %v1317 = vpop.permute.xlu0 %1316
      %1318 = vrot.lane.b32.xlu0 %v930, 122
      %v1319 = vpop.permute.xlu0 %1318
      %1320 = vrot.lane.b32.xlu0 %v936, 122
      %v1321 = vpop.permute.xlu0 %1320
      %1322 = vrot.lane.b32.xlu0 %v942, 122
      %v1323 = vpop.permute.xlu0 %1322
      %1324 = vrot.lane.b32.xlu0 %v948, 122
      %v1325 = vpop.permute.xlu0 %1324
      %1326 = vrot.lane.b32.xlu0 %v954, 122
      %v1327 = vpop.permute.xlu0 %1326
      %1328 = vrot.lane.b32.xlu0 %v960, 122
      %v1329 = vpop.permute.xlu0 %1328
      %1330 = vrot.lane.b32.xlu0 %v966, 122
      %v1331 = vpop.permute.xlu0 %1330
      %1332 = vrot.lane.b32.xlu0 %v972, 122
      %v1333 = vpop.permute.xlu0 %1332
      %1334 = vrot.lane.b32.xlu0 %v978, 122
      %v1335 = vpop.permute.xlu0 %1334
      %vm1368 = vcmask 261248
      %1369 = vst.msk [vmem:[%s196] sm:$0xff] %vm1368, %v1273
      %1370 = vst.msk [vmem:[%s196 + $0x10] sm:$0xff] %vm1368, %v1275
      %1371 = vst.msk [vmem:[%s196 + $0x20] sm:$0xff] %vm1368, %v1277
      %1372 = vst.msk [vmem:[%s196 + $0x30] sm:$0xff] %vm1368, %v1279
      %1373 = vst.msk [vmem:[%s196 + $0x40] sm:$0xff] %vm1368, %v1281
      %1374 = vst.msk [vmem:[%s196 + $0x50] sm:$0xff] %vm1368, %v1283
      %1375 = vst.msk [vmem:[%s196 + $0x60] sm:$0xff] %vm1368, %v1285
      %1376 = vst.msk [vmem:[%s196 + $0x70] sm:$0xff] %vm1368, %v1287
      %1377 = vst.msk [vmem:[%s196 + $0x80] sm:$0xff] %vm1368, %v1289
      %1378 = vst.msk [vmem:[%s196 + $0x90] sm:$0xff] %vm1368, %v1291
      %1379 = vst.msk [vmem:[%s196 + $0xa0] sm:$0xff] %vm1368, %v1293
      %1380 = vst.msk [vmem:[%s196 + $0xb0] sm:$0xff] %vm1368, %v1295
      %1381 = vst.msk [vmem:[%s196 + $0xc0] sm:$0xff] %vm1368, %v1297
      %1382 = vst.msk [vmem:[%s196 + $0xd0] sm:$0xff] %vm1368, %v1299
      %1383 = vst.msk [vmem:[%s196 + $0xe0] sm:$0xff] %vm1368, %v1301
      %1384 = vst.msk [vmem:[%s196 + $0xf0] sm:$0xff] %vm1368, %v1303
      %1385 = vst.msk [vmem:[%s196 + $0x100] sm:$0xff] %vm1368, %v1305
      %1386 = vst.msk [vmem:[%s196 + $0x110] sm:$0xff] %vm1368, %v1307
      %1387 = vst.msk [vmem:[%s196 + $0x120] sm:$0xff] %vm1368, %v1309
      %1388 = vst.msk [vmem:[%s196 + $0x130] sm:$0xff] %vm1368, %v1311
      %1389 = vst.msk [vmem:[%s196 + $0x140] sm:$0xff] %vm1368, %v1313
      %1390 = vst.msk [vmem:[%s196 + $0x150] sm:$0xff] %vm1368, %v1315
      %1391 = vst.msk [vmem:[%s196 + $0x160] sm:$0xff] %vm1368, %v1317
      %1392 = vst.msk [vmem:[%s196 + $0x170] sm:$0xff] %vm1368, %v1319
      %1393 = vst.msk [vmem:[%s196 + $0x180] sm:$0xff] %vm1368, %v1321
      %1394 = vst.msk [vmem:[%s196 + $0x190] sm:$0xff] %vm1368, %v1323
      %1395 = vst.msk [vmem:[%s196 + $0x1a0] sm:$0xff] %vm1368, %v1325
      %1396 = vst.msk [vmem:[%s196 + $0x1b0] sm:$0xff] %vm1368, %v1327
      %1397 = vst.msk [vmem:[%s196 + $0x1c0] sm:$0xff] %vm1368, %v1329
      %1398 = vst.msk [vmem:[%s196 + $0x1d0] sm:$0xff] %vm1368, %v1331
      %1399 = vst.msk [vmem:[%s196 + $0x1e0] sm:$0xff] %vm1368, %v1333
      %1400 = vst.msk [vmem:[%s196 + $0x1f0] sm:$0xff] %vm1368, %v1335
      %1401 = vrot.lane.b32.xlu0 %v792, 116
      %v1402 = vpop.permute.xlu0 %1401
      %1403 = vrot.lane.b32.xlu0 %v798, 116
      %v1404 = vpop.permute.xlu0 %1403
      %1405 = vrot.lane.b32.xlu0 %v804, 116
      %v1406 = vpop.permute.xlu0 %1405
      %1407 = vrot.lane.b32.xlu0 %v810, 116
      %v1408 = vpop.permute.xlu0 %1407
      %1409 = vrot.lane.b32.xlu0 %v816, 116
      %v1410 = vpop.permute.xlu0 %1409
      %1411 = vrot.lane.b32.xlu0 %v822, 116
      %v1412 = vpop.permute.xlu0 %1411
      %1413 = vrot.lane.b32.xlu0 %v828, 116
      %v1414 = vpop.permute.xlu0 %1413
      %1415 = vrot.lane.b32.xlu0 %v834, 116
      %v1416 = vpop.permute.xlu0 %1415
      %1417 = vrot.lane.b32.xlu0 %v840, 116
      %v1418 = vpop.permute.xlu0 %1417
      %1419 = vrot.lane.b32.xlu0 %v846, 116
      %v1420 = vpop.permute.xlu0 %1419
      %1421 = vrot.lane.b32.xlu0 %v852, 116
      %v1422 = vpop.permute.xlu0 %1421
      %1423 = vrot.lane.b32.xlu0 %v858, 116
      %v1424 = vpop.permute.xlu0 %1423
      %1425 = vrot.lane.b32.xlu0 %v864, 116
      %v1426 = vpop.permute.xlu0 %1425
      %1427 = vrot.lane.b32.xlu0 %v870, 116
      %v1428 = vpop.permute.xlu0 %1427
      %1429 = vrot.lane.b32.xlu0 %v876, 116
      %v1430 = vpop.permute.xlu0 %1429
      %1431 = vrot.lane.b32.xlu0 %v882, 116
      %v1432 = vpop.permute.xlu0 %1431
      %1433 = vrot.lane.b32.xlu0 %v888, 116
      %v1434 = vpop.permute.xlu0 %1433
      %1435 = vrot.lane.b32.xlu0 %v894, 116
      %v1436 = vpop.permute.xlu0 %1435
      %1437 = vrot.lane.b32.xlu0 %v900, 116
      %v1438 = vpop.permute.xlu0 %1437
      %1439 = vrot.lane.b32.xlu0 %v906, 116
      %v1440 = vpop.permute.xlu0 %1439
      %1441 = vrot.lane.b32.xlu0 %v912, 116
      %v1442 = vpop.permute.xlu0 %1441
      %1443 = vrot.lane.b32.xlu0 %v918, 116
      %v1444 = vpop.permute.xlu0 %1443
      %1445 = vrot.lane.b32.xlu0 %v924, 116
      %v1446 = vpop.permute.xlu0 %1445
      %1447 = vrot.lane.b32.xlu0 %v930, 116
      %v1448 = vpop.permute.xlu0 %1447
      %1449 = vrot.lane.b32.xlu0 %v936, 116
      %v1450 = vpop.permute.xlu0 %1449
      %1451 = vrot.lane.b32.xlu0 %v942, 116
      %v1452 = vpop.permute.xlu0 %1451
      %1453 = vrot.lane.b32.xlu0 %v948, 116
      %v1454 = vpop.permute.xlu0 %1453
      %1455 = vrot.lane.b32.xlu0 %v954, 116
      %v1456 = vpop.permute.xlu0 %1455
      %1457 = vrot.lane.b32.xlu0 %v960, 116
      %v1458 = vpop.permute.xlu0 %1457
      %1459 = vrot.lane.b32.xlu0 %v966, 116
      %v1460 = vpop.permute.xlu0 %1459
      %1461 = vrot.lane.b32.xlu0 %v972, 116
      %v1462 = vpop.permute.xlu0 %1461
      %1463 = vrot.lane.b32.xlu0 %v978, 116
      %v1464 = vpop.permute.xlu0 %1463
      %vm1497 = vcmask 392448
      %1498 = vst.msk [vmem:[%s196] sm:$0xff] %vm1497, %v1402
      %1499 = vst.msk [vmem:[%s196 + $0x10] sm:$0xff] %vm1497, %v1404
      %1500 = vst.msk [vmem:[%s196 + $0x20] sm:$0xff] %vm1497, %v1406
      %1501 = vst.msk [vmem:[%s196 + $0x30] sm:$0xff] %vm1497, %v1408
      %1502 = vst.msk [vmem:[%s196 + $0x40] sm:$0xff] %vm1497, %v1410
      %1503 = vst.msk [vmem:[%s196 + $0x50] sm:$0xff] %vm1497, %v1412
      %1504 = vst.msk [vmem:[%s196 + $0x60] sm:$0xff] %vm1497, %v1414
      %1505 = vst.msk [vmem:[%s196 + $0x70] sm:$0xff] %vm1497, %v1416
      %1506 = vst.msk [vmem:[%s196 + $0x80] sm:$0xff] %vm1497, %v1418
      %1507 = vst.msk [vmem:[%s196 + $0x90] sm:$0xff] %vm1497, %v1420
      %1508 = vst.msk [vmem:[%s196 + $0xa0] sm:$0xff] %vm1497, %v1422
      %1509 = vst.msk [vmem:[%s196 + $0xb0] sm:$0xff] %vm1497, %v1424
      %1510 = vst.msk [vmem:[%s196 + $0xc0] sm:$0xff] %vm1497, %v1426
      %1511 = vst.msk [vmem:[%s196 + $0xd0] sm:$0xff] %vm1497, %v1428
      %1512 = vst.msk [vmem:[%s196 + $0xe0] sm:$0xff] %vm1497, %v1430
      %1513 = vst.msk [vmem:[%s196 + $0xf0] sm:$0xff] %vm1497, %v1432
      %1514 = vst.msk [vmem:[%s196 + $0x100] sm:$0xff] %vm1497, %v1434
      %1515 = vst.msk [vmem:[%s196 + $0x110] sm:$0xff] %vm1497, %v1436
      %1516 = vst.msk [vmem:[%s196 + $0x120] sm:$0xff] %vm1497, %v1438
      %1517 = vst.msk [vmem:[%s196 + $0x130] sm:$0xff] %vm1497, %v1440
      %1518 = vst.msk [vmem:[%s196 + $0x140] sm:$0xff] %vm1497, %v1442
      %1519 = vst.msk [vmem:[%s196 + $0x150] sm:$0xff] %vm1497, %v1444
      %1520 = vst.msk [vmem:[%s196 + $0x160] sm:$0xff] %vm1497, %v1446
      %1521 = vst.msk [vmem:[%s196 + $0x170] sm:$0xff] %vm1497, %v1448
      %1522 = vst.msk [vmem:[%s196 + $0x180] sm:$0xff] %vm1497, %v1450
      %1523 = vst.msk [vmem:[%s196 + $0x190] sm:$0xff] %vm1497, %v1452
      %1524 = vst.msk [vmem:[%s196 + $0x1a0] sm:$0xff] %vm1497, %v1454
      %1525 = vst.msk [vmem:[%s196 + $0x1b0] sm:$0xff] %vm1497, %v1456
      %1526 = vst.msk [vmem:[%s196 + $0x1c0] sm:$0xff] %vm1497, %v1458
      %1527 = vst.msk [vmem:[%s196 + $0x1d0] sm:$0xff] %vm1497, %v1460
      %1528 = vst.msk [vmem:[%s196 + $0x1e0] sm:$0xff] %vm1497, %v1462
      %1529 = vst.msk [vmem:[%s196 + $0x1f0] sm:$0xff] %vm1497, %v1464
      %1530 = vrot.lane.b32.xlu0 %v792, 110
      %v1531 = vpop.permute.xlu0 %1530
      %1532 = vrot.lane.b32.xlu0 %v798, 110
      %v1533 = vpop.permute.xlu0 %1532
      %1534 = vrot.lane.b32.xlu0 %v804, 110
      %v1535 = vpop.permute.xlu0 %1534
      %1536 = vrot.lane.b32.xlu0 %v810, 110
      %v1537 = vpop.permute.xlu0 %1536
      %1538 = vrot.lane.b32.xlu0 %v816, 110
      %v1539 = vpop.permute.xlu0 %1538
      %1540 = vrot.lane.b32.xlu0 %v822, 110
      %v1541 = vpop.permute.xlu0 %1540
      %1542 = vrot.lane.b32.xlu0 %v828, 110
      %v1543 = vpop.permute.xlu0 %1542
      %1544 = vrot.lane.b32.xlu0 %v834, 110
      %v1545 = vpop.permute.xlu0 %1544
      %1546 = vrot.lane.b32.xlu0 %v840, 110
      %v1547 = vpop.permute.xlu0 %1546
      %1548 = vrot.lane.b32.xlu0 %v846, 110
      %v1549 = vpop.permute.xlu0 %1548
      %1550 = vrot.lane.b32.xlu0 %v852, 110
      %v1551 = vpop.permute.xlu0 %1550
      %1552 = vrot.lane.b32.xlu0 %v858, 110
      %v1553 = vpop.permute.xlu0 %1552
      %1554 = vrot.lane.b32.xlu0 %v864, 110
      %v1555 = vpop.permute.xlu0 %1554
      %1556 = vrot.lane.b32.xlu0 %v870, 110
      %v1557 = vpop.permute.xlu0 %1556
      %1558 = vrot.lane.b32.xlu0 %v876, 110
      %v1559 = vpop.permute.xlu0 %1558
      %1560 = vrot.lane.b32.xlu0 %v882, 110
      %v1561 = vpop.permute.xlu0 %1560
      %1562 = vrot.lane.b32.xlu0 %v888, 110
      %v1563 = vpop.permute.xlu0 %1562
      %1564 = vrot.lane.b32.xlu0 %v894, 110
      %v1565 = vpop.permute.xlu0 %1564
      %1566 = vrot.lane.b32.xlu0 %v900, 110
      %v1567 = vpop.permute.xlu0 %1566
      %1568 = vrot.lane.b32.xlu0 %v906, 110
      %v1569 = vpop.permute.xlu0 %1568
      %1570 = vrot.lane.b32.xlu0 %v912, 110
      %v1571 = vpop.permute.xlu0 %1570
      %1572 = vrot.lane.b32.xlu0 %v918, 110
      %v1573 = vpop.permute.xlu0 %1572
      %1574 = vrot.lane.b32.xlu0 %v924, 110
      %v1575 = vpop.permute.xlu0 %1574
      %1576 = vrot.lane.b32.xlu0 %v930, 110
      %v1577 = vpop.permute.xlu0 %1576
      %1578 = vrot.lane.b32.xlu0 %v936, 110
      %v1579 = vpop.permute.xlu0 %1578
      %1580 = vrot.lane.b32.xlu0 %v942, 110
      %v1581 = vpop.permute.xlu0 %1580
      %1582 = vrot.lane.b32.xlu0 %v948, 110
      %v1583 = vpop.permute.xlu0 %1582
      %1584 = vrot.lane.b32.xlu0 %v954, 110
      %v1585 = vpop.permute.xlu0 %1584
      %1586 = vrot.lane.b32.xlu0 %v960, 110
      %v1587 = vpop.permute.xlu0 %1586
      %1588 = vrot.lane.b32.xlu0 %v966, 110
      %v1589 = vpop.permute.xlu0 %1588
      %1590 = vrot.lane.b32.xlu0 %v972, 110
      %v1591 = vpop.permute.xlu0 %1590
      %1592 = vrot.lane.b32.xlu0 %v978, 110
      %v1593 = vpop.permute.xlu0 %1592
      %vm1626 = vcmask 523648
      %1627 = vst.msk [vmem:[%s196] sm:$0xff] %vm1626, %v1531
      %1628 = vst.msk [vmem:[%s196 + $0x10] sm:$0xff] %vm1626, %v1533
      %1629 = vst.msk [vmem:[%s196 + $0x20] sm:$0xff] %vm1626, %v1535
      %1630 = vst.msk [vmem:[%s196 + $0x30] sm:$0xff] %vm1626, %v1537
      %1631 = vst.msk [vmem:[%s196 + $0x40] sm:$0xff] %vm1626, %v1539
      %1632 = vst.msk [vmem:[%s196 + $0x50] sm:$0xff] %vm1626, %v1541
      %1633 = vst.msk [vmem:[%s196 + $0x60] sm:$0xff] %vm1626, %v1543
      %1634 = vst.msk [vmem:[%s196 + $0x70] sm:$0xff] %vm1626, %v1545
      %1635 = vst.msk [vmem:[%s196 + $0x80] sm:$0xff] %vm1626, %v1547
      %1636 = vst.msk [vmem:[%s196 + $0x90] sm:$0xff] %vm1626, %v1549
      %1637 = vst.msk [vmem:[%s196 + $0xa0] sm:$0xff] %vm1626, %v1551
      %1638 = vst.msk [vmem:[%s196 + $0xb0] sm:$0xff] %vm1626, %v1553
      %1639 = vst.msk [vmem:[%s196 + $0xc0] sm:$0xff] %vm1626, %v1555
      %1640 = vst.msk [vmem:[%s196 + $0xd0] sm:$0xff] %vm1626, %v1557
      %1641 = vst.msk [vmem:[%s196 + $0xe0] sm:$0xff] %vm1626, %v1559
      %1642 = vst.msk [vmem:[%s196 + $0xf0] sm:$0xff] %vm1626, %v1561
      %1643 = vst.msk [vmem:[%s196 + $0x100] sm:$0xff] %vm1626, %v1563
      %1644 = vst.msk [vmem:[%s196 + $0x110] sm:$0xff] %vm1626, %v1565
      %1645 = vst.msk [vmem:[%s196 + $0x120] sm:$0xff] %vm1626, %v1567
      %1646 = vst.msk [vmem:[%s196 + $0x130] sm:$0xff] %vm1626, %v1569
      %1647 = vst.msk [vmem:[%s196 + $0x140] sm:$0xff] %vm1626, %v1571
      %1648 = vst.msk [vmem:[%s196 + $0x150] sm:$0xff] %vm1626, %v1573
      %1649 = vst.msk [vmem:[%s196 + $0x160] sm:$0xff] %vm1626, %v1575
      %1650 = vst.msk [vmem:[%s196 + $0x170] sm:$0xff] %vm1626, %v1577
      %1651 = vst.msk [vmem:[%s196 + $0x180] sm:$0xff] %vm1626, %v1579
      %1652 = vst.msk [vmem:[%s196 + $0x190] sm:$0xff] %vm1626, %v1581
      %1653 = vst.msk [vmem:[%s196 + $0x1a0] sm:$0xff] %vm1626, %v1583
      %1654 = vst.msk [vmem:[%s196 + $0x1b0] sm:$0xff] %vm1626, %v1585
      %1655 = vst.msk [vmem:[%s196 + $0x1c0] sm:$0xff] %vm1626, %v1587
      %1656 = vst.msk [vmem:[%s196 + $0x1d0] sm:$0xff] %vm1626, %v1589
      %1657 = vst.msk [vmem:[%s196 + $0x1e0] sm:$0xff] %vm1626, %v1591
      %1658 = vst.msk [vmem:[%s196 + $0x1f0] sm:$0xff] %vm1626, %v1593
      %1659 = vrot.lane.b32.xlu0 %v792, 104
      %v1660 = vpop.permute.xlu0 %1659
      %1661 = vrot.lane.b32.xlu0 %v798, 104
      %v1662 = vpop.permute.xlu0 %1661
      %1663 = vrot.lane.b32.xlu0 %v804, 104
      %v1664 = vpop.permute.xlu0 %1663
      %1665 = vrot.lane.b32.xlu0 %v810, 104
      %v1666 = vpop.permute.xlu0 %1665
      %1667 = vrot.lane.b32.xlu0 %v816, 104
      %v1668 = vpop.permute.xlu0 %1667
      %1669 = vrot.lane.b32.xlu0 %v822, 104
      %v1670 = vpop.permute.xlu0 %1669
      %1671 = vrot.lane.b32.xlu0 %v828, 104
      %v1672 = vpop.permute.xlu0 %1671
      %1673 = vrot.lane.b32.xlu0 %v834, 104
      %v1674 = vpop.permute.xlu0 %1673
      %1675 = vrot.lane.b32.xlu0 %v840, 104
      %v1676 = vpop.permute.xlu0 %1675
      %1677 = vrot.lane.b32.xlu0 %v846, 104
      %v1678 = vpop.permute.xlu0 %1677
      %1679 = vrot.lane.b32.xlu0 %v852, 104
      %v1680 = vpop.permute.xlu0 %1679
      %1681 = vrot.lane.b32.xlu0 %v858, 104
      %v1682 = vpop.permute.xlu0 %1681
      %1683 = vrot.lane.b32.xlu0 %v864, 104
      %v1684 = vpop.permute.xlu0 %1683
      %1685 = vrot.lane.b32.xlu0 %v870, 104
      %v1686 = vpop.permute.xlu0 %1685
      %1687 = vrot.lane.b32.xlu0 %v876, 104
      %v1688 = vpop.permute.xlu0 %1687
      %1689 = vrot.lane.b32.xlu0 %v882, 104
      %v1690 = vpop.permute.xlu0 %1689
      %1691 = vrot.lane.b32.xlu0 %v888, 104
      %v1692 = vpop.permute.xlu0 %1691
      %1693 = vrot.lane.b32.xlu0 %v894, 104
      %v1694 = vpop.permute.xlu0 %1693
      %1695 = vrot.lane.b32.xlu0 %v900, 104
      %v1696 = vpop.permute.xlu0 %1695
      %1697 = vrot.lane.b32.xlu0 %v906, 104
      %v1698 = vpop.permute.xlu0 %1697
      %1699 = vrot.lane.b32.xlu0 %v912, 104
      %v1700 = vpop.permute.xlu0 %1699
      %1701 = vrot.lane.b32.xlu0 %v918, 104
      %v1702 = vpop.permute.xlu0 %1701
      %1703 = vrot.lane.b32.xlu0 %v924, 104
      %v1704 = vpop.permute.xlu0 %1703
      %1705 = vrot.lane.b32.xlu0 %v930, 104
      %v1706 = vpop.permute.xlu0 %1705
      %1707 = vrot.lane.b32.xlu0 %v936, 104
      %v1708 = vpop.permute.xlu0 %1707
      %1709 = vrot.lane.b32.xlu0 %v942, 104
      %v1710 = vpop.permute.xlu0 %1709
      %1711 = vrot.lane.b32.xlu0 %v948, 104
      %v1712 = vpop.permute.xlu0 %1711
      %1713 = vrot.lane.b32.xlu0 %v954, 104
      %v1714 = vpop.permute.xlu0 %1713
      %1715 = vrot.lane.b32.xlu0 %v960, 104
      %v1716 = vpop.permute.xlu0 %1715
      %1717 = vrot.lane.b32.xlu0 %v966, 104
      %v1718 = vpop.permute.xlu0 %1717
      %1719 = vrot.lane.b32.xlu0 %v972, 104
      %v1720 = vpop.permute.xlu0 %1719
      %1721 = vrot.lane.b32.xlu0 %v978, 104
      %v1722 = vpop.permute.xlu0 %1721
      %vm1755 = vcmask 654848
      %1756 = vst.msk [vmem:[%s196] sm:$0xff] %vm1755, %v1660
      %1757 = vst.msk [vmem:[%s196 + $0x10] sm:$0xff] %vm1755, %v1662
      %1758 = vst.msk [vmem:[%s196 + $0x20] sm:$0xff] %vm1755, %v1664
      %1759 = vst.msk [vmem:[%s196 + $0x30] sm:$0xff] %vm1755, %v1666
      %1760 = vst.msk [vmem:[%s196 + $0x40] sm:$0xff] %vm1755, %v1668
      %1761 = vst.msk [vmem:[%s196 + $0x50] sm:$0xff] %vm1755, %v1670
      %1762 = vst.msk [vmem:[%s196 + $0x60] sm:$0xff] %vm1755, %v1672
      %1763 = vst.msk [vmem:[%s196 + $0x70] sm:$0xff] %vm1755, %v1674
      %1764 = vst.msk [vmem:[%s196 + $0x80] sm:$0xff] %vm1755, %v1676
      %1765 = vst.msk [vmem:[%s196 + $0x90] sm:$0xff] %vm1755, %v1678
      %1766 = vst.msk [vmem:[%s196 + $0xa0] sm:$0xff] %vm1755, %v1680
      %1767 = vst.msk [vmem:[%s196 + $0xb0] sm:$0xff] %vm1755, %v1682
      %1768 = vst.msk [vmem:[%s196 + $0xc0] sm:$0xff] %vm1755, %v1684
      %1769 = vst.msk [vmem:[%s196 + $0xd0] sm:$0xff] %vm1755, %v1686
      %1770 = vst.msk [vmem:[%s196 + $0xe0] sm:$0xff] %vm1755, %v1688
      %1771 = vst.msk [vmem:[%s196 + $0xf0] sm:$0xff] %vm1755, %v1690
      %1772 = vst.msk [vmem:[%s196 + $0x100] sm:$0xff] %vm1755, %v1692
      %1773 = vst.msk [vmem:[%s196 + $0x110] sm:$0xff] %vm1755, %v1694
      %1774 = vst.msk [vmem:[%s196 + $0x120] sm:$0xff] %vm1755, %v1696
      %1775 = vst.msk [vmem:[%s196 + $0x130] sm:$0xff] %vm1755, %v1698
      %1776 = vst.msk [vmem:[%s196 + $0x140] sm:$0xff] %vm1755, %v1700
      %1777 = vst.msk [vmem:[%s196 + $0x150] sm:$0xff] %vm1755, %v1702
      %1778 = vst.msk [vmem:[%s196 + $0x160] sm:$0xff] %vm1755, %v1704
      %1779 = vst.msk [vmem:[%s196 + $0x170] sm:$0xff] %vm1755, %v1706
      %1780 = vst.msk [vmem:[%s196 + $0x180] sm:$0xff] %vm1755, %v1708
      %1781 = vst.msk [vmem:[%s196 + $0x190] sm:$0xff] %vm1755, %v1710
      %1782 = vst.msk [vmem:[%s196 + $0x1a0] sm:$0xff] %vm1755, %v1712
      %1783 = vst.msk [vmem:[%s196 + $0x1b0] sm:$0xff] %vm1755, %v1714
      %1784 = vst.msk [vmem:[%s196 + $0x1c0] sm:$0xff] %vm1755, %v1716
      %1785 = vst.msk [vmem:[%s196 + $0x1d0] sm:$0xff] %vm1755, %v1718
      %1786 = vst.msk [vmem:[%s196 + $0x1e0] sm:$0xff] %vm1755, %v1720
      %1787 = vst.msk [vmem:[%s196 + $0x1f0] sm:$0xff] %vm1755, %v1722
      %1788 = vrot.lane.b32.xlu0 %v792, 98
      %v1789 = vpop.permute.xlu0 %1788
      %1790 = vrot.lane.b32.xlu0 %v798, 98
      %v1791 = vpop.permute.xlu0 %1790
      %1792 = vrot.lane.b32.xlu0 %v804, 98
      %v1793 = vpop.permute.xlu0 %1792
      %1794 = vrot.lane.b32.xlu0 %v810, 98
      %v1795 = vpop.permute.xlu0 %1794
      %1796 = vrot.lane.b32.xlu0 %v816, 98
      %v1797 = vpop.permute.xlu0 %1796
      %1798 = vrot.lane.b32.xlu0 %v822, 98
      %v1799 = vpop.permute.xlu0 %1798
      %1800 = vrot.lane.b32.xlu0 %v828, 98
      %v1801 = vpop.permute.xlu0 %1800
      %1802 = vrot.lane.b32.xlu0 %v834, 98
      %v1803 = vpop.permute.xlu0 %1802
      %1804 = vrot.lane.b32.xlu0 %v840, 98
      %v1805 = vpop.permute.xlu0 %1804
      %1806 = vrot.lane.b32.xlu0 %v846, 98
      %v1807 = vpop.permute.xlu0 %1806
      %1808 = vrot.lane.b32.xlu0 %v852, 98
      %v1809 = vpop.permute.xlu0 %1808
      %1810 = vrot.lane.b32.xlu0 %v858, 98
      %v1811 = vpop.permute.xlu0 %1810
      %1812 = vrot.lane.b32.xlu0 %v864, 98
      %v1813 = vpop.permute.xlu0 %1812
      %1814 = vrot.lane.b32.xlu0 %v870, 98
      %v1815 = vpop.permute.xlu0 %1814
      %1816 = vrot.lane.b32.xlu0 %v876, 98
      %v1817 = vpop.permute.xlu0 %1816
      %1818 = vrot.lane.b32.xlu0 %v882, 98
      %v1819 = vpop.permute.xlu0 %1818
      %1820 = vrot.lane.b32.xlu0 %v888, 98
      %v1821 = vpop.permute.xlu0 %1820
      %1822 = vrot.lane.b32.xlu0 %v894, 98
      %v1823 = vpop.permute.xlu0 %1822
      %1824 = vrot.lane.b32.xlu0 %v900, 98
      %v1825 = vpop.permute.xlu0 %1824
      %1826 = vrot.lane.b32.xlu0 %v906, 98
      %v1827 = vpop.permute.xlu0 %1826
      %1828 = vrot.lane.b32.xlu0 %v912, 98
      %v1829 = vpop.permute.xlu0 %1828
      %1830 = vrot.lane.b32.xlu0 %v918, 98
      %v1831 = vpop.permute.xlu0 %1830
      %1832 = vrot.lane.b32.xlu0 %v924, 98
      %v1833 = vpop.permute.xlu0 %1832
      %1834 = vrot.lane.b32.xlu0 %v930, 98
      %v1835 = vpop.permute.xlu0 %1834
      %1836 = vrot.lane.b32.xlu0 %v936, 98
      %v1837 = vpop.permute.xlu0 %1836
      %1838 = vrot.lane.b32.xlu0 %v942, 98
      %v1839 = vpop.permute.xlu0 %1838
      %1840 = vrot.lane.b32.xlu0 %v948, 98
      %v1841 = vpop.permute.xlu0 %1840
      %1842 = vrot.lane.b32.xlu0 %v954, 98
      %v1843 = vpop.permute.xlu0 %1842
      %1844 = vrot.lane.b32.xlu0 %v960, 98
      %v1845 = vpop.permute.xlu0 %1844
      %1846 = vrot.lane.b32.xlu0 %v966, 98
      %v1847 = vpop.permute.xlu0 %1846
      %1848 = vrot.lane.b32.xlu0 %v972, 98
      %v1849 = vpop.permute.xlu0 %1848
      %1850 = vrot.lane.b32.xlu0 %v978, 98
      %v1851 = vpop.permute.xlu0 %1850
      %vm1884 = vcmask 786048
      %1885 = vst.msk [vmem:[%s196] sm:$0xff] %vm1884, %v1789
      %1886 = vst.msk [vmem:[%s196 + $0x10] sm:$0xff] %vm1884, %v1791
      %1887 = vst.msk [vmem:[%s196 + $0x20] sm:$0xff] %vm1884, %v1793
      %1888 = vst.msk [vmem:[%s196 + $0x30] sm:$0xff] %vm1884, %v1795
      %1889 = vst.msk [vmem:[%s196 + $0x40] sm:$0xff] %vm1884, %v1797
      %1890 = vst.msk [vmem:[%s196 + $0x50] sm:$0xff] %vm1884, %v1799
      %1891 = vst.msk [vmem:[%s196 + $0x60] sm:$0xff] %vm1884, %v1801
      %1892 = vst.msk [vmem:[%s196 + $0x70] sm:$0xff] %vm1884, %v1803
      %1893 = vst.msk [vmem:[%s196 + $0x80] sm:$0xff] %vm1884, %v1805
      %1894 = vst.msk [vmem:[%s196 + $0x90] sm:$0xff] %vm1884, %v1807
      %1895 = vst.msk [vmem:[%s196 + $0xa0] sm:$0xff] %vm1884, %v1809
      %1896 = vst.msk [vmem:[%s196 + $0xb0] sm:$0xff] %vm1884, %v1811
      %1897 = vst.msk [vmem:[%s196 + $0xc0] sm:$0xff] %vm1884, %v1813
      %1898 = vst.msk [vmem:[%s196 + $0xd0] sm:$0xff] %vm1884, %v1815
      %1899 = vst.msk [vmem:[%s196 + $0xe0] sm:$0xff] %vm1884, %v1817
      %1900 = vst.msk [vmem:[%s196 + $0xf0] sm:$0xff] %vm1884, %v1819
      %1901 = vst.msk [vmem:[%s196 + $0x100] sm:$0xff] %vm1884, %v1821
      %1902 = vst.msk [vmem:[%s196 + $0x110] sm:$0xff] %vm1884, %v1823
      %1903 = vst.msk [vmem:[%s196 + $0x120] sm:$0xff] %vm1884, %v1825
      %1904 = vst.msk [vmem:[%s196 + $0x130] sm:$0xff] %vm1884, %v1827
      %1905 = vst.msk [vmem:[%s196 + $0x140] sm:$0xff] %vm1884, %v1829
      %1906 = vst.msk [vmem:[%s196 + $0x150] sm:$0xff] %vm1884, %v1831
      %1907 = vst.msk [vmem:[%s196 + $0x160] sm:$0xff] %vm1884, %v1833
      %1908 = vst.msk [vmem:[%s196 + $0x170] sm:$0xff] %vm1884, %v1835
      %1909 = vst.msk [vmem:[%s196 + $0x180] sm:$0xff] %vm1884, %v1837
      %1910 = vst.msk [vmem:[%s196 + $0x190] sm:$0xff] %vm1884, %v1839
      %1911 = vst.msk [vmem:[%s196 + $0x1a0] sm:$0xff] %vm1884, %v1841
      %1912 = vst.msk [vmem:[%s196 + $0x1b0] sm:$0xff] %vm1884, %v1843
      %1913 = vst.msk [vmem:[%s196 + $0x1c0] sm:$0xff] %vm1884, %v1845
      %1914 = vst.msk [vmem:[%s196 + $0x1d0] sm:$0xff] %vm1884, %v1847
      %1915 = vst.msk [vmem:[%s196 + $0x1e0] sm:$0xff] %vm1884, %v1849
      %1916 = vst.msk [vmem:[%s196 + $0x1f0] sm:$0xff] %vm1884, %v1851
      %1949 = vrot.lane.b32.xlu0 %v794, 92
      %v1950 = vpop.permute.xlu0 %1949
      %1951 = vrot.lane.b32.xlu0 %v800, 92
      %v1952 = vpop.permute.xlu0 %1951
      %1953 = vrot.lane.b32.xlu0 %v806, 92
      %v1954 = vpop.permute.xlu0 %1953
      %1955 = vrot.lane.b32.xlu0 %v812, 92
      %v1956 = vpop.permute.xlu0 %1955
      %1957 = vrot.lane.b32.xlu0 %v818, 92
      %v1958 = vpop.permute.xlu0 %1957
      %1959 = vrot.lane.b32.xlu0 %v824, 92
      %v1960 = vpop.permute.xlu0 %1959
      %1961 = vrot.lane.b32.xlu0 %v830, 92
      %v1962 = vpop.permute.xlu0 %1961
      %1963 = vrot.lane.b32.xlu0 %v836, 92
      %v1964 = vpop.permute.xlu0 %1963
      %1965 = vrot.lane.b32.xlu0 %v842, 92
      %v1966 = vpop.permute.xlu0 %1965
      %1967 = vrot.lane.b32.xlu0 %v848, 92
      %v1968 = vpop.permute.xlu0 %1967
      %1969 = vrot.lane.b32.xlu0 %v854, 92
      %v1970 = vpop.permute.xlu0 %1969
      %1971 = vrot.lane.b32.xlu0 %v860, 92
      %v1972 = vpop.permute.xlu0 %1971
      %1973 = vrot.lane.b32.xlu0 %v866, 92
      %v1974 = vpop.permute.xlu0 %1973
      %1975 = vrot.lane.b32.xlu0 %v872, 92
      %v1976 = vpop.permute.xlu0 %1975
      %1977 = vrot.lane.b32.xlu0 %v878, 92
      %v1978 = vpop.permute.xlu0 %1977
      %1979 = vrot.lane.b32.xlu0 %v884, 92
      %v1980 = vpop.permute.xlu0 %1979
      %1981 = vrot.lane.b32.xlu0 %v890, 92
      %v1982 = vpop.permute.xlu0 %1981
      %1983 = vrot.lane.b32.xlu0 %v896, 92
      %v1984 = vpop.permute.xlu0 %1983
      %1985 = vrot.lane.b32.xlu0 %v902, 92
      %v1986 = vpop.permute.xlu0 %1985
      %1987 = vrot.lane.b32.xlu0 %v908, 92
      %v1988 = vpop.permute.xlu0 %1987
      %1989 = vrot.lane.b32.xlu0 %v914, 92
      %v1990 = vpop.permute.xlu0 %1989
      %1991 = vrot.lane.b32.xlu0 %v920, 92
      %v1992 = vpop.permute.xlu0 %1991
      %1993 = vrot.lane.b32.xlu0 %v926, 92
      %v1994 = vpop.permute.xlu0 %1993
      %1995 = vrot.lane.b32.xlu0 %v932, 92
      %v1996 = vpop.permute.xlu0 %1995
      %1997 = vrot.lane.b32.xlu0 %v938, 92
      %v1998 = vpop.permute.xlu0 %1997
      %1999 = vrot.lane.b32.xlu0 %v944, 92
      %v2000 = vpop.permute.xlu0 %1999
      %2001 = vrot.lane.b32.xlu0 %v950, 92
      %v2002 = vpop.permute.xlu0 %2001
      %2003 = vrot.lane.b32.xlu0 %v956, 92
      %v2004 = vpop.permute.xlu0 %2003
      %2005 = vrot.lane.b32.xlu0 %v962, 92
      %v2006 = vpop.permute.xlu0 %2005
      %2007 = vrot.lane.b32.xlu0 %v968, 92
      %v2008 = vpop.permute.xlu0 %2007
      %2009 = vrot.lane.b32.xlu0 %v974, 92
      %v2010 = vpop.permute.xlu0 %2009
      %2011 = vrot.lane.b32.xlu0 %v980, 92
      %v2012 = vpop.permute.xlu0 %2011
      %vm2045 = vcmask 917248
      %2046 = vst.msk [vmem:[%s196] sm:$0xff] %vm2045, %v1950
      %2047 = vst.msk [vmem:[%s196 + $0x10] sm:$0xff] %vm2045, %v1952
      %2048 = vst.msk [vmem:[%s196 + $0x20] sm:$0xff] %vm2045, %v1954
      %2049 = vst.msk [vmem:[%s196 + $0x30] sm:$0xff] %vm2045, %v1956
      %2050 = vst.msk [vmem:[%s196 + $0x40] sm:$0xff] %vm2045, %v1958
      %2051 = vst.msk [vmem:[%s196 + $0x50] sm:$0xff] %vm2045, %v1960
      %2052 = vst.msk [vmem:[%s196 + $0x60] sm:$0xff] %vm2045, %v1962
      %2053 = vst.msk [vmem:[%s196 + $0x70] sm:$0xff] %vm2045, %v1964
      %2054 = vst.msk [vmem:[%s196 + $0x80] sm:$0xff] %vm2045, %v1966
      %2055 = vst.msk [vmem:[%s196 + $0x90] sm:$0xff] %vm2045, %v1968
      %2056 = vst.msk [vmem:[%s196 + $0xa0] sm:$0xff] %vm2045, %v1970
      %2057 = vst.msk [vmem:[%s196 + $0xb0] sm:$0xff] %vm2045, %v1972
      %2058 = vst.msk [vmem:[%s196 + $0xc0] sm:$0xff] %vm2045, %v1974
      %2059 = vst.msk [vmem:[%s196 + $0xd0] sm:$0xff] %vm2045, %v1976
      %2060 = vst.msk [vmem:[%s196 + $0xe0] sm:$0xff] %vm2045, %v1978
      %2061 = vst.msk [vmem:[%s196 + $0xf0] sm:$0xff] %vm2045, %v1980
      %2062 = vst.msk [vmem:[%s196 + $0x100] sm:$0xff] %vm2045, %v1982
      %2063 = vst.msk [vmem:[%s196 + $0x110] sm:$0xff] %vm2045, %v1984
      %2064 = vst.msk [vmem:[%s196 + $0x120] sm:$0xff] %vm2045, %v1986
      %2065 = vst.msk [vmem:[%s196 + $0x130] sm:$0xff] %vm2045, %v1988
      %2066 = vst.msk [vmem:[%s196 + $0x140] sm:$0xff] %vm2045, %v1990
      %2067 = vst.msk [vmem:[%s196 + $0x150] sm:$0xff] %vm2045, %v1992
      %2068 = vst.msk [vmem:[%s196 + $0x160] sm:$0xff] %vm2045, %v1994
      %2069 = vst.msk [vmem:[%s196 + $0x170] sm:$0xff] %vm2045, %v1996
      %2070 = vst.msk [vmem:[%s196 + $0x180] sm:$0xff] %vm2045, %v1998
      %2071 = vst.msk [vmem:[%s196 + $0x190] sm:$0xff] %vm2045, %v2000
      %2072 = vst.msk [vmem:[%s196 + $0x1a0] sm:$0xff] %vm2045, %v2002
      %2073 = vst.msk [vmem:[%s196 + $0x1b0] sm:$0xff] %vm2045, %v2004
      %2074 = vst.msk [vmem:[%s196 + $0x1c0] sm:$0xff] %vm2045, %v2006
      %2075 = vst.msk [vmem:[%s196 + $0x1d0] sm:$0xff] %vm2045, %v2008
      %2076 = vst.msk [vmem:[%s196 + $0x1e0] sm:$0xff] %vm2045, %v2010
      %2077 = vst.msk [vmem:[%s196 + $0x1f0] sm:$0xff] %vm2045, %v2012
      %2078 = vrot.lane.b32.xlu0 %v794, 86
      %v2079 = vpop.permute.xlu0 %2078
      %2080 = vrot.lane.b32.xlu0 %v800, 86
      %v2081 = vpop.permute.xlu0 %2080
      %2082 = vrot.lane.b32.xlu0 %v806, 86
      %v2083 = vpop.permute.xlu0 %2082
      %2084 = vrot.lane.b32.xlu0 %v812, 86
      %v2085 = vpop.permute.xlu0 %2084
      %2086 = vrot.lane.b32.xlu0 %v818, 86
      %v2087 = vpop.permute.xlu0 %2086
      %2088 = vrot.lane.b32.xlu0 %v824, 86
      %v2089 = vpop.permute.xlu0 %2088
      %2090 = vrot.lane.b32.xlu0 %v830, 86
      %v2091 = vpop.permute.xlu0 %2090
      %2092 = vrot.lane.b32.xlu0 %v836, 86
      %v2093 = vpop.permute.xlu0 %2092
      %2094 = vrot.lane.b32.xlu0 %v842, 86
      %v2095 = vpop.permute.xlu0 %2094
      %2096 = vrot.lane.b32.xlu0 %v848, 86
      %v2097 = vpop.permute.xlu0 %2096
      %2098 = vrot.lane.b32.xlu0 %v854, 86
      %v2099 = vpop.permute.xlu0 %2098
      %2100 = vrot.lane.b32.xlu0 %v860, 86
      %v2101 = vpop.permute.xlu0 %2100
      %2102 = vrot.lane.b32.xlu0 %v866, 86
      %v2103 = vpop.permute.xlu0 %2102
      %2104 = vrot.lane.b32.xlu0 %v872, 86
      %v2105 = vpop.permute.xlu0 %2104
      %2106 = vrot.lane.b32.xlu0 %v878, 86
      %v2107 = vpop.permute.xlu0 %2106
      %2108 = vrot.lane.b32.xlu0 %v884, 86
      %v2109 = vpop.permute.xlu0 %2108
      %2110 = vrot.lane.b32.xlu0 %v890, 86
      %v2111 = vpop.permute.xlu0 %2110
      %2112 = vrot.lane.b32.xlu0 %v896, 86
      %v2113 = vpop.permute.xlu0 %2112
      %2114 = vrot.lane.b32.xlu0 %v902, 86
      %v2115 = vpop.permute.xlu0 %2114
      %2116 = vrot.lane.b32.xlu0 %v908, 86
      %v2117 = vpop.permute.xlu0 %2116
      %2118 = vrot.lane.b32.xlu0 %v914, 86
      %v2119 = vpop.permute.xlu0 %2118
      %2120 = vrot.lane.b32.xlu0 %v920, 86
      %v2121 = vpop.permute.xlu0 %2120
      %2122 = vrot.lane.b32.xlu0 %v926, 86
      %v2123 = vpop.permute.xlu0 %2122
      %2124 = vrot.lane.b32.xlu0 %v932, 86
      %v2125 = vpop.permute.xlu0 %2124
      %2126 = vrot.lane.b32.xlu0 %v938, 86
      %v2127 = vpop.permute.xlu0 %2126
      %2128 = vrot.lane.b32.xlu0 %v944, 86
      %v2129 = vpop.permute.xlu0 %2128
      %2130 = vrot.lane.b32.xlu0 %v950, 86
      %v2131 = vpop.permute.xlu0 %2130
      %2132 = vrot.lane.b32.xlu0 %v956, 86
      %v2133 = vpop.permute.xlu0 %2132
      %2134 = vrot.lane.b32.xlu0 %v962, 86
      %v2135 = vpop.permute.xlu0 %2134
      %2136 = vrot.lane.b32.xlu0 %v968, 86
      %v2137 = vpop.permute.xlu0 %2136
      %2138 = vrot.lane.b32.xlu0 %v974, 86
      %v2139 = vpop.permute.xlu0 %2138
      %2140 = vrot.lane.b32.xlu0 %v980, 86
      %v2141 = vpop.permute.xlu0 %2140
      %vm2174 = vcmask 1048448
      %2175 = vst.msk [vmem:[%s196] sm:$0xff] %vm2174, %v2079
      %2176 = vst.msk [vmem:[%s196 + $0x10] sm:$0xff] %vm2174, %v2081
      %2177 = vst.msk [vmem:[%s196 + $0x20] sm:$0xff] %vm2174, %v2083
      %2178 = vst.msk [vmem:[%s196 + $0x30] sm:$0xff] %vm2174, %v2085
      %2179 = vst.msk [vmem:[%s196 + $0x40] sm:$0xff] %vm2174, %v2087
      %2180 = vst.msk [vmem:[%s196 + $0x50] sm:$0xff] %vm2174, %v2089
      %2181 = vst.msk [vmem:[%s196 + $0x60] sm:$0xff] %vm2174, %v2091
      %2182 = vst.msk [vmem:[%s196 + $0x70] sm:$0xff] %vm2174, %v2093
      %2183 = vst.msk [vmem:[%s196 + $0x80] sm:$0xff] %vm2174, %v2095
      %2184 = vst.msk [vmem:[%s196 + $0x90] sm:$0xff] %vm2174, %v2097
      %2185 = vst.msk [vmem:[%s196 + $0xa0] sm:$0xff] %vm2174, %v2099
      %2186 = vst.msk [vmem:[%s196 + $0xb0] sm:$0xff] %vm2174, %v2101
      %2187 = vst.msk [vmem:[%s196 + $0xc0] sm:$0xff] %vm2174, %v2103
      %2188 = vst.msk [vmem:[%s196 + $0xd0] sm:$0xff] %vm2174, %v2105
      %2189 = vst.msk [vmem:[%s196 + $0xe0] sm:$0xff] %vm2174, %v2107
      %2190 = vst.msk [vmem:[%s196 + $0xf0] sm:$0xff] %vm2174, %v2109
      %2191 = vst.msk [vmem:[%s196 + $0x100] sm:$0xff] %vm2174, %v2111
      %2192 = vst.msk [vmem:[%s196 + $0x110] sm:$0xff] %vm2174, %v2113
      %2193 = vst.msk [vmem:[%s196 + $0x120] sm:$0xff] %vm2174, %v2115
      %2194 = vst.msk [vmem:[%s196 + $0x130] sm:$0xff] %vm2174, %v2117
      %2195 = vst.msk [vmem:[%s196 + $0x140] sm:$0xff] %vm2174, %v2119
      %2196 = vst.msk [vmem:[%s196 + $0x150] sm:$0xff] %vm2174, %v2121
      %2197 = vst.msk [vmem:[%s196 + $0x160] sm:$0xff] %vm2174, %v2123
      %2198 = vst.msk [vmem:[%s196 + $0x170] sm:$0xff] %vm2174, %v2125
      %2199 = vst.msk [vmem:[%s196 + $0x180] sm:$0xff] %vm2174, %v2127
      %2200 = vst.msk [vmem:[%s196 + $0x190] sm:$0xff] %vm2174, %v2129
      %2201 = vst.msk [vmem:[%s196 + $0x1a0] sm:$0xff] %vm2174, %v2131
      %2202 = vst.msk [vmem:[%s196 + $0x1b0] sm:$0xff] %vm2174, %v2133
      %2203 = vst.msk [vmem:[%s196 + $0x1c0] sm:$0xff] %vm2174, %v2135
      %2204 = vst.msk [vmem:[%s196 + $0x1d0] sm:$0xff] %vm2174, %v2137
      %2205 = vst.msk [vmem:[%s196 + $0x1e0] sm:$0xff] %vm2174, %v2139
      %2206 = vst.msk [vmem:[%s196 + $0x1f0] sm:$0xff] %vm2174, %v2141
      %2207 = vrot.lane.b32.xlu0 %v794, 80
      %v2208 = vpop.permute.xlu0 %2207
      %2209 = vrot.lane.b32.xlu0 %v800, 80
      %v2210 = vpop.permute.xlu0 %2209
      %2211 = vrot.lane.b32.xlu0 %v806, 80
      %v2212 = vpop.permute.xlu0 %2211
      %2213 = vrot.lane.b32.xlu0 %v812, 80
      %v2214 = vpop.permute.xlu0 %2213
      %2215 = vrot.lane.b32.xlu0 %v818, 80
      %v2216 = vpop.permute.xlu0 %2215
      %2217 = vrot.lane.b32.xlu0 %v824, 80
      %v2218 = vpop.permute.xlu0 %2217
      %2219 = vrot.lane.b32.xlu0 %v830, 80
      %v2220 = vpop.permute.xlu0 %2219
      %2221 = vrot.lane.b32.xlu0 %v836, 80
      %v2222 = vpop.permute.xlu0 %2221
      %2223 = vrot.lane.b32.xlu0 %v842, 80
      %v2224 = vpop.permute.xlu0 %2223
      %2225 = vrot.lane.b32.xlu0 %v848, 80
      %v2226 = vpop.permute.xlu0 %2225
      %2227 = vrot.lane.b32.xlu0 %v854, 80
      %v2228 = vpop.permute.xlu0 %2227
      %2229 = vrot.lane.b32.xlu0 %v860, 80
      %v2230 = vpop.permute.xlu0 %2229
      %2231 = vrot.lane.b32.xlu0 %v866, 80
      %v2232 = vpop.permute.xlu0 %2231
      %2233 = vrot.lane.b32.xlu0 %v872, 80
      %v2234 = vpop.permute.xlu0 %2233
      %2235 = vrot.lane.b32.xlu0 %v878, 80
      %v2236 = vpop.permute.xlu0 %2235
      %2237 = vrot.lane.b32.xlu0 %v884, 80
      %v2238 = vpop.permute.xlu0 %2237
      %2239 = vrot.lane.b32.xlu0 %v890, 80
      %v2240 = vpop.permute.xlu0 %2239
      %2241 = vrot.lane.b32.xlu0 %v896, 80
      %v2242 = vpop.permute.xlu0 %2241
      %2243 = vrot.lane.b32.xlu0 %v902, 80
      %v2244 = vpop.permute.xlu0 %2243
      %2245 = vrot.lane.b32.xlu0 %v908, 80
      %v2246 = vpop.permute.xlu0 %2245
      %2247 = vrot.lane.b32.xlu0 %v914, 80
      %v2248 = vpop.permute.xlu0 %2247
      %2249 = vrot.lane.b32.xlu0 %v920, 80
      %v2250 = vpop.permute.xlu0 %2249
      %2251 = vrot.lane.b32.xlu0 %v926, 80
      %v2252 = vpop.permute.xlu0 %2251
      %2253 = vrot.lane.b32.xlu0 %v932, 80
      %v2254 = vpop.permute.xlu0 %2253
      %2255 = vrot.lane.b32.xlu0 %v938, 80
      %v2256 = vpop.permute.xlu0 %2255
      %2257 = vrot.lane.b32.xlu0 %v944, 80
      %v2258 = vpop.permute.xlu0 %2257
      %2259 = vrot.lane.b32.xlu0 %v950, 80
      %v2260 = vpop.permute.xlu0 %2259
      %2261 = vrot.lane.b32.xlu0 %v956, 80
      %v2262 = vpop.permute.xlu0 %2261
      %2263 = vrot.lane.b32.xlu0 %v962, 80
      %v2264 = vpop.permute.xlu0 %2263
      %2265 = vrot.lane.b32.xlu0 %v968, 80
      %v2266 = vpop.permute.xlu0 %2265
      %2267 = vrot.lane.b32.xlu0 %v974, 80
      %v2268 = vpop.permute.xlu0 %2267
      %2269 = vrot.lane.b32.xlu0 %v980, 80
      %v2270 = vpop.permute.xlu0 %2269
      %2303 = vst.msk [vmem:[%s196 + $0x8] sm:$0xff] %vm1207, %v2208
      %2304 = vst.msk [vmem:[%s196 + $0x18] sm:$0xff] %vm1207, %v2210
      %2305 = vst.msk [vmem:[%s196 + $0x28] sm:$0xff] %vm1207, %v2212
      %2306 = vst.msk [vmem:[%s196 + $0x38] sm:$0xff] %vm1207, %v2214
      %2307 = vst.msk [vmem:[%s196 + $0x48] sm:$0xff] %vm1207, %v2216
      %2308 = vst.msk [vmem:[%s196 + $0x58] sm:$0xff] %vm1207, %v2218
      %2309 = vst.msk [vmem:[%s196 + $0x68] sm:$0xff] %vm1207, %v2220
      %2310 = vst.msk [vmem:[%s196 + $0x78] sm:$0xff] %vm1207, %v2222
      %2311 = vst.msk [vmem:[%s196 + $0x88] sm:$0xff] %vm1207, %v2224
      %2312 = vst.msk [vmem:[%s196 + $0x98] sm:$0xff] %vm1207, %v2226
      %2313 = vst.msk [vmem:[%s196 + $0xa8] sm:$0xff] %vm1207, %v2228
      %2314 = vst.msk [vmem:[%s196 + $0xb8] sm:$0xff] %vm1207, %v2230
      %2315 = vst.msk [vmem:[%s196 + $0xc8] sm:$0xff] %vm1207, %v2232
      %2316 = vst.msk [vmem:[%s196 + $0xd8] sm:$0xff] %vm1207, %v2234
      %2317 = vst.msk [vmem:[%s196 + $0xe8] sm:$0xff] %vm1207, %v2236
      %2318 = vst.msk [vmem:[%s196 + $0xf8] sm:$0xff] %vm1207, %v2238
      %2319 = vst.msk [vmem:[%s196 + $0x108] sm:$0xff] %vm1207, %v2240
      %2320 = vst.msk [vmem:[%s196 + $0x118] sm:$0xff] %vm1207, %v2242
      %2321 = vst.msk [vmem:[%s196 + $0x128] sm:$0xff] %vm1207, %v2244
      %2322 = vst.msk [vmem:[%s196 + $0x138] sm:$0xff] %vm1207, %v2246
      %2323 = vst.msk [vmem:[%s196 + $0x148] sm:$0xff] %vm1207, %v2248
      %2324 = vst.msk [vmem:[%s196 + $0x158] sm:$0xff] %vm1207, %v2250
      %2325 = vst.msk [vmem:[%s196 + $0x168] sm:$0xff] %vm1207, %v2252
      %2326 = vst.msk [vmem:[%s196 + $0x178] sm:$0xff] %vm1207, %v2254
      %2327 = vst.msk [vmem:[%s196 + $0x188] sm:$0xff] %vm1207, %v2256
      %2328 = vst.msk [vmem:[%s196 + $0x198] sm:$0xff] %vm1207, %v2258
      %2329 = vst.msk [vmem:[%s196 + $0x1a8] sm:$0xff] %vm1207, %v2260
      %2330 = vst.msk [vmem:[%s196 + $0x1b8] sm:$0xff] %vm1207, %v2262
      %2331 = vst.msk [vmem:[%s196 + $0x1c8] sm:$0xff] %vm1207, %v2264
      %2332 = vst.msk [vmem:[%s196 + $0x1d8] sm:$0xff] %vm1207, %v2266
      %2333 = vst.msk [vmem:[%s196 + $0x1e8] sm:$0xff] %vm1207, %v2268
      %2334 = vst.msk [vmem:[%s196 + $0x1f8] sm:$0xff] %vm1207, %v2270
      %2335 = vrot.lane.b32.xlu0 %v794, 74
      %v2336 = vpop.permute.xlu0 %2335
      %2337 = vrot.lane.b32.xlu0 %v800, 74
      %v2338 = vpop.permute.xlu0 %2337
      %2339 = vrot.lane.b32.xlu0 %v806, 74
      %v2340 = vpop.permute.xlu0 %2339
      %2341 = vrot.lane.b32.xlu0 %v812, 74
      %v2342 = vpop.permute.xlu0 %2341
      %2343 = vrot.lane.b32.xlu0 %v818, 74
      %v2344 = vpop.permute.xlu0 %2343
      %2345 = vrot.lane.b32.xlu0 %v824, 74
      %v2346 = vpop.permute.xlu0 %2345
      %2347 = vrot.lane.b32.xlu0 %v830, 74
      %v2348 = vpop.permute.xlu0 %2347
      %2349 = vrot.lane.b32.xlu0 %v836, 74
      %v2350 = vpop.permute.xlu0 %2349
      %2351 = vrot.lane.b32.xlu0 %v842, 74
      %v2352 = vpop.permute.xlu0 %2351
      %2353 = vrot.lane.b32.xlu0 %v848, 74
      %v2354 = vpop.permute.xlu0 %2353
      %2355 = vrot.lane.b32.xlu0 %v854, 74
      %v2356 = vpop.permute.xlu0 %2355
      %2357 = vrot.lane.b32.xlu0 %v860, 74
      %v2358 = vpop.permute.xlu0 %2357
      %2359 = vrot.lane.b32.xlu0 %v866, 74
      %v2360 = vpop.permute.xlu0 %2359
      %2361 = vrot.lane.b32.xlu0 %v872, 74
      %v2362 = vpop.permute.xlu0 %2361
      %2363 = vrot.lane.b32.xlu0 %v878, 74
      %v2364 = vpop.permute.xlu0 %2363
      %2365 = vrot.lane.b32.xlu0 %v884, 74
      %v2366 = vpop.permute.xlu0 %2365
      %2367 = vrot.lane.b32.xlu0 %v890, 74
      %v2368 = vpop.permute.xlu0 %2367
      %2369 = vrot.lane.b32.xlu0 %v896, 74
      %v2370 = vpop.permute.xlu0 %2369
      %2371 = vrot.lane.b32.xlu0 %v902, 74
      %v2372 = vpop.permute.xlu0 %2371
      %2373 = vrot.lane.b32.xlu0 %v908, 74
      %v2374 = vpop.permute.xlu0 %2373
      %2375 = vrot.lane.b32.xlu0 %v914, 74
      %v2376 = vpop.permute.xlu0 %2375
      %2377 = vrot.lane.b32.xlu0 %v920, 74
      %v2378 = vpop.permute.xlu0 %2377
      %2379 = vrot.lane.b32.xlu0 %v926, 74
      %v2380 = vpop.permute.xlu0 %2379
      %2381 = vrot.lane.b32.xlu0 %v932, 74
      %v2382 = vpop.permute.xlu0 %2381
      %2383 = vrot.lane.b32.xlu0 %v938, 74
      %v2384 = vpop.permute.xlu0 %2383
      %2385 = vrot.lane.b32.xlu0 %v944, 74
      %v2386 = vpop.permute.xlu0 %2385
      %2387 = vrot.lane.b32.xlu0 %v950, 74
      %v2388 = vpop.permute.xlu0 %2387
      %2389 = vrot.lane.b32.xlu0 %v956, 74
      %v2390 = vpop.permute.xlu0 %2389
      %2391 = vrot.lane.b32.xlu0 %v962, 74
      %v2392 = vpop.permute.xlu0 %2391
      %2393 = vrot.lane.b32.xlu0 %v968, 74
      %v2394 = vpop.permute.xlu0 %2393
      %2395 = vrot.lane.b32.xlu0 %v974, 74
      %v2396 = vpop.permute.xlu0 %2395
      %2397 = vrot.lane.b32.xlu0 %v980, 74
      %v2398 = vpop.permute.xlu0 %2397
      %2431 = vst.msk [vmem:[%s196 + $0x8] sm:$0xff] %vm1368, %v2336
      %2432 = vst.msk [vmem:[%s196 + $0x18] sm:$0xff] %vm1368, %v2338
      %2433 = vst.msk [vmem:[%s196 + $0x28] sm:$0xff] %vm1368, %v2340
      %2434 = vst.msk [vmem:[%s196 + $0x38] sm:$0xff] %vm1368, %v2342
      %2435 = vst.msk [vmem:[%s196 + $0x48] sm:$0xff] %vm1368, %v2344
      %2436 = vst.msk [vmem:[%s196 + $0x58] sm:$0xff] %vm1368, %v2346
      %2437 = vst.msk [vmem:[%s196 + $0x68] sm:$0xff] %vm1368, %v2348
      %2438 = vst.msk [vmem:[%s196 + $0x78] sm:$0xff] %vm1368, %v2350
      %2439 = vst.msk [vmem:[%s196 + $0x88] sm:$0xff] %vm1368, %v2352
      %2440 = vst.msk [vmem:[%s196 + $0x98] sm:$0xff] %vm1368, %v2354
      %2441 = vst.msk [vmem:[%s196 + $0xa8] sm:$0xff] %vm1368, %v2356
      %2442 = vst.msk [vmem:[%s196 + $0xb8] sm:$0xff] %vm1368, %v2358
      %2443 = vst.msk [vmem:[%s196 + $0xc8] sm:$0xff] %vm1368, %v2360
      %2444 = vst.msk [vmem:[%s196 + $0xd8] sm:$0xff] %vm1368, %v2362
      %2445 = vst.msk [vmem:[%s196 + $0xe8] sm:$0xff] %vm1368, %v2364
      %2446 = vst.msk [vmem:[%s196 + $0xf8] sm:$0xff] %vm1368, %v2366
      %2447 = vst.msk [vmem:[%s196 + $0x108] sm:$0xff] %vm1368, %v2368
      %2448 = vst.msk [vmem:[%s196 + $0x118] sm:$0xff] %vm1368, %v2370
      %2449 = vst.msk [vmem:[%s196 + $0x128] sm:$0xff] %vm1368, %v2372
      %2450 = vst.msk [vmem:[%s196 + $0x138] sm:$0xff] %vm1368, %v2374
      %2451 = vst.msk [vmem:[%s196 + $0x148] sm:$0xff] %vm1368, %v2376
      %2452 = vst.msk [vmem:[%s196 + $0x158] sm:$0xff] %vm1368, %v2378
      %2453 = vst.msk [vmem:[%s196 + $0x168] sm:$0xff] %vm1368, %v2380
      %2454 = vst.msk [vmem:[%s196 + $0x178] sm:$0xff] %vm1368, %v2382
      %2455 = vst.msk [vmem:[%s196 + $0x188] sm:$0xff] %vm1368, %v2384
      %2456 = vst.msk [vmem:[%s196 + $0x198] sm:$0xff] %vm1368, %v2386
      %2457 = vst.msk [vmem:[%s196 + $0x1a8] sm:$0xff] %vm1368, %v2388
      %2458 = vst.msk [vmem:[%s196 + $0x1b8] sm:$0xff] %vm1368, %v2390
      %2459 = vst.msk [vmem:[%s196 + $0x1c8] sm:$0xff] %vm1368, %v2392
      %2460 = vst.msk [vmem:[%s196 + $0x1d8] sm:$0xff] %vm1368, %v2394
      %2461 = vst.msk [vmem:[%s196 + $0x1e8] sm:$0xff] %vm1368, %v2396
      %2462 = vst.msk [vmem:[%s196 + $0x1f8] sm:$0xff] %vm1368, %v2398
      %2463 = vrot.lane.b32.xlu0 %v794, 68
      %v2464 = vpop.permute.xlu0 %2463
      %2465 = vrot.lane.b32.xlu0 %v800, 68
      %v2466 = vpop.permute.xlu0 %2465
      %2467 = vrot.lane.b32.xlu0 %v806, 68
      %v2468 = vpop.permute.xlu0 %2467
      %2469 = vrot.lane.b32.xlu0 %v812, 68
      %v2470 = vpop.permute.xlu0 %2469
      %2471 = vrot.lane.b32.xlu0 %v818, 68
      %v2472 = vpop.permute.xlu0 %2471
      %2473 = vrot.lane.b32.xlu0 %v824, 68
      %v2474 = vpop.permute.xlu0 %2473
      %2475 = vrot.lane.b32.xlu0 %v830, 68
      %v2476 = vpop.permute.xlu0 %2475
      %2477 = vrot.lane.b32.xlu0 %v836, 68
      %v2478 = vpop.permute.xlu0 %2477
      %2479 = vrot.lane.b32.xlu0 %v842, 68
      %v2480 = vpop.permute.xlu0 %2479
      %2481 = vrot.lane.b32.xlu0 %v848, 68
      %v2482 = vpop.permute.xlu0 %2481
      %2483 = vrot.lane.b32.xlu0 %v854, 68
      %v2484 = vpop.permute.xlu0 %2483
      %2485 = vrot.lane.b32.xlu0 %v860, 68
      %v2486 = vpop.permute.xlu0 %2485
      %2487 = vrot.lane.b32.xlu0 %v866, 68
      %v2488 = vpop.permute.xlu0 %2487
      %2489 = vrot.lane.b32.xlu0 %v872, 68
      %v2490 = vpop.permute.xlu0 %2489
      %2491 = vrot.lane.b32.xlu0 %v878, 68
      %v2492 = vpop.permute.xlu0 %2491
      %2493 = vrot.lane.b32.xlu0 %v884, 68
      %v2494 = vpop.permute.xlu0 %2493
      %2495 = vrot.lane.b32.xlu0 %v890, 68
      %v2496 = vpop.permute.xlu0 %2495
      %2497 = vrot.lane.b32.xlu0 %v896, 68
      %v2498 = vpop.permute.xlu0 %2497
      %2499 = vrot.lane.b32.xlu0 %v902, 68
      %v2500 = vpop.permute.xlu0 %2499
      %2501 = vrot.lane.b32.xlu0 %v908, 68
      %v2502 = vpop.permute.xlu0 %2501
      %2503 = vrot.lane.b32.xlu0 %v914, 68
      %v2504 = vpop.permute.xlu0 %2503
      %2505 = vrot.lane.b32.xlu0 %v920, 68
      %v2506 = vpop.permute.xlu0 %2505
      %2507 = vrot.lane.b32.xlu0 %v926, 68
      %v2508 = vpop.permute.xlu0 %2507
      %2509 = vrot.lane.b32.xlu0 %v932, 68
      %v2510 = vpop.permute.xlu0 %2509
      %2511 = vrot.lane.b32.xlu0 %v938, 68
      %v2512 = vpop.permute.xlu0 %2511
      %2513 = vrot.lane.b32.xlu0 %v944, 68
      %v2514 = vpop.permute.xlu0 %2513
      %2515 = vrot.lane.b32.xlu0 %v950, 68
      %v2516 = vpop.permute.xlu0 %2515
      %2517 = vrot.lane.b32.xlu0 %v956, 68
      %v2518 = vpop.permute.xlu0 %2517
      %2519 = vrot.lane.b32.xlu0 %v962, 68
      %v2520 = vpop.permute.xlu0 %2519
      %2521 = vrot.lane.b32.xlu0 %v968, 68
      %v2522 = vpop.permute.xlu0 %2521
      %2523 = vrot.lane.b32.xlu0 %v974, 68
      %v2524 = vpop.permute.xlu0 %2523
      %2525 = vrot.lane.b32.xlu0 %v980, 68
      %v2526 = vpop.permute.xlu0 %2525
      %2559 = vst.msk [vmem:[%s196 + $0x8] sm:$0xff] %vm1497, %v2464
      %2560 = vst.msk [vmem:[%s196 + $0x18] sm:$0xff] %vm1497, %v2466
      %2561 = vst.msk [vmem:[%s196 + $0x28] sm:$0xff] %vm1497, %v2468
      %2562 = vst.msk [vmem:[%s196 + $0x38] sm:$0xff] %vm1497, %v2470
      %2563 = vst.msk [vmem:[%s196 + $0x48] sm:$0xff] %vm1497, %v2472
      %2564 = vst.msk [vmem:[%s196 + $0x58] sm:$0xff] %vm1497, %v2474
      %2565 = vst.msk [vmem:[%s196 + $0x68] sm:$0xff] %vm1497, %v2476
      %2566 = vst.msk [vmem:[%s196 + $0x78] sm:$0xff] %vm1497, %v2478
      %2567 = vst.msk [vmem:[%s196 + $0x88] sm:$0xff] %vm1497, %v2480
      %2568 = vst.msk [vmem:[%s196 + $0x98] sm:$0xff] %vm1497, %v2482
      %2569 = vst.msk [vmem:[%s196 + $0xa8] sm:$0xff] %vm1497, %v2484
      %2570 = vst.msk [vmem:[%s196 + $0xb8] sm:$0xff] %vm1497, %v2486
      %2571 = vst.msk [vmem:[%s196 + $0xc8] sm:$0xff] %vm1497, %v2488
      %2572 = vst.msk [vmem:[%s196 + $0xd8] sm:$0xff] %vm1497, %v2490
      %2573 = vst.msk [vmem:[%s196 + $0xe8] sm:$0xff] %vm1497, %v2492
      %2574 = vst.msk [vmem:[%s196 + $0xf8] sm:$0xff] %vm1497, %v2494
      %2575 = vst.msk [vmem:[%s196 + $0x108] sm:$0xff] %vm1497, %v2496
      %2576 = vst.msk [vmem:[%s196 + $0x118] sm:$0xff] %vm1497, %v2498
      %2577 = vst.msk [vmem:[%s196 + $0x128] sm:$0xff] %vm1497, %v2500
      %2578 = vst.msk [vmem:[%s196 + $0x138] sm:$0xff] %vm1497, %v2502
      %2579 = vst.msk [vmem:[%s196 + $0x148] sm:$0xff] %vm1497, %v2504
      %2580 = vst.msk [vmem:[%s196 + $0x158] sm:$0xff] %vm1497, %v2506
      %2581 = vst.msk [vmem:[%s196 + $0x168] sm:$0xff] %vm1497, %v2508
      %2582 = vst.msk [vmem:[%s196 + $0x178] sm:$0xff] %vm1497, %v2510
      %2583 = vst.msk [vmem:[%s196 + $0x188] sm:$0xff] %vm1497, %v2512
      %2584 = vst.msk [vmem:[%s196 + $0x198] sm:$0xff] %vm1497, %v2514
      %2585 = vst.msk [vmem:[%s196 + $0x1a8] sm:$0xff] %vm1497, %v2516
      %2586 = vst.msk [vmem:[%s196 + $0x1b8] sm:$0xff] %vm1497, %v2518
      %2587 = vst.msk [vmem:[%s196 + $0x1c8] sm:$0xff] %vm1497, %v2520
      %2588 = vst.msk [vmem:[%s196 + $0x1d8] sm:$0xff] %vm1497, %v2522
      %2589 = vst.msk [vmem:[%s196 + $0x1e8] sm:$0xff] %vm1497, %v2524
      %2590 = vst.msk [vmem:[%s196 + $0x1f8] sm:$0xff] %vm1497, %v2526
      %2623 = vrot.lane.b32.xlu0 %v794, 62
      %v2624 = vpop.permute.xlu0 %2623
      %2625 = vrot.lane.b32.xlu0 %v1049, 62
      %v2626 = vpop.permute.xlu0 %2625
      %2627 = vrot.lane.b32.xlu0 %v800, 62
      %v2628 = vpop.permute.xlu0 %2627
      %2629 = vrot.lane.b32.xlu0 %v1054, 62
      %v2630 = vpop.permute.xlu0 %2629
      %2631 = vrot.lane.b32.xlu0 %v806, 62
      %v2632 = vpop.permute.xlu0 %2631
      %2633 = vrot.lane.b32.xlu0 %v1059, 62
      %v2634 = vpop.permute.xlu0 %2633
      %2635 = vrot.lane.b32.xlu0 %v812, 62
      %v2636 = vpop.permute.xlu0 %2635
      %2637 = vrot.lane.b32.xlu0 %v1064, 62
      %v2638 = vpop.permute.xlu0 %2637
      %2639 = vrot.lane.b32.xlu0 %v818, 62
      %v2640 = vpop.permute.xlu0 %2639
      %2641 = vrot.lane.b32.xlu0 %v1069, 62
      %v2642 = vpop.permute.xlu0 %2641
      %2643 = vrot.lane.b32.xlu0 %v824, 62
      %v2644 = vpop.permute.xlu0 %2643
      %2645 = vrot.lane.b32.xlu0 %v1074, 62
      %v2646 = vpop.permute.xlu0 %2645
      %2647 = vrot.lane.b32.xlu0 %v830, 62
      %v2648 = vpop.permute.xlu0 %2647
      %2649 = vrot.lane.b32.xlu0 %v1079, 62
      %v2650 = vpop.permute.xlu0 %2649
      %2651 = vrot.lane.b32.xlu0 %v836, 62
      %v2652 = vpop.permute.xlu0 %2651
      %2653 = vrot.lane.b32.xlu0 %v1084, 62
      %v2654 = vpop.permute.xlu0 %2653
      %2655 = vrot.lane.b32.xlu0 %v842, 62
      %v2656 = vpop.permute.xlu0 %2655
      %2657 = vrot.lane.b32.xlu0 %v1089, 62
      %v2658 = vpop.permute.xlu0 %2657
      %2659 = vrot.lane.b32.xlu0 %v848, 62
      %v2660 = vpop.permute.xlu0 %2659
      %2661 = vrot.lane.b32.xlu0 %v1094, 62
      %v2662 = vpop.permute.xlu0 %2661
      %2663 = vrot.lane.b32.xlu0 %v854, 62
      %v2664 = vpop.permute.xlu0 %2663
      %2665 = vrot.lane.b32.xlu0 %v1099, 62
      %v2666 = vpop.permute.xlu0 %2665
      %2667 = vrot.lane.b32.xlu0 %v860, 62
      %v2668 = vpop.permute.xlu0 %2667
      %2669 = vrot.lane.b32.xlu0 %v1104, 62
      %v2670 = vpop.permute.xlu0 %2669
      %2671 = vrot.lane.b32.xlu0 %v866, 62
      %v2672 = vpop.permute.xlu0 %2671
      %2673 = vrot.lane.b32.xlu0 %v1109, 62
      %v2674 = vpop.permute.xlu0 %2673
      %2675 = vrot.lane.b32.xlu0 %v872, 62
      %v2676 = vpop.permute.xlu0 %2675
      %2677 = vrot.lane.b32.xlu0 %v1114, 62
      %v2678 = vpop.permute.xlu0 %2677
      %2679 = vrot.lane.b32.xlu0 %v878, 62
      %v2680 = vpop.permute.xlu0 %2679
      %2681 = vrot.lane.b32.xlu0 %v1119, 62
      %v2682 = vpop.permute.xlu0 %2681
      %2683 = vrot.lane.b32.xlu0 %v884, 62
      %v2684 = vpop.permute.xlu0 %2683
      %2685 = vrot.lane.b32.xlu0 %v1124, 62
      %v2686 = vpop.permute.xlu0 %2685
      %2687 = vrot.lane.b32.xlu0 %v890, 62
      %v2688 = vpop.permute.xlu0 %2687
      %2689 = vrot.lane.b32.xlu0 %v1129, 62
      %v2690 = vpop.permute.xlu0 %2689
      %2691 = vrot.lane.b32.xlu0 %v896, 62
      %v2692 = vpop.permute.xlu0 %2691
      %2693 = vrot.lane.b32.xlu0 %v1134, 62
      %v2694 = vpop.permute.xlu0 %2693
      %2695 = vrot.lane.b32.xlu0 %v902, 62
      %v2696 = vpop.permute.xlu0 %2695
      %2697 = vrot.lane.b32.xlu0 %v1139, 62
      %v2698 = vpop.permute.xlu0 %2697
      %2699 = vrot.lane.b32.xlu0 %v908, 62
      %v2700 = vpop.permute.xlu0 %2699
      %2701 = vrot.lane.b32.xlu0 %v1144, 62
      %v2702 = vpop.permute.xlu0 %2701
      %2703 = vrot.lane.b32.xlu0 %v914, 62
      %v2704 = vpop.permute.xlu0 %2703
      %2705 = vrot.lane.b32.xlu0 %v1149, 62
      %v2706 = vpop.permute.xlu0 %2705
      %2707 = vrot.lane.b32.xlu0 %v920, 62
      %v2708 = vpop.permute.xlu0 %2707
      %2709 = vrot.lane.b32.xlu0 %v1154, 62
      %v2710 = vpop.permute.xlu0 %2709
      %2711 = vrot.lane.b32.xlu0 %v926, 62
      %v2712 = vpop.permute.xlu0 %2711
      %2713 = vrot.lane.b32.xlu0 %v1159, 62
      %v2714 = vpop.permute.xlu0 %2713
      %2715 = vrot.lane.b32.xlu0 %v932, 62
      %v2716 = vpop.permute.xlu0 %2715
      %2717 = vrot.lane.b32.xlu0 %v1164, 62
      %v2718 = vpop.permute.xlu0 %2717
      %2719 = vrot.lane.b32.xlu0 %v938, 62
      %v2720 = vpop.permute.xlu0 %2719
      %2721 = vrot.lane.b32.xlu0 %v1169, 62
      %v2722 = vpop.permute.xlu0 %2721
      %2723 = vrot.lane.b32.xlu0 %v944, 62
      %v2724 = vpop.permute.xlu0 %2723
      %2725 = vrot.lane.b32.xlu0 %v1174, 62
      %v2726 = vpop.permute.xlu0 %2725
      %2727 = vrot.lane.b32.xlu0 %v950, 62
      %v2728 = vpop.permute.xlu0 %2727
      %2729 = vrot.lane.b32.xlu0 %v1179, 62
      %v2730 = vpop.permute.xlu0 %2729
      %2731 = vrot.lane.b32.xlu0 %v956, 62
      %v2732 = vpop.permute.xlu0 %2731
      %2733 = vrot.lane.b32.xlu0 %v1184, 62
      %v2734 = vpop.permute.xlu0 %2733
      %2735 = vrot.lane.b32.xlu0 %v962, 62
      %v2736 = vpop.permute.xlu0 %2735
      %2737 = vrot.lane.b32.xlu0 %v1189, 62
      %v2738 = vpop.permute.xlu0 %2737
      %2739 = vrot.lane.b32.xlu0 %v968, 62
      %v2740 = vpop.permute.xlu0 %2739
      %2741 = vrot.lane.b32.xlu0 %v1194, 62
      %v2742 = vpop.permute.xlu0 %2741
      %2743 = vrot.lane.b32.xlu0 %v974, 62
      %v2744 = vpop.permute.xlu0 %2743
      %2745 = vrot.lane.b32.xlu0 %v1199, 62
      %v2746 = vpop.permute.xlu0 %2745
      %2747 = vrot.lane.b32.xlu0 %v980, 62
      %v2748 = vpop.permute.xlu0 %2747
      %2749 = vrot.lane.b32.xlu0 %v1204, 62
      %v2750 = vpop.permute.xlu0 %2749
      %v2751 = vsel %vm271, %v2624, %v2626
      %v2752 = vsel %vm271, %v2628, %v2630
      %v2753 = vsel %vm271, %v2632, %v2634
      %v2754 = vsel %vm271, %v2636, %v2638
      %v2755 = vsel %vm271, %v2640, %v2642
      %v2756 = vsel %vm271, %v2644, %v2646
      %v2757 = vsel %vm271, %v2648, %v2650
      %v2758 = vsel %vm271, %v2652, %v2654
      %v2759 = vsel %vm271, %v2656, %v2658
      %v2760 = vsel %vm271, %v2660, %v2662
      %v2761 = vsel %vm271, %v2664, %v2666
      %v2762 = vsel %vm271, %v2668, %v2670
      %v2763 = vsel %vm271, %v2672, %v2674
      %v2764 = vsel %vm271, %v2676, %v2678
      %v2765 = vsel %vm271, %v2680, %v2682
      %v2766 = vsel %vm271, %v2684, %v2686
      %v2767 = vsel %vm271, %v2688, %v2690
      %v2768 = vsel %vm271, %v2692, %v2694
      %v2769 = vsel %vm271, %v2696, %v2698
      %v2770 = vsel %vm271, %v2700, %v2702
      %v2771 = vsel %vm271, %v2704, %v2706
      %v2772 = vsel %vm271, %v2708, %v2710
      %v2773 = vsel %vm271, %v2712, %v2714
      %v2774 = vsel %vm271, %v2716, %v2718
      %v2775 = vsel %vm271, %v2720, %v2722
      %v2776 = vsel %vm271, %v2724, %v2726
      %v2777 = vsel %vm271, %v2728, %v2730
      %v2778 = vsel %vm271, %v2732, %v2734
      %v2779 = vsel %vm271, %v2736, %v2738
      %v2780 = vsel %vm271, %v2740, %v2742
      %v2781 = vsel %vm271, %v2744, %v2746
      %v2782 = vsel %vm271, %v2748, %v2750
      %2815 = vst.msk [vmem:[%s196 + $0x8] sm:$0xff] %vm1626, %v2751
      %2816 = vst.msk [vmem:[%s196 + $0x18] sm:$0xff] %vm1626, %v2752
      %2817 = vst.msk [vmem:[%s196 + $0x28] sm:$0xff] %vm1626, %v2753
      %2818 = vst.msk [vmem:[%s196 + $0x38] sm:$0xff] %vm1626, %v2754
      %2819 = vst.msk [vmem:[%s196 + $0x48] sm:$0xff] %vm1626, %v2755
      %2820 = vst.msk [vmem:[%s196 + $0x58] sm:$0xff] %vm1626, %v2756
      %2821 = vst.msk [vmem:[%s196 + $0x68] sm:$0xff] %vm1626, %v2757
      %2822 = vst.msk [vmem:[%s196 + $0x78] sm:$0xff] %vm1626, %v2758
      %2823 = vst.msk [vmem:[%s196 + $0x88] sm:$0xff] %vm1626, %v2759
      %2824 = vst.msk [vmem:[%s196 + $0x98] sm:$0xff] %vm1626, %v2760
      %2825 = vst.msk [vmem:[%s196 + $0xa8] sm:$0xff] %vm1626, %v2761
      %2826 = vst.msk [vmem:[%s196 + $0xb8] sm:$0xff] %vm1626, %v2762
      %2827 = vst.msk [vmem:[%s196 + $0xc8] sm:$0xff] %vm1626, %v2763
      %2828 = vst.msk [vmem:[%s196 + $0xd8] sm:$0xff] %vm1626, %v2764
      %2829 = vst.msk [vmem:[%s196 + $0xe8] sm:$0xff] %vm1626, %v2765
      %2830 = vst.msk [vmem:[%s196 + $0xf8] sm:$0xff] %vm1626, %v2766
      %2831 = vst.msk [vmem:[%s196 + $0x108] sm:$0xff] %vm1626, %v2767
      %2832 = vst.msk [vmem:[%s196 + $0x118] sm:$0xff] %vm1626, %v2768
      %2833 = vst.msk [vmem:[%s196 + $0x128] sm:$0xff] %vm1626, %v2769
      %2834 = vst.msk [vmem:[%s196 + $0x138] sm:$0xff] %vm1626, %v2770
      %2835 = vst.msk [vmem:[%s196 + $0x148] sm:$0xff] %vm1626, %v2771
      %2836 = vst.msk [vmem:[%s196 + $0x158] sm:$0xff] %vm1626, %v2772
      %2837 = vst.msk [vmem:[%s196 + $0x168] sm:$0xff] %vm1626, %v2773
      %2838 = vst.msk [vmem:[%s196 + $0x178] sm:$0xff] %vm1626, %v2774
      %2839 = vst.msk [vmem:[%s196 + $0x188] sm:$0xff] %vm1626, %v2775
      %2840 = vst.msk [vmem:[%s196 + $0x198] sm:$0xff] %vm1626, %v2776
      %2841 = vst.msk [vmem:[%s196 + $0x1a8] sm:$0xff] %vm1626, %v2777
      %2842 = vst.msk [vmem:[%s196 + $0x1b8] sm:$0xff] %vm1626, %v2778
      %2843 = vst.msk [vmem:[%s196 + $0x1c8] sm:$0xff] %vm1626, %v2779
      %2844 = vst.msk [vmem:[%s196 + $0x1d8] sm:$0xff] %vm1626, %v2780
      %2845 = vst.msk [vmem:[%s196 + $0x1e8] sm:$0xff] %vm1626, %v2781
      %2846 = vst.msk [vmem:[%s196 + $0x1f8] sm:$0xff] %vm1626, %v2782
      %2847 = vrot.lane.b32.xlu0 %v1049, 56
      %v2848 = vpop.permute.xlu0 %2847
      %2849 = vrot.lane.b32.xlu0 %v1054, 56
      %v2850 = vpop.permute.xlu0 %2849
      %2851 = vrot.lane.b32.xlu0 %v1059, 56
      %v2852 = vpop.permute.xlu0 %2851
      %2853 = vrot.lane.b32.xlu0 %v1064, 56
      %v2854 = vpop.permute.xlu0 %2853
      %2855 = vrot.lane.b32.xlu0 %v1069, 56
      %v2856 = vpop.permute.xlu0 %2855
      %2857 = vrot.lane.b32.xlu0 %v1074, 56
      %v2858 = vpop.permute.xlu0 %2857
      %2859 = vrot.lane.b32.xlu0 %v1079, 56
      %v2860 = vpop.permute.xlu0 %2859
      %2861 = vrot.lane.b32.xlu0 %v1084, 56
      %v2862 = vpop.permute.xlu0 %2861
      %2863 = vrot.lane.b32.xlu0 %v1089, 56
      %v2864 = vpop.permute.xlu0 %2863
      %2865 = vrot.lane.b32.xlu0 %v1094, 56
      %v2866 = vpop.permute.xlu0 %2865
      %2867 = vrot.lane.b32.xlu0 %v1099, 56
      %v2868 = vpop.permute.xlu0 %2867
      %2869 = vrot.lane.b32.xlu0 %v1104, 56
      %v2870 = vpop.permute.xlu0 %2869
      %2871 = vrot.lane.b32.xlu0 %v1109, 56
      %v2872 = vpop.permute.xlu0 %2871
      %2873 = vrot.lane.b32.xlu0 %v1114, 56
      %v2874 = vpop.permute.xlu0 %2873
      %2875 = vrot.lane.b32.xlu0 %v1119, 56
      %v2876 = vpop.permute.xlu0 %2875
      %2877 = vrot.lane.b32.xlu0 %v1124, 56
      %v2878 = vpop.permute.xlu0 %2877
      %2879 = vrot.lane.b32.xlu0 %v1129, 56
      %v2880 = vpop.permute.xlu0 %2879
      %2881 = vrot.lane.b32.xlu0 %v1134, 56
      %v2882 = vpop.permute.xlu0 %2881
      %2883 = vrot.lane.b32.xlu0 %v1139, 56
      %v2884 = vpop.permute.xlu0 %2883
      %2885 = vrot.lane.b32.xlu0 %v1144, 56
      %v2886 = vpop.permute.xlu0 %2885
      %2887 = vrot.lane.b32.xlu0 %v1149, 56
      %v2888 = vpop.permute.xlu0 %2887
      %2889 = vrot.lane.b32.xlu0 %v1154, 56
      %v2890 = vpop.permute.xlu0 %2889
      %2891 = vrot.lane.b32.xlu0 %v1159, 56
      %v2892 = vpop.permute.xlu0 %2891
      %2893 = vrot.lane.b32.xlu0 %v1164, 56
      %v2894 = vpop.permute.xlu0 %2893
      %2895 = vrot.lane.b32.xlu0 %v1169, 56
      %v2896 = vpop.permute.xlu0 %2895
      %2897 = vrot.lane.b32.xlu0 %v1174, 56
      %v2898 = vpop.permute.xlu0 %2897
      %2899 = vrot.lane.b32.xlu0 %v1179, 56
      %v2900 = vpop.permute.xlu0 %2899
      %2901 = vrot.lane.b32.xlu0 %v1184, 56
      %v2902 = vpop.permute.xlu0 %2901
      %2903 = vrot.lane.b32.xlu0 %v1189, 56
      %v2904 = vpop.permute.xlu0 %2903
      %2905 = vrot.lane.b32.xlu0 %v1194, 56
      %v2906 = vpop.permute.xlu0 %2905
      %2907 = vrot.lane.b32.xlu0 %v1199, 56
      %v2908 = vpop.permute.xlu0 %2907
      %2909 = vrot.lane.b32.xlu0 %v1204, 56
      %v2910 = vpop.permute.xlu0 %2909
      %2943 = vst.msk [vmem:[%s196 + $0x8] sm:$0xff] %vm1755, %v2848
      %2944 = vst.msk [vmem:[%s196 + $0x18] sm:$0xff] %vm1755, %v2850
      %2945 = vst.msk [vmem:[%s196 + $0x28] sm:$0xff] %vm1755, %v2852
      %2946 = vst.msk [vmem:[%s196 + $0x38] sm:$0xff] %vm1755, %v2854
      %2947 = vst.msk [vmem:[%s196 + $0x48] sm:$0xff] %vm1755, %v2856
      %2948 = vst.msk [vmem:[%s196 + $0x58] sm:$0xff] %vm1755, %v2858
      %2949 = vst.msk [vmem:[%s196 + $0x68] sm:$0xff] %vm1755, %v2860
      %2950 = vst.msk [vmem:[%s196 + $0x78] sm:$0xff] %vm1755, %v2862
      %2951 = vst.msk [vmem:[%s196 + $0x88] sm:$0xff] %vm1755, %v2864
      %2952 = vst.msk [vmem:[%s196 + $0x98] sm:$0xff] %vm1755, %v2866
      %2953 = vst.msk [vmem:[%s196 + $0xa8] sm:$0xff] %vm1755, %v2868
      %2954 = vst.msk [vmem:[%s196 + $0xb8] sm:$0xff] %vm1755, %v2870
      %2955 = vst.msk [vmem:[%s196 + $0xc8] sm:$0xff] %vm1755, %v2872
      %2956 = vst.msk [vmem:[%s196 + $0xd8] sm:$0xff] %vm1755, %v2874
      %2957 = vst.msk [vmem:[%s196 + $0xe8] sm:$0xff] %vm1755, %v2876
      %2958 = vst.msk [vmem:[%s196 + $0xf8] sm:$0xff] %vm1755, %v2878
      %2959 = vst.msk [vmem:[%s196 + $0x108] sm:$0xff] %vm1755, %v2880
      %2960 = vst.msk [vmem:[%s196 + $0x118] sm:$0xff] %vm1755, %v2882
      %2961 = vst.msk [vmem:[%s196 + $0x128] sm:$0xff] %vm1755, %v2884
      %2962 = vst.msk [vmem:[%s196 + $0x138] sm:$0xff] %vm1755, %v2886
      %2963 = vst.msk [vmem:[%s196 + $0x148] sm:$0xff] %vm1755, %v2888
      %2964 = vst.msk [vmem:[%s196 + $0x158] sm:$0xff] %vm1755, %v2890
      %2965 = vst.msk [vmem:[%s196 + $0x168] sm:$0xff] %vm1755, %v2892
      %2966 = vst.msk [vmem:[%s196 + $0x178] sm:$0xff] %vm1755, %v2894
      %2967 = vst.msk [vmem:[%s196 + $0x188] sm:$0xff] %vm1755, %v2896
      %2968 = vst.msk [vmem:[%s196 + $0x198] sm:$0xff] %vm1755, %v2898
      %2969 = vst.msk [vmem:[%s196 + $0x1a8] sm:$0xff] %vm1755, %v2900
      %2970 = vst.msk [vmem:[%s196 + $0x1b8] sm:$0xff] %vm1755, %v2902
      %2971 = vst.msk [vmem:[%s196 + $0x1c8] sm:$0xff] %vm1755, %v2904
      %2972 = vst.msk [vmem:[%s196 + $0x1d8] sm:$0xff] %vm1755, %v2906
      %2973 = vst.msk [vmem:[%s196 + $0x1e8] sm:$0xff] %vm1755, %v2908
      %2974 = vst.msk [vmem:[%s196 + $0x1f8] sm:$0xff] %vm1755, %v2910
      %2975 = vrot.lane.b32.xlu0 %v1049, 50
      %v2976 = vpop.permute.xlu0 %2975
      %2977 = vrot.lane.b32.xlu0 %v1054, 50
      %v2978 = vpop.permute.xlu0 %2977
      %2979 = vrot.lane.b32.xlu0 %v1059, 50
      %v2980 = vpop.permute.xlu0 %2979
      %2981 = vrot.lane.b32.xlu0 %v1064, 50
      %v2982 = vpop.permute.xlu0 %2981
      %2983 = vrot.lane.b32.xlu0 %v1069, 50
      %v2984 = vpop.permute.xlu0 %2983
      %2985 = vrot.lane.b32.xlu0 %v1074, 50
      %v2986 = vpop.permute.xlu0 %2985
      %2987 = vrot.lane.b32.xlu0 %v1079, 50
      %v2988 = vpop.permute.xlu0 %2987
      %2989 = vrot.lane.b32.xlu0 %v1084, 50
      %v2990 = vpop.permute.xlu0 %2989
      %2991 = vrot.lane.b32.xlu0 %v1089, 50
      %v2992 = vpop.permute.xlu0 %2991
      %2993 = vrot.lane.b32.xlu0 %v1094, 50
      %v2994 = vpop.permute.xlu0 %2993
      %2995 = vrot.lane.b32.xlu0 %v1099, 50
      %v2996 = vpop.permute.xlu0 %2995
      %2997 = vrot.lane.b32.xlu0 %v1104, 50
      %v2998 = vpop.permute.xlu0 %2997
      %2999 = vrot.lane.b32.xlu0 %v1109, 50
      %v3000 = vpop.permute.xlu0 %2999
      %3001 = vrot.lane.b32.xlu0 %v1114, 50
      %v3002 = vpop.permute.xlu0 %3001
      %3003 = vrot.lane.b32.xlu0 %v1119, 50
      %v3004 = vpop.permute.xlu0 %3003
      %3005 = vrot.lane.b32.xlu0 %v1124, 50
      %v3006 = vpop.permute.xlu0 %3005
      %3007 = vrot.lane.b32.xlu0 %v1129, 50
      %v3008 = vpop.permute.xlu0 %3007
      %3009 = vrot.lane.b32.xlu0 %v1134, 50
      %v3010 = vpop.permute.xlu0 %3009
      %3011 = vrot.lane.b32.xlu0 %v1139, 50
      %v3012 = vpop.permute.xlu0 %3011
      %3013 = vrot.lane.b32.xlu0 %v1144, 50
      %v3014 = vpop.permute.xlu0 %3013
      %3015 = vrot.lane.b32.xlu0 %v1149, 50
      %v3016 = vpop.permute.xlu0 %3015
      %3017 = vrot.lane.b32.xlu0 %v1154, 50
      %v3018 = vpop.permute.xlu0 %3017
      %3019 = vrot.lane.b32.xlu0 %v1159, 50
      %v3020 = vpop.permute.xlu0 %3019
      %3021 = vrot.lane.b32.xlu0 %v1164, 50
      %v3022 = vpop.permute.xlu0 %3021
      %3023 = vrot.lane.b32.xlu0 %v1169, 50
      %v3024 = vpop.permute.xlu0 %3023
      %3025 = vrot.lane.b32.xlu0 %v1174, 50
      %v3026 = vpop.permute.xlu0 %3025
      %3027 = vrot.lane.b32.xlu0 %v1179, 50
      %v3028 = vpop.permute.xlu0 %3027
      %3029 = vrot.lane.b32.xlu0 %v1184, 50
      %v3030 = vpop.permute.xlu0 %3029
      %3031 = vrot.lane.b32.xlu0 %v1189, 50
      %v3032 = vpop.permute.xlu0 %3031
      %3033 = vrot.lane.b32.xlu0 %v1194, 50
      %v3034 = vpop.permute.xlu0 %3033
      %3035 = vrot.lane.b32.xlu0 %v1199, 50
      %v3036 = vpop.permute.xlu0 %3035
      %3037 = vrot.lane.b32.xlu0 %v1204, 50
      %v3038 = vpop.permute.xlu0 %3037
      %3071 = vst.msk [vmem:[%s196 + $0x8] sm:$0xff] %vm1884, %v2976
      %3072 = vst.msk [vmem:[%s196 + $0x18] sm:$0xff] %vm1884, %v2978
      %3073 = vst.msk [vmem:[%s196 + $0x28] sm:$0xff] %vm1884, %v2980
      %3074 = vst.msk [vmem:[%s196 + $0x38] sm:$0xff] %vm1884, %v2982
      %3075 = vst.msk [vmem:[%s196 + $0x48] sm:$0xff] %vm1884, %v2984
      %3076 = vst.msk [vmem:[%s196 + $0x58] sm:$0xff] %vm1884, %v2986
      %3077 = vst.msk [vmem:[%s196 + $0x68] sm:$0xff] %vm1884, %v2988
      %3078 = vst.msk [vmem:[%s196 + $0x78] sm:$0xff] %vm1884, %v2990
      %3079 = vst.msk [vmem:[%s196 + $0x88] sm:$0xff] %vm1884, %v2992
      %3080 = vst.msk [vmem:[%s196 + $0x98] sm:$0xff] %vm1884, %v2994
      %3081 = vst.msk [vmem:[%s196 + $0xa8] sm:$0xff] %vm1884, %v2996
      %3082 = vst.msk [vmem:[%s196 + $0xb8] sm:$0xff] %vm1884, %v2998
      %3083 = vst.msk [vmem:[%s196 + $0xc8] sm:$0xff] %vm1884, %v3000
      %3084 = vst.msk [vmem:[%s196 + $0xd8] sm:$0xff] %vm1884, %v3002
      %3085 = vst.msk [vmem:[%s196 + $0xe8] sm:$0xff] %vm1884, %v3004
      %3086 = vst.msk [vmem:[%s196 + $0xf8] sm:$0xff] %vm1884, %v3006
      %3087 = vst.msk [vmem:[%s196 + $0x108] sm:$0xff] %vm1884, %v3008
      %3088 = vst.msk [vmem:[%s196 + $0x118] sm:$0xff] %vm1884, %v3010
      %3089 = vst.msk [vmem:[%s196 + $0x128] sm:$0xff] %vm1884, %v3012
      %3090 = vst.msk [vmem:[%s196 + $0x138] sm:$0xff] %vm1884, %v3014
      %3091 = vst.msk [vmem:[%s196 + $0x148] sm:$0xff] %vm1884, %v3016
      %3092 = vst.msk [vmem:[%s196 + $0x158] sm:$0xff] %vm1884, %v3018
      %3093 = vst.msk [vmem:[%s196 + $0x168] sm:$0xff] %vm1884, %v3020
      %3094 = vst.msk [vmem:[%s196 + $0x178] sm:$0xff] %vm1884, %v3022
      %3095 = vst.msk [vmem:[%s196 + $0x188] sm:$0xff] %vm1884, %v3024
      %3096 = vst.msk [vmem:[%s196 + $0x198] sm:$0xff] %vm1884, %v3026
      %3097 = vst.msk [vmem:[%s196 + $0x1a8] sm:$0xff] %vm1884, %v3028
      %3098 = vst.msk [vmem:[%s196 + $0x1b8] sm:$0xff] %vm1884, %v3030
      %3099 = vst.msk [vmem:[%s196 + $0x1c8] sm:$0xff] %vm1884, %v3032
      %3100 = vst.msk [vmem:[%s196 + $0x1d8] sm:$0xff] %vm1884, %v3034
      %3101 = vst.msk [vmem:[%s196 + $0x1e8] sm:$0xff] %vm1884, %v3036
      %3102 = vst.msk [vmem:[%s196 + $0x1f8] sm:$0xff] %vm1884, %v3038
      %3103 = vrot.lane.b32.xlu0 %v1049, 44
      %v3104 = vpop.permute.xlu0 %3103
      %3105 = vrot.lane.b32.xlu0 %v1054, 44
      %v3106 = vpop.permute.xlu0 %3105
      %3107 = vrot.lane.b32.xlu0 %v1059, 44
      %v3108 = vpop.permute.xlu0 %3107
      %3109 = vrot.lane.b32.xlu0 %v1064, 44
      %v3110 = vpop.permute.xlu0 %3109
      %3111 = vrot.lane.b32.xlu0 %v1069, 44
      %v3112 = vpop.permute.xlu0 %3111
      %3113 = vrot.lane.b32.xlu0 %v1074, 44
      %v3114 = vpop.permute.xlu0 %3113
      %3115 = vrot.lane.b32.xlu0 %v1079, 44
      %v3116 = vpop.permute.xlu0 %3115
      %3117 = vrot.lane.b32.xlu0 %v1084, 44
      %v3118 = vpop.permute.xlu0 %3117
      %3119 = vrot.lane.b32.xlu0 %v1089, 44
      %v3120 = vpop.permute.xlu0 %3119
      %3121 = vrot.lane.b32.xlu0 %v1094, 44
      %v3122 = vpop.permute.xlu0 %3121
      %3123 = vrot.lane.b32.xlu0 %v1099, 44
      %v3124 = vpop.permute.xlu0 %3123
      %3125 = vrot.lane.b32.xlu0 %v1104, 44
      %v3126 = vpop.permute.xlu0 %3125
      %3127 = vrot.lane.b32.xlu0 %v1109, 44
      %v3128 = vpop.permute.xlu0 %3127
      %3129 = vrot.lane.b32.xlu0 %v1114, 44
      %v3130 = vpop.permute.xlu0 %3129
      %3131 = vrot.lane.b32.xlu0 %v1119, 44
      %v3132 = vpop.permute.xlu0 %3131
      %3133 = vrot.lane.b32.xlu0 %v1124, 44
      %v3134 = vpop.permute.xlu0 %3133
      %3135 = vrot.lane.b32.xlu0 %v1129, 44
      %v3136 = vpop.permute.xlu0 %3135
      %3137 = vrot.lane.b32.xlu0 %v1134, 44
      %v3138 = vpop.permute.xlu0 %3137
      %3139 = vrot.lane.b32.xlu0 %v1139, 44
      %v3140 = vpop.permute.xlu0 %3139
      %3141 = vrot.lane.b32.xlu0 %v1144, 44
      %v3142 = vpop.permute.xlu0 %3141
      %3143 = vrot.lane.b32.xlu0 %v1149, 44
      %v3144 = vpop.permute.xlu0 %3143
      %3145 = vrot.lane.b32.xlu0 %v1154, 44
      %v3146 = vpop.permute.xlu0 %3145
      %3147 = vrot.lane.b32.xlu0 %v1159, 44
      %v3148 = vpop.permute.xlu0 %3147
      %3149 = vrot.lane.b32.xlu0 %v1164, 44
      %v3150 = vpop.permute.xlu0 %3149
      %3151 = vrot.lane.b32.xlu0 %v1169, 44
      %v3152 = vpop.permute.xlu0 %3151
      %3153 = vrot.lane.b32.xlu0 %v1174, 44
      %v3154 = vpop.permute.xlu0 %3153
      %3155 = vrot.lane.b32.xlu0 %v1179, 44
      %v3156 = vpop.permute.xlu0 %3155
      %3157 = vrot.lane.b32.xlu0 %v1184, 44
      %v3158 = vpop.permute.xlu0 %3157
      %3159 = vrot.lane.b32.xlu0 %v1189, 44
      %v3160 = vpop.permute.xlu0 %3159
      %3161 = vrot.lane.b32.xlu0 %v1194, 44
      %v3162 = vpop.permute.xlu0 %3161
      %3163 = vrot.lane.b32.xlu0 %v1199, 44
      %v3164 = vpop.permute.xlu0 %3163
      %3165 = vrot.lane.b32.xlu0 %v1204, 44
      %v3166 = vpop.permute.xlu0 %3165
      %3199 = vst.msk [vmem:[%s196 + $0x8] sm:$0xff] %vm2045, %v3104
      %3200 = vst.msk [vmem:[%s196 + $0x18] sm:$0xff] %vm2045, %v3106
      %3201 = vst.msk [vmem:[%s196 + $0x28] sm:$0xff] %vm2045, %v3108
      %3202 = vst.msk [vmem:[%s196 + $0x38] sm:$0xff] %vm2045, %v3110
      %3203 = vst.msk [vmem:[%s196 + $0x48] sm:$0xff] %vm2045, %v3112
      %3204 = vst.msk [vmem:[%s196 + $0x58] sm:$0xff] %vm2045, %v3114
      %3205 = vst.msk [vmem:[%s196 + $0x68] sm:$0xff] %vm2045, %v3116
      %3206 = vst.msk [vmem:[%s196 + $0x78] sm:$0xff] %vm2045, %v3118
      %3207 = vst.msk [vmem:[%s196 + $0x88] sm:$0xff] %vm2045, %v3120
      %3208 = vst.msk [vmem:[%s196 + $0x98] sm:$0xff] %vm2045, %v3122
      %3209 = vst.msk [vmem:[%s196 + $0xa8] sm:$0xff] %vm2045, %v3124
      %3210 = vst.msk [vmem:[%s196 + $0xb8] sm:$0xff] %vm2045, %v3126
      %3211 = vst.msk [vmem:[%s196 + $0xc8] sm:$0xff] %vm2045, %v3128
      %3212 = vst.msk [vmem:[%s196 + $0xd8] sm:$0xff] %vm2045, %v3130
      %3213 = vst.msk [vmem:[%s196 + $0xe8] sm:$0xff] %vm2045, %v3132
      %3214 = vst.msk [vmem:[%s196 + $0xf8] sm:$0xff] %vm2045, %v3134
      %3215 = vst.msk [vmem:[%s196 + $0x108] sm:$0xff] %vm2045, %v3136
      %3216 = vst.msk [vmem:[%s196 + $0x118] sm:$0xff] %vm2045, %v3138
      %3217 = vst.msk [vmem:[%s196 + $0x128] sm:$0xff] %vm2045, %v3140
      %3218 = vst.msk [vmem:[%s196 + $0x138] sm:$0xff] %vm2045, %v3142
      %3219 = vst.msk [vmem:[%s196 + $0x148] sm:$0xff] %vm2045, %v3144
      %3220 = vst.msk [vmem:[%s196 + $0x158] sm:$0xff] %vm2045, %v3146
      %3221 = vst.msk [vmem:[%s196 + $0x168] sm:$0xff] %vm2045, %v3148
      %3222 = vst.msk [vmem:[%s196 + $0x178] sm:$0xff] %vm2045, %v3150
      %3223 = vst.msk [vmem:[%s196 + $0x188] sm:$0xff] %vm2045, %v3152
      %3224 = vst.msk [vmem:[%s196 + $0x198] sm:$0xff] %vm2045, %v3154
      %3225 = vst.msk [vmem:[%s196 + $0x1a8] sm:$0xff] %vm2045, %v3156
      %3226 = vst.msk [vmem:[%s196 + $0x1b8] sm:$0xff] %vm2045, %v3158
      %3227 = vst.msk [vmem:[%s196 + $0x1c8] sm:$0xff] %vm2045, %v3160
      %3228 = vst.msk [vmem:[%s196 + $0x1d8] sm:$0xff] %vm2045, %v3162
      %3229 = vst.msk [vmem:[%s196 + $0x1e8] sm:$0xff] %vm2045, %v3164
      %3230 = vst.msk [vmem:[%s196 + $0x1f8] sm:$0xff] %vm2045, %v3166
      %3231 = vrot.lane.b32.xlu0 %v1049, 38
      %v3232 = vpop.permute.xlu0 %3231
      %3233 = vrot.lane.b32.xlu0 %v1054, 38
      %v3234 = vpop.permute.xlu0 %3233
      %3235 = vrot.lane.b32.xlu0 %v1059, 38
      %v3236 = vpop.permute.xlu0 %3235
      %3237 = vrot.lane.b32.xlu0 %v1064, 38
      %v3238 = vpop.permute.xlu0 %3237
      %3239 = vrot.lane.b32.xlu0 %v1069, 38
      %v3240 = vpop.permute.xlu0 %3239
      %3241 = vrot.lane.b32.xlu0 %v1074, 38
      %v3242 = vpop.permute.xlu0 %3241
      %3243 = vrot.lane.b32.xlu0 %v1079, 38
      %v3244 = vpop.permute.xlu0 %3243
      %3245 = vrot.lane.b32.xlu0 %v1084, 38
      %v3246 = vpop.permute.xlu0 %3245
      %3247 = vrot.lane.b32.xlu0 %v1089, 38
      %v3248 = vpop.permute.xlu0 %3247
      %3249 = vrot.lane.b32.xlu0 %v1094, 38
      %v3250 = vpop.permute.xlu0 %3249
      %3251 = vrot.lane.b32.xlu0 %v1099, 38
      %v3252 = vpop.permute.xlu0 %3251
      %3253 = vrot.lane.b32.xlu0 %v1104, 38
      %v3254 = vpop.permute.xlu0 %3253
      %3255 = vrot.lane.b32.xlu0 %v1109, 38
      %v3256 = vpop.permute.xlu0 %3255
      %3257 = vrot.lane.b32.xlu0 %v1114, 38
      %v3258 = vpop.permute.xlu0 %3257
      %3259 = vrot.lane.b32.xlu0 %v1119, 38
      %v3260 = vpop.permute.xlu0 %3259
      %3261 = vrot.lane.b32.xlu0 %v1124, 38
      %v3262 = vpop.permute.xlu0 %3261
      %3263 = vrot.lane.b32.xlu0 %v1129, 38
      %v3264 = vpop.permute.xlu0 %3263
      %3265 = vrot.lane.b32.xlu0 %v1134, 38
      %v3266 = vpop.permute.xlu0 %3265
      %3267 = vrot.lane.b32.xlu0 %v1139, 38
      %v3268 = vpop.permute.xlu0 %3267
      %3269 = vrot.lane.b32.xlu0 %v1144, 38
      %v3270 = vpop.permute.xlu0 %3269
      %3271 = vrot.lane.b32.xlu0 %v1149, 38
      %v3272 = vpop.permute.xlu0 %3271
      %3273 = vrot.lane.b32.xlu0 %v1154, 38
      %v3274 = vpop.permute.xlu0 %3273
      %3275 = vrot.lane.b32.xlu0 %v1159, 38
      %v3276 = vpop.permute.xlu0 %3275
      %3277 = vrot.lane.b32.xlu0 %v1164, 38
      %v3278 = vpop.permute.xlu0 %3277
      %3279 = vrot.lane.b32.xlu0 %v1169, 38
      %v3280 = vpop.permute.xlu0 %3279
      %3281 = vrot.lane.b32.xlu0 %v1174, 38
      %v3282 = vpop.permute.xlu0 %3281
      %3283 = vrot.lane.b32.xlu0 %v1179, 38
      %v3284 = vpop.permute.xlu0 %3283
      %3285 = vrot.lane.b32.xlu0 %v1184, 38
      %v3286 = vpop.permute.xlu0 %3285
      %3287 = vrot.lane.b32.xlu0 %v1189, 38
      %v3288 = vpop.permute.xlu0 %3287
      %3289 = vrot.lane.b32.xlu0 %v1194, 38
      %v3290 = vpop.permute.xlu0 %3289
      %3291 = vrot.lane.b32.xlu0 %v1199, 38
      %v3292 = vpop.permute.xlu0 %3291
      %3293 = vrot.lane.b32.xlu0 %v1204, 38
      %v3294 = vpop.permute.xlu0 %3293
      %3327 = vst.msk [vmem:[%s196 + $0x8] sm:$0xff] %vm2174, %v3232
      %3328 = vst.msk [vmem:[%s196 + $0x18] sm:$0xff] %vm2174, %v3234
      %3329 = vst.msk [vmem:[%s196 + $0x28] sm:$0xff] %vm2174, %v3236
      %3330 = vst.msk [vmem:[%s196 + $0x38] sm:$0xff] %vm2174, %v3238
      %3331 = vst.msk [vmem:[%s196 + $0x48] sm:$0xff] %vm2174, %v3240
      %3332 = vst.msk [vmem:[%s196 + $0x58] sm:$0xff] %vm2174, %v3242
      %3333 = vst.msk [vmem:[%s196 + $0x68] sm:$0xff] %vm2174, %v3244
      %3334 = vst.msk [vmem:[%s196 + $0x78] sm:$0xff] %vm2174, %v3246
      %3335 = vst.msk [vmem:[%s196 + $0x88] sm:$0xff] %vm2174, %v3248
      %3336 = vst.msk [vmem:[%s196 + $0x98] sm:$0xff] %vm2174, %v3250
      %3337 = vst.msk [vmem:[%s196 + $0xa8] sm:$0xff] %vm2174, %v3252
      %3338 = vst.msk [vmem:[%s196 + $0xb8] sm:$0xff] %vm2174, %v3254
      %3339 = vst.msk [vmem:[%s196 + $0xc8] sm:$0xff] %vm2174, %v3256
      %3340 = vst.msk [vmem:[%s196 + $0xd8] sm:$0xff] %vm2174, %v3258
      %3341 = vst.msk [vmem:[%s196 + $0xe8] sm:$0xff] %vm2174, %v3260
      %3342 = vst.msk [vmem:[%s196 + $0xf8] sm:$0xff] %vm2174, %v3262
      %3343 = vst.msk [vmem:[%s196 + $0x108] sm:$0xff] %vm2174, %v3264
      %3344 = vst.msk [vmem:[%s196 + $0x118] sm:$0xff] %vm2174, %v3266
      %3345 = vst.msk [vmem:[%s196 + $0x128] sm:$0xff] %vm2174, %v3268
      %3346 = vst.msk [vmem:[%s196 + $0x138] sm:$0xff] %vm2174, %v3270
      %3347 = vst.msk [vmem:[%s196 + $0x148] sm:$0xff] %vm2174, %v3272
      %3348 = vst.msk [vmem:[%s196 + $0x158] sm:$0xff] %vm2174, %v3274
      %3349 = vst.msk [vmem:[%s196 + $0x168] sm:$0xff] %vm2174, %v3276
      %3350 = vst.msk [vmem:[%s196 + $0x178] sm:$0xff] %vm2174, %v3278
      %3351 = vst.msk [vmem:[%s196 + $0x188] sm:$0xff] %vm2174, %v3280
      %3352 = vst.msk [vmem:[%s196 + $0x198] sm:$0xff] %vm2174, %v3282
      %3353 = vst.msk [vmem:[%s196 + $0x1a8] sm:$0xff] %vm2174, %v3284
      %3354 = vst.msk [vmem:[%s196 + $0x1b8] sm:$0xff] %vm2174, %v3286
      %3355 = vst.msk [vmem:[%s196 + $0x1c8] sm:$0xff] %vm2174, %v3288
      %3356 = vst.msk [vmem:[%s196 + $0x1d8] sm:$0xff] %vm2174, %v3290
      %3357 = vst.msk [vmem:[%s196 + $0x1e8] sm:$0xff] %vm2174, %v3292
      %3358 = vst.msk [vmem:[%s196 + $0x1f8] sm:$0xff] %vm2174, %v3294
      %s3359 = smul.u32 32, %s14
      %p3360 = scmp.lt.s32.totalorder %s3359, 63
      %s3361 = scalar_select %p3360, %s3359, 63
      %s3362 = smul.addr %s3361, 2
      %s3363 = smul.addr %s3362, 8
      %s3364 = scalar_lea.vmem %s3, %s3363
      // Predicated region
      $region33: #{forward.1} parent=31 // pred_check
        %p3365 = pneg %p105
      $region34: #{forward.1} parent=31 // pred_check_branch
        %3367 = sbr.rel (%p3365) target = $region36
      $region35: #{forward.1} parent=31 // pred_region
        %s3368 = smul.u32 32, %s14
      $region36: #{forward.1} parent=31 // pred_fallthru
        _
    $region32: #{forward.1} parent=5 // pred_fallthru
      _
    %p3369 = scmp.le.s32.totalorder 2, %s9
    // Predicated region
    $region37: #{forward.1} parent=5 // pred_check
      %p3370 = pneg %p3369
    $region38: #{forward.1} parent=5 // pred_check_branch
      %3372 = sbr.rel (%p3370) target = $region40
    $region39: #{forward.1} parent=5 // pred_region
      %s3373 = ssub.s32 %s9, 2
      // Predicated region
      $region41: #{forward.1} parent=39 // pred_check
        %p3374 = pneg %p111
      $region42: #{forward.1} parent=39 // pred_check_branch
        %3376 = sbr.rel (%p3374) target = $region44
      $region43: #{forward.1} parent=39 // pred_region
        %s3377 = smul.u32 32, %s15
        %p3378 = scmp.lt.s32.totalorder %s3377, 63
        %s3379 = scalar_select %p3378, %s3377, 63
        %s3380 = smul.addr %s3379, 2
        %s3381 = smul.addr %s3380, 8
        %s3382 = scalar_lea.vmem %s3, %s3381
      $region44: #{forward.1} parent=39 // pred_fallthru
        _
    $region40: #{forward.1} parent=5 // pred_fallthru
      _
  $region6: #{forward.1} parent=0 // loop_footer
    %s13 = sadd.s32 1, %s9
  $region7: #{forward.1} parent=0 // loop_footer_branch
    %8 = sbr.rel target = $region3
  $region8: #{forward.1} parent=0 // loop_exit
    _

</llo_original>
